<compile_context>
chip_gen: v6e
topology: v6e:2x2x1
jax: 0.10.0
libtpu: 0.0.40
codegen_flags: <defaults>
</compile_context>

<pallas_src>
import jax
import jax.numpy as jnp
from jax.experimental import pallas as pl
from jax.experimental.pallas import tpu as pltpu  # noqa: F401  (TPU backend)


# ---------------------------------------------------------------------------
# Fused kernel: gather + masked mean + split-W1 MLP for all 5 answers.
#   emb   : (Vp, D)   f32   zero-padded embedding table
#   que   : (B, Tq)   i32   question tokens
#   qlen  : (B, 1)    i32   question lengths
#   ans   : (A, B, Ta)i32   answer tokens (answer-major)
#   alen  : (B, A)    i32   answer lengths
#   w1q   : (A, D, Hp) f32  first-Linear weights acting on the question mean
#   w1a   : (A, D, Hp) f32  first-Linear weights acting on the answer mean
#   b1    : (A, 1, Hp) f32
#   w2    : (A, 1, Hp) f32  second-Linear weights (row form)
#   b2    : (1, A)     f32
#   out   : (B, A)     f32
# ---------------------------------------------------------------------------
def _fused_forward_kernel(emb_ref, que_ref, qlen_ref, ans_ref, alen_ref,
                          w1q_ref, w1a_ref, b1_ref, w2_ref, b2_ref, out_ref):
    B, Tq = que_ref.shape
    A, _, Ta = ans_ref.shape
    Vp, _ = emb_ref.shape

    emb = emb_ref[...]                                            # (Vp, D)
    viota = jax.lax.broadcasted_iota(jnp.int32, (B, Vp), 1)       # vocab lane iota

    # ---- question: masked mean via weighted one-hot counts @ embedding -----
    que = que_ref[...]                                            # (B, Tq) i32
    qlen = qlen_ref[...]                                          # (B, 1)  i32
    q_inv = 1.0 / jnp.maximum(qlen.astype(jnp.float32), 1.0)      # (B, 1)
    cq = jnp.zeros((B, Vp), jnp.float32)
    for t in range(Tq):                                           # static unroll
        tok = que[:, t:t + 1]                                     # (B, 1)
        w_t = jnp.where(qlen > t, q_inv, 0.0)                     # (B, 1)
        cq = cq + jnp.where(viota == tok, w_t, 0.0)               # (B, Vp)
    q_mean = jnp.dot(cq, emb, preferred_element_type=jnp.float32)  # (B, D)

    # ---- answers: gather+mean + split-W1 MLP, lane-dense (B, A) output -----
    alen = alen_ref[...]                                          # (B, A) i32
    aiota = jax.lax.broadcasted_iota(jnp.int32, (B, A), 1)
    out = jnp.zeros((B, A), jnp.float32)
    for i in range(A):                                            # static unroll (A=5)
        a_tok = ans_ref[i]                                        # (B, Ta) i32
        al_i = alen[:, i:i + 1]                                   # (B, 1)
        a_inv = 1.0 / jnp.maximum(al_i.astype(jnp.float32), 1.0)
        ca = jnp.zeros((B, Vp), jnp.float32)
        for t in range(Ta):
            tok = a_tok[:, t:t + 1]
            w_t = jnp.where(al_i > t, a_inv, 0.0)
            ca = ca + jnp.where(viota == tok, w_t, 0.0)
        a_mean = jnp.dot(ca, emb, preferred_element_type=jnp.float32)   # (B, D)

        # Linear(2D, H): split into question / answer halves -> no concat needed.
        pre = (jnp.dot(q_mean, w1q_ref[i], preferred_element_type=jnp.float32)
               + jnp.dot(a_mean, w1a_ref[i], preferred_element_type=jnp.float32)
               + b1_ref[i])                                       # (B, Hp)
        h = jnp.maximum(pre, 0.0)

        # Linear(H, 1) as VPU multiply + lane reduction (avoid N=1 MXU matmul).
        o_i = jnp.sum(h * w2_ref[i], axis=-1, keepdims=True)      # (B, 1)
        out = out + jnp.where(aiota == i, o_i, 0.0)               # place into column i

    out_ref[...] = out + b2_ref[...]                              # (B, A)


# ---------------------------------------------------------------------------
# Wrapper: parameter plumbing (split / pad / stack of tiny weights) + one pallas_call.
# ---------------------------------------------------------------------------
def baseline_mlp_forward(params, que, answers, que_len, ans_len):
    emb = params["embedding"].astype(jnp.float32)     # (V, D)
    w1 = params["w1"].astype(jnp.float32)             # (A, 2D, H)
    b1 = params["b1"].astype(jnp.float32)             # (A, H)
    w2 = params["w2"].astype(jnp.float32)             # (A, H)
    b2 = params["b2"].astype(jnp.float32)             # (A,)

    V, D = emb.shape
    A, twoD, H = w1.shape
    B, Tq = que.shape
    _, _, Ta = answers.shape

    Hp = ((H + 127) // 128) * 128                     # lane-pad hidden dim (50 -> 128)
    Vp = ((V + 7) // 8) * 8                           # sublane-pad vocab (matmul K dim)

    emb_p = jnp.zeros((Vp, D), jnp.float32).at[:V, :].set(emb)
    w1q = jnp.zeros((A, D, Hp), jnp.float32).at[:, :, :H].set(w1[:, :D, :])
    w1a = jnp.zeros((A, D, Hp), jnp.float32).at[:, :, :H].set(w1[:, D:, :])
    b1_p = jnp.zeros((A, 1, Hp), jnp.float32).at[:, 0, :H].set(b1)
    w2_p = jnp.zeros((A, 1, Hp), jnp.float32).at[:, 0, :H].set(w2)
    b2_row = b2.reshape(1, A)

    que_i = que.astype(jnp.int32)                                     # (B, Tq)
    qlen = que_len.astype(jnp.int32).reshape(B, 1)                    # (B, 1)
    ans_i = jnp.transpose(answers.astype(jnp.int32), (1, 0, 2))       # (A, B, Ta) tiny ints
    alen = ans_len.astype(jnp.int32)                                  # (B, A)

    inputs = (emb_p, que_i, qlen, ans_i, alen, w1q, w1a, b1_p, w2_p, b2_row)

    flops = (4 * B * Vp * (Tq + A * Ta)               # weighted one-hot counts
             + 2 * B * Vp * D * (1 + A)               # counts @ embedding
             + A * (4 * B * D * Hp + 4 * B * Hp))     # split-W1 MLP + lane reduction
    bytes_accessed = sum(int(x.size) * x.dtype.itemsize for x in inputs) + B * A * 4

    return pl.pallas_call(
        _fused_forward_kernel,
        out_shape=jax.ShapeDtypeStruct((B, A), jnp.float32),
        grid=(1,),
        in_specs=[
            pl.BlockSpec((Vp, D), lambda i: (0, 0)),
            pl.BlockSpec((B, Tq), lambda i: (0, 0)),
            pl.BlockSpec((B, 1), lambda i: (0, 0)),
            pl.BlockSpec((A, B, Ta), lambda i: (0, 0, 0)),
            pl.BlockSpec((B, A), lambda i: (0, 0)),
            pl.BlockSpec((A, D, Hp), lambda i: (0, 0, 0)),
            pl.BlockSpec((A, D, Hp), lambda i: (0, 0, 0)),
            pl.BlockSpec((A, 1, Hp), lambda i: (0, 0, 0)),
            pl.BlockSpec((A, 1, Hp), lambda i: (0, 0, 0)),
            pl.BlockSpec((1, A), lambda i: (0, 0)),
        ],
        out_specs=pl.BlockSpec((B, A), lambda i: (0, 0)),
        cost_estimate=pl.CostEstimate(flops=flops, transcendentals=0,
                                      bytes_accessed=bytes_accessed),
    )(*inputs)


# ---------------------------------------------------------------------------
# Pure-JAX reference (mirrors the PyTorch module) for a correctness check.
# ---------------------------------------------------------------------------
def _reference_forward(params, que, answers, que_len, ans_len):
    emb = params["embedding"]
    w1, b1, w2, b2 = params["w1"], params["b1"], params["w2"], params["b2"]
    hi = jax.lax.Precision.HIGHEST

    def mean_along_time(x, lens):
        T = x.shape[1]
        mask = (jnp.arange(T)[None, :] < lens[:, None]).astype(x.dtype)
        s = jnp.sum(x * mask[..., None], axis=1)
        return s / jnp.maximum(lens, 1).astype(x.dtype)[:, None]

    q = jnp.take(emb, que, axis=0)                     # (B, Tq, D)
    a = jnp.take(emb, answers, axis=0)                 # (B, A, Ta, D)
    qm = mean_along_time(q, que_len)                   # (B, D)
    cols = []
    for i in range(answers.shape[1]):
        am = mean_along_time(a[:, i], ans_len[:, i])   # (B, D)
        qa = jnp.concatenate([qm, am], axis=1)         # (B, 2D)
        h = jnp.maximum(jnp.dot(qa, w1[i], precision=hi) + b1[i], 0.0)
        cols.append(jnp.dot(h, w2[i], precision=hi) + b2[i])
    return jnp.stack(cols, axis=1)                     # (B, A)


# ---------------------------------------------------------------------------
if __name__ == "__main__":
    V, D, H, A = 20, 16, 50, 5      # vocab size, embed dim, hidden dim, #answers
    B, Tq, Ta = 2, 8, 8             # batch, question len, answer len

    key = jax.random.PRNGKey(0)
    k = jax.random.split(key, 8)

    params = {
        "embedding": jax.random.normal(k[0], (V, D), jnp.float32),
        "w1": jax.random.normal(k[1], (A, 2 * D, H), jnp.float32) / jnp.sqrt(2.0 * D),
        "b1": jax.random.normal(k[2], (A, H), jnp.float32) * 0.1,
        "w2": jax.random.normal(k[3], (A, H), jnp.float32) / jnp.sqrt(float(H)),
        "b2": jax.random.normal(k[4], (A,), jnp.float32) * 0.1,
    }

    que = jax.random.randint(k[5], (B, Tq), 0, V, dtype=jnp.int32)
    answers = jax.random.randint(k[6], (B, A, Ta), 0, V, dtype=jnp.int32)
    que_len = jnp.array([5, 8], dtype=jnp.int32)                           # (B,)
    ans_len = jax.random.randint(k[7], (B, A), 1, Ta + 1, dtype=jnp.int32)  # (B, A)

    fwd = jax.jit(baseline_mlp_forward)
    out = jax.block_until_ready(fwd(params, que, answers, que_len, ans_len))

    assert out.shape == (B, A), out.shape
    assert out.dtype == jnp.float32, out.dtype

    ref = _reference_forward(params, que, answers, que_len, ans_len)
    assert jnp.allclose(out, ref, rtol=2e-2, atol=5e-3), (out, ref)

    print("KERNEL_OK")
</pallas_src>

<mosaic_0001>
module attributes {stable_mosaic.version = 11 : i64} {
  func.func @_fused_forward_kernel(%arg0: i32, %arg1: memref<24x16xf32, #tpu.memory_space<vmem>>, %arg2: memref<2x8xi32, #tpu.memory_space<vmem>>, %arg3: memref<2x1xi32, #tpu.memory_space<vmem>>, %arg4: memref<5x2x8xi32, #tpu.memory_space<vmem>>, %arg5: memref<2x5xi32, #tpu.memory_space<vmem>>, %arg6: memref<5x16x128xf32, #tpu.memory_space<vmem>>, %arg7: memref<5x16x128xf32, #tpu.memory_space<vmem>>, %arg8: memref<5x1x128xf32, #tpu.memory_space<vmem>>, %arg9: memref<5x1x128xf32, #tpu.memory_space<vmem>>, %arg10: memref<1x5xf32, #tpu.memory_space<vmem>>, %arg11: memref<2x5xf32, #tpu.memory_space<vmem>>) attributes {dimension_semantics = [#tpu.dimension_semantics<arbitrary>], iteration_bounds = array<i64: 1>, scalar_prefetch = 0 : i64, scratch_operands = 0 : i64, tpu.core_type = #tpu.core_type<tc>, window_params = [{pipeline_mode = #tpu.pipeline_mode<synchronous>, transform_indices = @transform_0, window_bounds = array<i64: 24, 16>}, {pipeline_mode = #tpu.pipeline_mode<synchronous>, transform_indices = @transform_1, window_bounds = array<i64: 2, 8>}, {pipeline_mode = #tpu.pipeline_mode<synchronous>, transform_indices = @transform_2, window_bounds = array<i64: 2, 1>}, {pipeline_mode = #tpu.pipeline_mode<synchronous>, transform_indices = @transform_3, window_bounds = array<i64: 5, 2, 8>}, {pipeline_mode = #tpu.pipeline_mode<synchronous>, transform_indices = @transform_4, window_bounds = array<i64: 2, 5>}, {pipeline_mode = #tpu.pipeline_mode<synchronous>, transform_indices = @transform_5, window_bounds = array<i64: 5, 16, 128>}, {pipeline_mode = #tpu.pipeline_mode<synchronous>, transform_indices = @transform_6, window_bounds = array<i64: 5, 16, 128>}, {pipeline_mode = #tpu.pipeline_mode<synchronous>, transform_indices = @transform_7, window_bounds = array<i64: 5, 1, 128>}, {pipeline_mode = #tpu.pipeline_mode<synchronous>, transform_indices = @transform_8, window_bounds = array<i64: 5, 1, 128>}, {pipeline_mode = #tpu.pipeline_mode<synchronous>, transform_indices = @transform_9, window_bounds = array<i64: 1, 5>}, {pipeline_mode = #tpu.pipeline_mode<synchronous>, transform_indices = @transform_10, window_bounds = array<i64: 2, 5>}]} {
    %c0 = arith.constant 0 : index
    %c0_0 = arith.constant 0 : index
    %0 = vector.load %arg1[%c0, %c0_0] : memref<24x16xf32, #tpu.memory_space<vmem>>, vector<24x16xf32>
    %1 = tpu.iota {dimensions = array<i32: 1>} : vector<2x24xi32>
    %c0_1 = arith.constant 0 : index
    %c0_2 = arith.constant 0 : index
    %2 = vector.load %arg2[%c0_1, %c0_2] : memref<2x8xi32, #tpu.memory_space<vmem>>, vector<2x8xi32>
    %c0_3 = arith.constant 0 : index
    %c0_4 = arith.constant 0 : index
    %3 = vector.load %arg3[%c0_3, %c0_4] : memref<2x1xi32, #tpu.memory_space<vmem>>, vector<2x1xi32>
    %4 = arith.sitofp %3 : vector<2x1xi32> to vector<2x1xf32>
    %cst = arith.constant 1.000000e+00 : f32
    %5 = vector.broadcast %cst : f32 to vector<2x1xf32>
    %6 = arith.maximumf %4, %5 : vector<2x1xf32>
    %cst_5 = arith.constant 1.000000e+00 : f32
    %7 = vector.broadcast %cst_5 : f32 to vector<2x1xf32>
    %8 = arith.divf %7, %6 : vector<2x1xf32>
    %cst_6 = arith.constant 0.000000e+00 : f32
    %9 = vector.broadcast %cst_6 : f32 to vector<2x24xf32>
    %10 = vector.extract_strided_slice %2 {offsets = [0, 0], sizes = [2, 1], strides = [1, 1]} : vector<2x8xi32> to vector<2x1xi32>
    %c0_i32 = arith.constant 0 : i32
    %11 = vector.broadcast %c0_i32 : i32 to vector<2x1xi32>
    %12 = arith.cmpi sgt, %3, %11 : vector<2x1xi32>
    %cst_7 = arith.constant 0.000000e+00 : f32
    %13 = vector.broadcast %cst_7 : f32 to vector<2x1xf32>
    %14 = arith.select %12, %8, %13 : vector<2x1xi1>, vector<2x1xf32>
    %15 = vector.broadcast %10 : vector<2x1xi32> to vector<2x24xi32>
    %16 = arith.cmpi eq, %1, %15 : vector<2x24xi32>
    %cst_8 = arith.constant 0.000000e+00 : f32
    %17 = vector.shape_cast %14 : vector<2x1xf32> to vector<2x1xf32>
    %18 = vector.broadcast %17 : vector<2x1xf32> to vector<2x24xf32>
    %19 = vector.broadcast %cst_8 : f32 to vector<2x24xf32>
    %20 = arith.select %16, %18, %19 : vector<2x24xi1>, vector<2x24xf32>
    %21 = arith.addf %9, %20 : vector<2x24xf32>
    %22 = vector.extract_strided_slice %2 {offsets = [0, 1], sizes = [2, 1], strides = [1, 1]} : vector<2x8xi32> to vector<2x1xi32>
    %c1_i32 = arith.constant 1 : i32
    %23 = vector.broadcast %c1_i32 : i32 to vector<2x1xi32>
    %24 = arith.cmpi sgt, %3, %23 : vector<2x1xi32>
    %cst_9 = arith.constant 0.000000e+00 : f32
    %25 = vector.broadcast %cst_9 : f32 to vector<2x1xf32>
    %26 = arith.select %24, %8, %25 : vector<2x1xi1>, vector<2x1xf32>
    %27 = vector.broadcast %22 : vector<2x1xi32> to vector<2x24xi32>
    %28 = arith.cmpi eq, %1, %27 : vector<2x24xi32>
    %cst_10 = arith.constant 0.000000e+00 : f32
    %29 = vector.shape_cast %26 : vector<2x1xf32> to vector<2x1xf32>
    %30 = vector.broadcast %29 : vector<2x1xf32> to vector<2x24xf32>
    %31 = vector.broadcast %cst_10 : f32 to vector<2x24xf32>
    %32 = arith.select %28, %30, %31 : vector<2x24xi1>, vector<2x24xf32>
    %33 = arith.addf %21, %32 : vector<2x24xf32>
    %34 = vector.extract_strided_slice %2 {offsets = [0, 2], sizes = [2, 1], strides = [1, 1]} : vector<2x8xi32> to vector<2x1xi32>
    %c2_i32 = arith.constant 2 : i32
    %35 = vector.broadcast %c2_i32 : i32 to vector<2x1xi32>
    %36 = arith.cmpi sgt, %3, %35 : vector<2x1xi32>
    %cst_11 = arith.constant 0.000000e+00 : f32
    %37 = vector.broadcast %cst_11 : f32 to vector<2x1xf32>
    %38 = arith.select %36, %8, %37 : vector<2x1xi1>, vector<2x1xf32>
    %39 = vector.broadcast %34 : vector<2x1xi32> to vector<2x24xi32>
    %40 = arith.cmpi eq, %1, %39 : vector<2x24xi32>
    %cst_12 = arith.constant 0.000000e+00 : f32
    %41 = vector.shape_cast %38 : vector<2x1xf32> to vector<2x1xf32>
    %42 = vector.broadcast %41 : vector<2x1xf32> to vector<2x24xf32>
    %43 = vector.broadcast %cst_12 : f32 to vector<2x24xf32>
    %44 = arith.select %40, %42, %43 : vector<2x24xi1>, vector<2x24xf32>
    %45 = arith.addf %33, %44 : vector<2x24xf32>
    %46 = vector.extract_strided_slice %2 {offsets = [0, 3], sizes = [2, 1], strides = [1, 1]} : vector<2x8xi32> to vector<2x1xi32>
    %c3_i32 = arith.constant 3 : i32
    %47 = vector.broadcast %c3_i32 : i32 to vector<2x1xi32>
    %48 = arith.cmpi sgt, %3, %47 : vector<2x1xi32>
    %cst_13 = arith.constant 0.000000e+00 : f32
    %49 = vector.broadcast %cst_13 : f32 to vector<2x1xf32>
    %50 = arith.select %48, %8, %49 : vector<2x1xi1>, vector<2x1xf32>
    %51 = vector.broadcast %46 : vector<2x1xi32> to vector<2x24xi32>
    %52 = arith.cmpi eq, %1, %51 : vector<2x24xi32>
    %cst_14 = arith.constant 0.000000e+00 : f32
    %53 = vector.shape_cast %50 : vector<2x1xf32> to vector<2x1xf32>
    %54 = vector.broadcast %53 : vector<2x1xf32> to vector<2x24xf32>
    %55 = vector.broadcast %cst_14 : f32 to vector<2x24xf32>
    %56 = arith.select %52, %54, %55 : vector<2x24xi1>, vector<2x24xf32>
    %57 = arith.addf %45, %56 : vector<2x24xf32>
    %58 = vector.extract_strided_slice %2 {offsets = [0, 4], sizes = [2, 1], strides = [1, 1]} : vector<2x8xi32> to vector<2x1xi32>
    %c4_i32 = arith.constant 4 : i32
    %59 = vector.broadcast %c4_i32 : i32 to vector<2x1xi32>
    %60 = arith.cmpi sgt, %3, %59 : vector<2x1xi32>
    %cst_15 = arith.constant 0.000000e+00 : f32
    %61 = vector.broadcast %cst_15 : f32 to vector<2x1xf32>
    %62 = arith.select %60, %8, %61 : vector<2x1xi1>, vector<2x1xf32>
    %63 = vector.broadcast %58 : vector<2x1xi32> to vector<2x24xi32>
    %64 = arith.cmpi eq, %1, %63 : vector<2x24xi32>
    %cst_16 = arith.constant 0.000000e+00 : f32
    %65 = vector.shape_cast %62 : vector<2x1xf32> to vector<2x1xf32>
    %66 = vector.broadcast %65 : vector<2x1xf32> to vector<2x24xf32>
    %67 = vector.broadcast %cst_16 : f32 to vector<2x24xf32>
    %68 = arith.select %64, %66, %67 : vector<2x24xi1>, vector<2x24xf32>
    %69 = arith.addf %57, %68 : vector<2x24xf32>
    %70 = vector.extract_strided_slice %2 {offsets = [0, 5], sizes = [2, 1], strides = [1, 1]} : vector<2x8xi32> to vector<2x1xi32>
    %c5_i32 = arith.constant 5 : i32
    %71 = vector.broadcast %c5_i32 : i32 to vector<2x1xi32>
    %72 = arith.cmpi sgt, %3, %71 : vector<2x1xi32>
    %cst_17 = arith.constant 0.000000e+00 : f32
    %73 = vector.broadcast %cst_17 : f32 to vector<2x1xf32>
    %74 = arith.select %72, %8, %73 : vector<2x1xi1>, vector<2x1xf32>
    %75 = vector.broadcast %70 : vector<2x1xi32> to vector<2x24xi32>
    %76 = arith.cmpi eq, %1, %75 : vector<2x24xi32>
    %cst_18 = arith.constant 0.000000e+00 : f32
    %77 = vector.shape_cast %74 : vector<2x1xf32> to vector<2x1xf32>
    %78 = vector.broadcast %77 : vector<2x1xf32> to vector<2x24xf32>
    %79 = vector.broadcast %cst_18 : f32 to vector<2x24xf32>
    %80 = arith.select %76, %78, %79 : vector<2x24xi1>, vector<2x24xf32>
    %81 = arith.addf %69, %80 : vector<2x24xf32>
    %82 = vector.extract_strided_slice %2 {offsets = [0, 6], sizes = [2, 1], strides = [1, 1]} : vector<2x8xi32> to vector<2x1xi32>
    %c6_i32 = arith.constant 6 : i32
    %83 = vector.broadcast %c6_i32 : i32 to vector<2x1xi32>
    %84 = arith.cmpi sgt, %3, %83 : vector<2x1xi32>
    %cst_19 = arith.constant 0.000000e+00 : f32
    %85 = vector.broadcast %cst_19 : f32 to vector<2x1xf32>
    %86 = arith.select %84, %8, %85 : vector<2x1xi1>, vector<2x1xf32>
    %87 = vector.broadcast %82 : vector<2x1xi32> to vector<2x24xi32>
    %88 = arith.cmpi eq, %1, %87 : vector<2x24xi32>
    %cst_20 = arith.constant 0.000000e+00 : f32
    %89 = vector.shape_cast %86 : vector<2x1xf32> to vector<2x1xf32>
    %90 = vector.broadcast %89 : vector<2x1xf32> to vector<2x24xf32>
    %91 = vector.broadcast %cst_20 : f32 to vector<2x24xf32>
    %92 = arith.select %88, %90, %91 : vector<2x24xi1>, vector<2x24xf32>
    %93 = arith.addf %81, %92 : vector<2x24xf32>
    %94 = vector.extract_strided_slice %2 {offsets = [0, 7], sizes = [2, 1], strides = [1, 1]} : vector<2x8xi32> to vector<2x1xi32>
    %c7_i32 = arith.constant 7 : i32
    %95 = vector.broadcast %c7_i32 : i32 to vector<2x1xi32>
    %96 = arith.cmpi sgt, %3, %95 : vector<2x1xi32>
    %cst_21 = arith.constant 0.000000e+00 : f32
    %97 = vector.broadcast %cst_21 : f32 to vector<2x1xf32>
    %98 = arith.select %96, %8, %97 : vector<2x1xi1>, vector<2x1xf32>
    %99 = vector.broadcast %94 : vector<2x1xi32> to vector<2x24xi32>
    %100 = arith.cmpi eq, %1, %99 : vector<2x24xi32>
    %cst_22 = arith.constant 0.000000e+00 : f32
    %101 = vector.shape_cast %98 : vector<2x1xf32> to vector<2x1xf32>
    %102 = vector.broadcast %101 : vector<2x1xf32> to vector<2x24xf32>
    %103 = vector.broadcast %cst_22 : f32 to vector<2x24xf32>
    %104 = arith.select %100, %102, %103 : vector<2x24xi1>, vector<2x24xf32>
    %105 = arith.addf %93, %104 : vector<2x24xf32>
    %cst_23 = arith.constant dense<0.000000e+00> : vector<2x16xf32>
    %106 = tpu.matmul %105, %0, %cst_23 {dimension_numbers = #tpu.dot_dimension_numbers<[1], [0], [0], [1], [0, 0, 1, 1], [], []>} : vector<2x24xf32>, vector<24x16xf32>, vector<2x16xf32> -> vector<2x16xf32>
    %c0_24 = arith.constant 0 : index
    %c0_25 = arith.constant 0 : index
    %107 = vector.load %arg5[%c0_24, %c0_25] : memref<2x5xi32, #tpu.memory_space<vmem>>, vector<2x5xi32>
    %108 = tpu.iota {dimensions = array<i32: 1>} : vector<2x5xi32>
    %cst_26 = arith.constant 0.000000e+00 : f32
    %109 = vector.broadcast %cst_26 : f32 to vector<2x5xf32>
    %c0_27 = arith.constant 0 : index
    %c0_28 = arith.constant 0 : index
    %c0_29 = arith.constant 0 : index
    %110 = vector.load %arg4[%c0_27, %c0_28, %c0_29] : memref<5x2x8xi32, #tpu.memory_space<vmem>>, vector<1x2x8xi32>
    %111 = vector.shape_cast %110 : vector<1x2x8xi32> to vector<2x8xi32>
    %112 = vector.extract_strided_slice %107 {offsets = [0, 0], sizes = [2, 1], strides = [1, 1]} : vector<2x5xi32> to vector<2x1xi32>
    %113 = arith.sitofp %112 : vector<2x1xi32> to vector<2x1xf32>
    %cst_30 = arith.constant 1.000000e+00 : f32
    %114 = vector.broadcast %cst_30 : f32 to vector<2x1xf32>
    %115 = arith.maximumf %113, %114 : vector<2x1xf32>
    %cst_31 = arith.constant 1.000000e+00 : f32
    %116 = vector.broadcast %cst_31 : f32 to vector<2x1xf32>
    %117 = arith.divf %116, %115 : vector<2x1xf32>
    %cst_32 = arith.constant 0.000000e+00 : f32
    %118 = vector.broadcast %cst_32 : f32 to vector<2x24xf32>
    %119 = vector.extract_strided_slice %111 {offsets = [0, 0], sizes = [2, 1], strides = [1, 1]} : vector<2x8xi32> to vector<2x1xi32>
    %c0_i32_33 = arith.constant 0 : i32
    %120 = vector.broadcast %c0_i32_33 : i32 to vector<2x1xi32>
    %121 = arith.cmpi sgt, %112, %120 : vector<2x1xi32>
    %cst_34 = arith.constant 0.000000e+00 : f32
    %122 = vector.broadcast %cst_34 : f32 to vector<2x1xf32>
    %123 = arith.select %121, %117, %122 : vector<2x1xi1>, vector<2x1xf32>
    %124 = vector.broadcast %119 : vector<2x1xi32> to vector<2x24xi32>
    %125 = arith.cmpi eq, %1, %124 : vector<2x24xi32>
    %cst_35 = arith.constant 0.000000e+00 : f32
    %126 = vector.shape_cast %123 : vector<2x1xf32> to vector<2x1xf32>
    %127 = vector.broadcast %126 : vector<2x1xf32> to vector<2x24xf32>
    %128 = vector.broadcast %cst_35 : f32 to vector<2x24xf32>
    %129 = arith.select %125, %127, %128 : vector<2x24xi1>, vector<2x24xf32>
    %130 = arith.addf %118, %129 : vector<2x24xf32>
    %131 = vector.extract_strided_slice %111 {offsets = [0, 1], sizes = [2, 1], strides = [1, 1]} : vector<2x8xi32> to vector<2x1xi32>
    %c1_i32_36 = arith.constant 1 : i32
    %132 = vector.broadcast %c1_i32_36 : i32 to vector<2x1xi32>
    %133 = arith.cmpi sgt, %112, %132 : vector<2x1xi32>
    %cst_37 = arith.constant 0.000000e+00 : f32
    %134 = vector.broadcast %cst_37 : f32 to vector<2x1xf32>
    %135 = arith.select %133, %117, %134 : vector<2x1xi1>, vector<2x1xf32>
    %136 = vector.broadcast %131 : vector<2x1xi32> to vector<2x24xi32>
    %137 = arith.cmpi eq, %1, %136 : vector<2x24xi32>
    %cst_38 = arith.constant 0.000000e+00 : f32
    %138 = vector.shape_cast %135 : vector<2x1xf32> to vector<2x1xf32>
    %139 = vector.broadcast %138 : vector<2x1xf32> to vector<2x24xf32>
    %140 = vector.broadcast %cst_38 : f32 to vector<2x24xf32>
    %141 = arith.select %137, %139, %140 : vector<2x24xi1>, vector<2x24xf32>
    %142 = arith.addf %130, %141 : vector<2x24xf32>
    %143 = vector.extract_strided_slice %111 {offsets = [0, 2], sizes = [2, 1], strides = [1, 1]} : vector<2x8xi32> to vector<2x1xi32>
    %c2_i32_39 = arith.constant 2 : i32
    %144 = vector.broadcast %c2_i32_39 : i32 to vector<2x1xi32>
    %145 = arith.cmpi sgt, %112, %144 : vector<2x1xi32>
    %cst_40 = arith.constant 0.000000e+00 : f32
    %146 = vector.broadcast %cst_40 : f32 to vector<2x1xf32>
    %147 = arith.select %145, %117, %146 : vector<2x1xi1>, vector<2x1xf32>
    %148 = vector.broadcast %143 : vector<2x1xi32> to vector<2x24xi32>
    %149 = arith.cmpi eq, %1, %148 : vector<2x24xi32>
    %cst_41 = arith.constant 0.000000e+00 : f32
    %150 = vector.shape_cast %147 : vector<2x1xf32> to vector<2x1xf32>
    %151 = vector.broadcast %150 : vector<2x1xf32> to vector<2x24xf32>
    %152 = vector.broadcast %cst_41 : f32 to vector<2x24xf32>
    %153 = arith.select %149, %151, %152 : vector<2x24xi1>, vector<2x24xf32>
    %154 = arith.addf %142, %153 : vector<2x24xf32>
    %155 = vector.extract_strided_slice %111 {offsets = [0, 3], sizes = [2, 1], strides = [1, 1]} : vector<2x8xi32> to vector<2x1xi32>
    %c3_i32_42 = arith.constant 3 : i32
    %156 = vector.broadcast %c3_i32_42 : i32 to vector<2x1xi32>
    %157 = arith.cmpi sgt, %112, %156 : vector<2x1xi32>
    %cst_43 = arith.constant 0.000000e+00 : f32
    %158 = vector.broadcast %cst_43 : f32 to vector<2x1xf32>
    %159 = arith.select %157, %117, %158 : vector<2x1xi1>, vector<2x1xf32>
    %160 = vector.broadcast %155 : vector<2x1xi32> to vector<2x24xi32>
    %161 = arith.cmpi eq, %1, %160 : vector<2x24xi32>
    %cst_44 = arith.constant 0.000000e+00 : f32
    %162 = vector.shape_cast %159 : vector<2x1xf32> to vector<2x1xf32>
    %163 = vector.broadcast %162 : vector<2x1xf32> to vector<2x24xf32>
    %164 = vector.broadcast %cst_44 : f32 to vector<2x24xf32>
    %165 = arith.select %161, %163, %164 : vector<2x24xi1>, vector<2x24xf32>
    %166 = arith.addf %154, %165 : vector<2x24xf32>
    %167 = vector.extract_strided_slice %111 {offsets = [0, 4], sizes = [2, 1], strides = [1, 1]} : vector<2x8xi32> to vector<2x1xi32>
    %c4_i32_45 = arith.constant 4 : i32
    %168 = vector.broadcast %c4_i32_45 : i32 to vector<2x1xi32>
    %169 = arith.cmpi sgt, %112, %168 : vector<2x1xi32>
    %cst_46 = arith.constant 0.000000e+00 : f32
    %170 = vector.broadcast %cst_46 : f32 to vector<2x1xf32>
    %171 = arith.select %169, %117, %170 : vector<2x1xi1>, vector<2x1xf32>
    %172 = vector.broadcast %167 : vector<2x1xi32> to vector<2x24xi32>
    %173 = arith.cmpi eq, %1, %172 : vector<2x24xi32>
    %cst_47 = arith.constant 0.000000e+00 : f32
    %174 = vector.shape_cast %171 : vector<2x1xf32> to vector<2x1xf32>
    %175 = vector.broadcast %174 : vector<2x1xf32> to vector<2x24xf32>
    %176 = vector.broadcast %cst_47 : f32 to vector<2x24xf32>
    %177 = arith.select %173, %175, %176 : vector<2x24xi1>, vector<2x24xf32>
    %178 = arith.addf %166, %177 : vector<2x24xf32>
    %179 = vector.extract_strided_slice %111 {offsets = [0, 5], sizes = [2, 1], strides = [1, 1]} : vector<2x8xi32> to vector<2x1xi32>
    %c5_i32_48 = arith.constant 5 : i32
    %180 = vector.broadcast %c5_i32_48 : i32 to vector<2x1xi32>
    %181 = arith.cmpi sgt, %112, %180 : vector<2x1xi32>
    %cst_49 = arith.constant 0.000000e+00 : f32
    %182 = vector.broadcast %cst_49 : f32 to vector<2x1xf32>
    %183 = arith.select %181, %117, %182 : vector<2x1xi1>, vector<2x1xf32>
    %184 = vector.broadcast %179 : vector<2x1xi32> to vector<2x24xi32>
    %185 = arith.cmpi eq, %1, %184 : vector<2x24xi32>
    %cst_50 = arith.constant 0.000000e+00 : f32
    %186 = vector.shape_cast %183 : vector<2x1xf32> to vector<2x1xf32>
    %187 = vector.broadcast %186 : vector<2x1xf32> to vector<2x24xf32>
    %188 = vector.broadcast %cst_50 : f32 to vector<2x24xf32>
    %189 = arith.select %185, %187, %188 : vector<2x24xi1>, vector<2x24xf32>
    %190 = arith.addf %178, %189 : vector<2x24xf32>
    %191 = vector.extract_strided_slice %111 {offsets = [0, 6], sizes = [2, 1], strides = [1, 1]} : vector<2x8xi32> to vector<2x1xi32>
    %c6_i32_51 = arith.constant 6 : i32
    %192 = vector.broadcast %c6_i32_51 : i32 to vector<2x1xi32>
    %193 = arith.cmpi sgt, %112, %192 : vector<2x1xi32>
    %cst_52 = arith.constant 0.000000e+00 : f32
    %194 = vector.broadcast %cst_52 : f32 to vector<2x1xf32>
    %195 = arith.select %193, %117, %194 : vector<2x1xi1>, vector<2x1xf32>
    %196 = vector.broadcast %191 : vector<2x1xi32> to vector<2x24xi32>
    %197 = arith.cmpi eq, %1, %196 : vector<2x24xi32>
    %cst_53 = arith.constant 0.000000e+00 : f32
    %198 = vector.shape_cast %195 : vector<2x1xf32> to vector<2x1xf32>
    %199 = vector.broadcast %198 : vector<2x1xf32> to vector<2x24xf32>
    %200 = vector.broadcast %cst_53 : f32 to vector<2x24xf32>
    %201 = arith.select %197, %199, %200 : vector<2x24xi1>, vector<2x24xf32>
    %202 = arith.addf %190, %201 : vector<2x24xf32>
    %203 = vector.extract_strided_slice %111 {offsets = [0, 7], sizes = [2, 1], strides = [1, 1]} : vector<2x8xi32> to vector<2x1xi32>
    %c7_i32_54 = arith.constant 7 : i32
    %204 = vector.broadcast %c7_i32_54 : i32 to vector<2x1xi32>
    %205 = arith.cmpi sgt, %112, %204 : vector<2x1xi32>
    %cst_55 = arith.constant 0.000000e+00 : f32
    %206 = vector.broadcast %cst_55 : f32 to vector<2x1xf32>
    %207 = arith.select %205, %117, %206 : vector<2x1xi1>, vector<2x1xf32>
    %208 = vector.broadcast %203 : vector<2x1xi32> to vector<2x24xi32>
    %209 = arith.cmpi eq, %1, %208 : vector<2x24xi32>
    %cst_56 = arith.constant 0.000000e+00 : f32
    %210 = vector.shape_cast %207 : vector<2x1xf32> to vector<2x1xf32>
    %211 = vector.broadcast %210 : vector<2x1xf32> to vector<2x24xf32>
    %212 = vector.broadcast %cst_56 : f32 to vector<2x24xf32>
    %213 = arith.select %209, %211, %212 : vector<2x24xi1>, vector<2x24xf32>
    %214 = arith.addf %202, %213 : vector<2x24xf32>
    %cst_57 = arith.constant dense<0.000000e+00> : vector<2x16xf32>
    %215 = tpu.matmul %214, %0, %cst_57 {dimension_numbers = #tpu.dot_dimension_numbers<[1], [0], [0], [1], [0, 0, 1, 1], [], []>} : vector<2x24xf32>, vector<24x16xf32>, vector<2x16xf32> -> vector<2x16xf32>
    %c0_58 = arith.constant 0 : index
    %c0_59 = arith.constant 0 : index
    %c0_60 = arith.constant 0 : index
    %216 = vector.load %arg6[%c0_58, %c0_59, %c0_60] : memref<5x16x128xf32, #tpu.memory_space<vmem>>, vector<1x16x128xf32>
    %217 = vector.shape_cast %216 : vector<1x16x128xf32> to vector<16x128xf32>
    %cst_61 = arith.constant dense<0.000000e+00> : vector<2x128xf32>
    %218 = tpu.matmul %106, %217, %cst_61 {dimension_numbers = #tpu.dot_dimension_numbers<[1], [0], [0], [1], [0, 0, 1, 1], [], []>} : vector<2x16xf32>, vector<16x128xf32>, vector<2x128xf32> -> vector<2x128xf32>
    %c0_62 = arith.constant 0 : index
    %c0_63 = arith.constant 0 : index
    %c0_64 = arith.constant 0 : index
    %219 = vector.load %arg7[%c0_62, %c0_63, %c0_64] : memref<5x16x128xf32, #tpu.memory_space<vmem>>, vector<1x16x128xf32>
    %220 = vector.shape_cast %219 : vector<1x16x128xf32> to vector<16x128xf32>
    %cst_65 = arith.constant dense<0.000000e+00> : vector<2x128xf32>
    %221 = tpu.matmul %215, %220, %cst_65 {dimension_numbers = #tpu.dot_dimension_numbers<[1], [0], [0], [1], [0, 0, 1, 1], [], []>} : vector<2x16xf32>, vector<16x128xf32>, vector<2x128xf32> -> vector<2x128xf32>
    %222 = arith.addf %218, %221 : vector<2x128xf32>
    %c0_66 = arith.constant 0 : index
    %c0_67 = arith.constant 0 : index
    %c0_68 = arith.constant 0 : index
    %223 = vector.load %arg8[%c0_66, %c0_67, %c0_68] : memref<5x1x128xf32, #tpu.memory_space<vmem>>, vector<1x1x128xf32>
    %224 = vector.shape_cast %223 : vector<1x1x128xf32> to vector<1x128xf32>
    %225 = vector.broadcast %224 : vector<1x128xf32> to vector<2x128xf32>
    %226 = arith.addf %222, %225 : vector<2x128xf32>
    %cst_69 = arith.constant 0.000000e+00 : f32
    %227 = vector.broadcast %cst_69 : f32 to vector<2x128xf32>
    %228 = arith.maximumf %226, %227 : vector<2x128xf32>
    %c0_70 = arith.constant 0 : index
    %c0_71 = arith.constant 0 : index
    %c0_72 = arith.constant 0 : index
    %229 = vector.load %arg9[%c0_70, %c0_71, %c0_72] : memref<5x1x128xf32, #tpu.memory_space<vmem>>, vector<1x1x128xf32>
    %230 = vector.shape_cast %229 : vector<1x1x128xf32> to vector<1x128xf32>
    %231 = vector.broadcast %230 : vector<1x128xf32> to vector<2x128xf32>
    %232 = arith.mulf %228, %231 : vector<2x128xf32>
    %cst_73 = arith.constant dense<0.000000e+00> : vector<2xf32>
    %233 = vector.multi_reduction <add>, %232, %cst_73 [1] : vector<2x128xf32> to vector<2xf32>
    %234 = vector.shape_cast %233 : vector<2xf32> to vector<2x1xf32>
    %c0_i32_74 = arith.constant 0 : i32
    %235 = vector.broadcast %c0_i32_74 : i32 to vector<2x5xi32>
    %236 = arith.cmpi eq, %108, %235 : vector<2x5xi32>
    %cst_75 = arith.constant 0.000000e+00 : f32
    %237 = vector.shape_cast %234 : vector<2x1xf32> to vector<2x1xf32>
    %238 = vector.broadcast %237 : vector<2x1xf32> to vector<2x5xf32>
    %239 = vector.broadcast %cst_75 : f32 to vector<2x5xf32>
    %240 = arith.select %236, %238, %239 : vector<2x5xi1>, vector<2x5xf32>
    %241 = arith.addf %109, %240 : vector<2x5xf32>
    %c1 = arith.constant 1 : index
    %c0_76 = arith.constant 0 : index
    %c0_77 = arith.constant 0 : index
    %242 = vector.load %arg4[%c1, %c0_76, %c0_77] : memref<5x2x8xi32, #tpu.memory_space<vmem>>, vector<1x2x8xi32>
    %243 = vector.shape_cast %242 : vector<1x2x8xi32> to vector<2x8xi32>
    %244 = vector.extract_strided_slice %107 {offsets = [0, 1], sizes = [2, 1], strides = [1, 1]} : vector<2x5xi32> to vector<2x1xi32>
    %245 = arith.sitofp %244 : vector<2x1xi32> to vector<2x1xf32>
    %cst_78 = arith.constant 1.000000e+00 : f32
    %246 = vector.broadcast %cst_78 : f32 to vector<2x1xf32>
    %247 = arith.maximumf %245, %246 : vector<2x1xf32>
    %cst_79 = arith.constant 1.000000e+00 : f32
    %248 = vector.broadcast %cst_79 : f32 to vector<2x1xf32>
    %249 = arith.divf %248, %247 : vector<2x1xf32>
    %cst_80 = arith.constant 0.000000e+00 : f32
    %250 = vector.broadcast %cst_80 : f32 to vector<2x24xf32>
    %251 = vector.extract_strided_slice %243 {offsets = [0, 0], sizes = [2, 1], strides = [1, 1]} : vector<2x8xi32> to vector<2x1xi32>
    %c0_i32_81 = arith.constant 0 : i32
    %252 = vector.broadcast %c0_i32_81 : i32 to vector<2x1xi32>
    %253 = arith.cmpi sgt, %244, %252 : vector<2x1xi32>
    %cst_82 = arith.constant 0.000000e+00 : f32
    %254 = vector.broadcast %cst_82 : f32 to vector<2x1xf32>
    %255 = arith.select %253, %249, %254 : vector<2x1xi1>, vector<2x1xf32>
    %256 = vector.broadcast %251 : vector<2x1xi32> to vector<2x24xi32>
    %257 = arith.cmpi eq, %1, %256 : vector<2x24xi32>
    %cst_83 = arith.constant 0.000000e+00 : f32
    %258 = vector.shape_cast %255 : vector<2x1xf32> to vector<2x1xf32>
    %259 = vector.broadcast %258 : vector<2x1xf32> to vector<2x24xf32>
    %260 = vector.broadcast %cst_83 : f32 to vector<2x24xf32>
    %261 = arith.select %257, %259, %260 : vector<2x24xi1>, vector<2x24xf32>
    %262 = arith.addf %250, %261 : vector<2x24xf32>
    %263 = vector.extract_strided_slice %243 {offsets = [0, 1], sizes = [2, 1], strides = [1, 1]} : vector<2x8xi32> to vector<2x1xi32>
    %c1_i32_84 = arith.constant 1 : i32
    %264 = vector.broadcast %c1_i32_84 : i32 to vector<2x1xi32>
    %265 = arith.cmpi sgt, %244, %264 : vector<2x1xi32>
    %cst_85 = arith.constant 0.000000e+00 : f32
    %266 = vector.broadcast %cst_85 : f32 to vector<2x1xf32>
    %267 = arith.select %265, %249, %266 : vector<2x1xi1>, vector<2x1xf32>
    %268 = vector.broadcast %263 : vector<2x1xi32> to vector<2x24xi32>
    %269 = arith.cmpi eq, %1, %268 : vector<2x24xi32>
    %cst_86 = arith.constant 0.000000e+00 : f32
    %270 = vector.shape_cast %267 : vector<2x1xf32> to vector<2x1xf32>
    %271 = vector.broadcast %270 : vector<2x1xf32> to vector<2x24xf32>
    %272 = vector.broadcast %cst_86 : f32 to vector<2x24xf32>
    %273 = arith.select %269, %271, %272 : vector<2x24xi1>, vector<2x24xf32>
    %274 = arith.addf %262, %273 : vector<2x24xf32>
    %275 = vector.extract_strided_slice %243 {offsets = [0, 2], sizes = [2, 1], strides = [1, 1]} : vector<2x8xi32> to vector<2x1xi32>
    %c2_i32_87 = arith.constant 2 : i32
    %276 = vector.broadcast %c2_i32_87 : i32 to vector<2x1xi32>
    %277 = arith.cmpi sgt, %244, %276 : vector<2x1xi32>
    %cst_88 = arith.constant 0.000000e+00 : f32
    %278 = vector.broadcast %cst_88 : f32 to vector<2x1xf32>
    %279 = arith.select %277, %249, %278 : vector<2x1xi1>, vector<2x1xf32>
    %280 = vector.broadcast %275 : vector<2x1xi32> to vector<2x24xi32>
    %281 = arith.cmpi eq, %1, %280 : vector<2x24xi32>
    %cst_89 = arith.constant 0.000000e+00 : f32
    %282 = vector.shape_cast %279 : vector<2x1xf32> to vector<2x1xf32>
    %283 = vector.broadcast %282 : vector<2x1xf32> to vector<2x24xf32>
    %284 = vector.broadcast %cst_89 : f32 to vector<2x24xf32>
    %285 = arith.select %281, %283, %284 : vector<2x24xi1>, vector<2x24xf32>
    %286 = arith.addf %274, %285 : vector<2x24xf32>
    %287 = vector.extract_strided_slice %243 {offsets = [0, 3], sizes = [2, 1], strides = [1, 1]} : vector<2x8xi32> to vector<2x1xi32>
    %c3_i32_90 = arith.constant 3 : i32
    %288 = vector.broadcast %c3_i32_90 : i32 to vector<2x1xi32>
    %289 = arith.cmpi sgt, %244, %288 : vector<2x1xi32>
    %cst_91 = arith.constant 0.000000e+00 : f32
    %290 = vector.broadcast %cst_91 : f32 to vector<2x1xf32>
    %291 = arith.select %289, %249, %290 : vector<2x1xi1>, vector<2x1xf32>
    %292 = vector.broadcast %287 : vector<2x1xi32> to vector<2x24xi32>
    %293 = arith.cmpi eq, %1, %292 : vector<2x24xi32>
    %cst_92 = arith.constant 0.000000e+00 : f32
    %294 = vector.shape_cast %291 : vector<2x1xf32> to vector<2x1xf32>
    %295 = vector.broadcast %294 : vector<2x1xf32> to vector<2x24xf32>
    %296 = vector.broadcast %cst_92 : f32 to vector<2x24xf32>
    %297 = arith.select %293, %295, %296 : vector<2x24xi1>, vector<2x24xf32>
    %298 = arith.addf %286, %297 : vector<2x24xf32>
    %299 = vector.extract_strided_slice %243 {offsets = [0, 4], sizes = [2, 1], strides = [1, 1]} : vector<2x8xi32> to vector<2x1xi32>
    %c4_i32_93 = arith.constant 4 : i32
    %300 = vector.broadcast %c4_i32_93 : i32 to vector<2x1xi32>
    %301 = arith.cmpi sgt, %244, %300 : vector<2x1xi32>
    %cst_94 = arith.constant 0.000000e+00 : f32
    %302 = vector.broadcast %cst_94 : f32 to vector<2x1xf32>
    %303 = arith.select %301, %249, %302 : vector<2x1xi1>, vector<2x1xf32>
    %304 = vector.broadcast %299 : vector<2x1xi32> to vector<2x24xi32>
    %305 = arith.cmpi eq, %1, %304 : vector<2x24xi32>
    %cst_95 = arith.constant 0.000000e+00 : f32
    %306 = vector.shape_cast %303 : vector<2x1xf32> to vector<2x1xf32>
    %307 = vector.broadcast %306 : vector<2x1xf32> to vector<2x24xf32>
    %308 = vector.broadcast %cst_95 : f32 to vector<2x24xf32>
    %309 = arith.select %305, %307, %308 : vector<2x24xi1>, vector<2x24xf32>
    %310 = arith.addf %298, %309 : vector<2x24xf32>
    %311 = vector.extract_strided_slice %243 {offsets = [0, 5], sizes = [2, 1], strides = [1, 1]} : vector<2x8xi32> to vector<2x1xi32>
    %c5_i32_96 = arith.constant 5 : i32
    %312 = vector.broadcast %c5_i32_96 : i32 to vector<2x1xi32>
    %313 = arith.cmpi sgt, %244, %312 : vector<2x1xi32>
    %cst_97 = arith.constant 0.000000e+00 : f32
    %314 = vector.broadcast %cst_97 : f32 to vector<2x1xf32>
    %315 = arith.select %313, %249, %314 : vector<2x1xi1>, vector<2x1xf32>
    %316 = vector.broadcast %311 : vector<2x1xi32> to vector<2x24xi32>
    %317 = arith.cmpi eq, %1, %316 : vector<2x24xi32>
    %cst_98 = arith.constant 0.000000e+00 : f32
    %318 = vector.shape_cast %315 : vector<2x1xf32> to vector<2x1xf32>
    %319 = vector.broadcast %318 : vector<2x1xf32> to vector<2x24xf32>
    %320 = vector.broadcast %cst_98 : f32 to vector<2x24xf32>
    %321 = arith.select %317, %319, %320 : vector<2x24xi1>, vector<2x24xf32>
    %322 = arith.addf %310, %321 : vector<2x24xf32>
    %323 = vector.extract_strided_slice %243 {offsets = [0, 6], sizes = [2, 1], strides = [1, 1]} : vector<2x8xi32> to vector<2x1xi32>
    %c6_i32_99 = arith.constant 6 : i32
    %324 = vector.broadcast %c6_i32_99 : i32 to vector<2x1xi32>
    %325 = arith.cmpi sgt, %244, %324 : vector<2x1xi32>
    %cst_100 = arith.constant 0.000000e+00 : f32
    %326 = vector.broadcast %cst_100 : f32 to vector<2x1xf32>
    %327 = arith.select %325, %249, %326 : vector<2x1xi1>, vector<2x1xf32>
    %328 = vector.broadcast %323 : vector<2x1xi32> to vector<2x24xi32>
    %329 = arith.cmpi eq, %1, %328 : vector<2x24xi32>
    %cst_101 = arith.constant 0.000000e+00 : f32
    %330 = vector.shape_cast %327 : vector<2x1xf32> to vector<2x1xf32>
    %331 = vector.broadcast %330 : vector<2x1xf32> to vector<2x24xf32>
    %332 = vector.broadcast %cst_101 : f32 to vector<2x24xf32>
    %333 = arith.select %329, %331, %332 : vector<2x24xi1>, vector<2x24xf32>
    %334 = arith.addf %322, %333 : vector<2x24xf32>
    %335 = vector.extract_strided_slice %243 {offsets = [0, 7], sizes = [2, 1], strides = [1, 1]} : vector<2x8xi32> to vector<2x1xi32>
    %c7_i32_102 = arith.constant 7 : i32
    %336 = vector.broadcast %c7_i32_102 : i32 to vector<2x1xi32>
    %337 = arith.cmpi sgt, %244, %336 : vector<2x1xi32>
    %cst_103 = arith.constant 0.000000e+00 : f32
    %338 = vector.broadcast %cst_103 : f32 to vector<2x1xf32>
    %339 = arith.select %337, %249, %338 : vector<2x1xi1>, vector<2x1xf32>
    %340 = vector.broadcast %335 : vector<2x1xi32> to vector<2x24xi32>
    %341 = arith.cmpi eq, %1, %340 : vector<2x24xi32>
    %cst_104 = arith.constant 0.000000e+00 : f32
    %342 = vector.shape_cast %339 : vector<2x1xf32> to vector<2x1xf32>
    %343 = vector.broadcast %342 : vector<2x1xf32> to vector<2x24xf32>
    %344 = vector.broadcast %cst_104 : f32 to vector<2x24xf32>
    %345 = arith.select %341, %343, %344 : vector<2x24xi1>, vector<2x24xf32>
    %346 = arith.addf %334, %345 : vector<2x24xf32>
    %cst_105 = arith.constant dense<0.000000e+00> : vector<2x16xf32>
    %347 = tpu.matmul %346, %0, %cst_105 {dimension_numbers = #tpu.dot_dimension_numbers<[1], [0], [0], [1], [0, 0, 1, 1], [], []>} : vector<2x24xf32>, vector<24x16xf32>, vector<2x16xf32> -> vector<2x16xf32>
    %c1_106 = arith.constant 1 : index
    %c0_107 = arith.constant 0 : index
    %c0_108 = arith.constant 0 : index
    %348 = vector.load %arg6[%c1_106, %c0_107, %c0_108] : memref<5x16x128xf32, #tpu.memory_space<vmem>>, vector<1x16x128xf32>
    %349 = vector.shape_cast %348 : vector<1x16x128xf32> to vector<16x128xf32>
    %cst_109 = arith.constant dense<0.000000e+00> : vector<2x128xf32>
    %350 = tpu.matmul %106, %349, %cst_109 {dimension_numbers = #tpu.dot_dimension_numbers<[1], [0], [0], [1], [0, 0, 1, 1], [], []>} : vector<2x16xf32>, vector<16x128xf32>, vector<2x128xf32> -> vector<2x128xf32>
    %c1_110 = arith.constant 1 : index
    %c0_111 = arith.constant 0 : index
    %c0_112 = arith.constant 0 : index
    %351 = vector.load %arg7[%c1_110, %c0_111, %c0_112] : memref<5x16x128xf32, #tpu.memory_space<vmem>>, vector<1x16x128xf32>
    %352 = vector.shape_cast %351 : vector<1x16x128xf32> to vector<16x128xf32>
    %cst_113 = arith.constant dense<0.000000e+00> : vector<2x128xf32>
    %353 = tpu.matmul %347, %352, %cst_113 {dimension_numbers = #tpu.dot_dimension_numbers<[1], [0], [0], [1], [0, 0, 1, 1], [], []>} : vector<2x16xf32>, vector<16x128xf32>, vector<2x128xf32> -> vector<2x128xf32>
    %354 = arith.addf %350, %353 : vector<2x128xf32>
    %c1_114 = arith.constant 1 : index
    %c0_115 = arith.constant 0 : index
    %c0_116 = arith.constant 0 : index
    %355 = vector.load %arg8[%c1_114, %c0_115, %c0_116] : memref<5x1x128xf32, #tpu.memory_space<vmem>>, vector<1x1x128xf32>
    %356 = vector.shape_cast %355 : vector<1x1x128xf32> to vector<1x128xf32>
    %357 = vector.broadcast %356 : vector<1x128xf32> to vector<2x128xf32>
    %358 = arith.addf %354, %357 : vector<2x128xf32>
    %cst_117 = arith.constant 0.000000e+00 : f32
    %359 = vector.broadcast %cst_117 : f32 to vector<2x128xf32>
    %360 = arith.maximumf %358, %359 : vector<2x128xf32>
    %c1_118 = arith.constant 1 : index
    %c0_119 = arith.constant 0 : index
    %c0_120 = arith.constant 0 : index
    %361 = vector.load %arg9[%c1_118, %c0_119, %c0_120] : memref<5x1x128xf32, #tpu.memory_space<vmem>>, vector<1x1x128xf32>
    %362 = vector.shape_cast %361 : vector<1x1x128xf32> to vector<1x128xf32>
    %363 = vector.broadcast %362 : vector<1x128xf32> to vector<2x128xf32>
    %364 = arith.mulf %360, %363 : vector<2x128xf32>
    %cst_121 = arith.constant dense<0.000000e+00> : vector<2xf32>
    %365 = vector.multi_reduction <add>, %364, %cst_121 [1] : vector<2x128xf32> to vector<2xf32>
    %366 = vector.shape_cast %365 : vector<2xf32> to vector<2x1xf32>
    %c1_i32_122 = arith.constant 1 : i32
    %367 = vector.broadcast %c1_i32_122 : i32 to vector<2x5xi32>
    %368 = arith.cmpi eq, %108, %367 : vector<2x5xi32>
    %cst_123 = arith.constant 0.000000e+00 : f32
    %369 = vector.shape_cast %366 : vector<2x1xf32> to vector<2x1xf32>
    %370 = vector.broadcast %369 : vector<2x1xf32> to vector<2x5xf32>
    %371 = vector.broadcast %cst_123 : f32 to vector<2x5xf32>
    %372 = arith.select %368, %370, %371 : vector<2x5xi1>, vector<2x5xf32>
    %373 = arith.addf %241, %372 : vector<2x5xf32>
    %c2 = arith.constant 2 : index
    %c0_124 = arith.constant 0 : index
    %c0_125 = arith.constant 0 : index
    %374 = vector.load %arg4[%c2, %c0_124, %c0_125] : memref<5x2x8xi32, #tpu.memory_space<vmem>>, vector<1x2x8xi32>
    %375 = vector.shape_cast %374 : vector<1x2x8xi32> to vector<2x8xi32>
    %376 = vector.extract_strided_slice %107 {offsets = [0, 2], sizes = [2, 1], strides = [1, 1]} : vector<2x5xi32> to vector<2x1xi32>
    %377 = arith.sitofp %376 : vector<2x1xi32> to vector<2x1xf32>
    %cst_126 = arith.constant 1.000000e+00 : f32
    %378 = vector.broadcast %cst_126 : f32 to vector<2x1xf32>
    %379 = arith.maximumf %377, %378 : vector<2x1xf32>
    %cst_127 = arith.constant 1.000000e+00 : f32
    %380 = vector.broadcast %cst_127 : f32 to vector<2x1xf32>
    %381 = arith.divf %380, %379 : vector<2x1xf32>
    %cst_128 = arith.constant 0.000000e+00 : f32
    %382 = vector.broadcast %cst_128 : f32 to vector<2x24xf32>
    %383 = vector.extract_strided_slice %375 {offsets = [0, 0], sizes = [2, 1], strides = [1, 1]} : vector<2x8xi32> to vector<2x1xi32>
    %c0_i32_129 = arith.constant 0 : i32
    %384 = vector.broadcast %c0_i32_129 : i32 to vector<2x1xi32>
    %385 = arith.cmpi sgt, %376, %384 : vector<2x1xi32>
    %cst_130 = arith.constant 0.000000e+00 : f32
    %386 = vector.broadcast %cst_130 : f32 to vector<2x1xf32>
    %387 = arith.select %385, %381, %386 : vector<2x1xi1>, vector<2x1xf32>
    %388 = vector.broadcast %383 : vector<2x1xi32> to vector<2x24xi32>
    %389 = arith.cmpi eq, %1, %388 : vector<2x24xi32>
    %cst_131 = arith.constant 0.000000e+00 : f32
    %390 = vector.shape_cast %387 : vector<2x1xf32> to vector<2x1xf32>
    %391 = vector.broadcast %390 : vector<2x1xf32> to vector<2x24xf32>
    %392 = vector.broadcast %cst_131 : f32 to vector<2x24xf32>
    %393 = arith.select %389, %391, %392 : vector<2x24xi1>, vector<2x24xf32>
    %394 = arith.addf %382, %393 : vector<2x24xf32>
    %395 = vector.extract_strided_slice %375 {offsets = [0, 1], sizes = [2, 1], strides = [1, 1]} : vector<2x8xi32> to vector<2x1xi32>
    %c1_i32_132 = arith.constant 1 : i32
    %396 = vector.broadcast %c1_i32_132 : i32 to vector<2x1xi32>
    %397 = arith.cmpi sgt, %376, %396 : vector<2x1xi32>
    %cst_133 = arith.constant 0.000000e+00 : f32
    %398 = vector.broadcast %cst_133 : f32 to vector<2x1xf32>
    %399 = arith.select %397, %381, %398 : vector<2x1xi1>, vector<2x1xf32>
    %400 = vector.broadcast %395 : vector<2x1xi32> to vector<2x24xi32>
    %401 = arith.cmpi eq, %1, %400 : vector<2x24xi32>
    %cst_134 = arith.constant 0.000000e+00 : f32
    %402 = vector.shape_cast %399 : vector<2x1xf32> to vector<2x1xf32>
    %403 = vector.broadcast %402 : vector<2x1xf32> to vector<2x24xf32>
    %404 = vector.broadcast %cst_134 : f32 to vector<2x24xf32>
    %405 = arith.select %401, %403, %404 : vector<2x24xi1>, vector<2x24xf32>
    %406 = arith.addf %394, %405 : vector<2x24xf32>
    %407 = vector.extract_strided_slice %375 {offsets = [0, 2], sizes = [2, 1], strides = [1, 1]} : vector<2x8xi32> to vector<2x1xi32>
    %c2_i32_135 = arith.constant 2 : i32
    %408 = vector.broadcast %c2_i32_135 : i32 to vector<2x1xi32>
    %409 = arith.cmpi sgt, %376, %408 : vector<2x1xi32>
    %cst_136 = arith.constant 0.000000e+00 : f32
    %410 = vector.broadcast %cst_136 : f32 to vector<2x1xf32>
    %411 = arith.select %409, %381, %410 : vector<2x1xi1>, vector<2x1xf32>
    %412 = vector.broadcast %407 : vector<2x1xi32> to vector<2x24xi32>
    %413 = arith.cmpi eq, %1, %412 : vector<2x24xi32>
    %cst_137 = arith.constant 0.000000e+00 : f32
    %414 = vector.shape_cast %411 : vector<2x1xf32> to vector<2x1xf32>
    %415 = vector.broadcast %414 : vector<2x1xf32> to vector<2x24xf32>
    %416 = vector.broadcast %cst_137 : f32 to vector<2x24xf32>
    %417 = arith.select %413, %415, %416 : vector<2x24xi1>, vector<2x24xf32>
    %418 = arith.addf %406, %417 : vector<2x24xf32>
    %419 = vector.extract_strided_slice %375 {offsets = [0, 3], sizes = [2, 1], strides = [1, 1]} : vector<2x8xi32> to vector<2x1xi32>
    %c3_i32_138 = arith.constant 3 : i32
    %420 = vector.broadcast %c3_i32_138 : i32 to vector<2x1xi32>
    %421 = arith.cmpi sgt, %376, %420 : vector<2x1xi32>
    %cst_139 = arith.constant 0.000000e+00 : f32
    %422 = vector.broadcast %cst_139 : f32 to vector<2x1xf32>
    %423 = arith.select %421, %381, %422 : vector<2x1xi1>, vector<2x1xf32>
    %424 = vector.broadcast %419 : vector<2x1xi32> to vector<2x24xi32>
    %425 = arith.cmpi eq, %1, %424 : vector<2x24xi32>
    %cst_140 = arith.constant 0.000000e+00 : f32
    %426 = vector.shape_cast %423 : vector<2x1xf32> to vector<2x1xf32>
    %427 = vector.broadcast %426 : vector<2x1xf32> to vector<2x24xf32>
    %428 = vector.broadcast %cst_140 : f32 to vector<2x24xf32>
    %429 = arith.select %425, %427, %428 : vector<2x24xi1>, vector<2x24xf32>
    %430 = arith.addf %418, %429 : vector<2x24xf32>
    %431 = vector.extract_strided_slice %375 {offsets = [0, 4], sizes = [2, 1], strides = [1, 1]} : vector<2x8xi32> to vector<2x1xi32>
    %c4_i32_141 = arith.constant 4 : i32
    %432 = vector.broadcast %c4_i32_141 : i32 to vector<2x1xi32>
    %433 = arith.cmpi sgt, %376, %432 : vector<2x1xi32>
    %cst_142 = arith.constant 0.000000e+00 : f32
    %434 = vector.broadcast %cst_142 : f32 to vector<2x1xf32>
    %435 = arith.select %433, %381, %434 : vector<2x1xi1>, vector<2x1xf32>
    %436 = vector.broadcast %431 : vector<2x1xi32> to vector<2x24xi32>
    %437 = arith.cmpi eq, %1, %436 : vector<2x24xi32>
    %cst_143 = arith.constant 0.000000e+00 : f32
    %438 = vector.shape_cast %435 : vector<2x1xf32> to vector<2x1xf32>
    %439 = vector.broadcast %438 : vector<2x1xf32> to vector<2x24xf32>
    %440 = vector.broadcast %cst_143 : f32 to vector<2x24xf32>
    %441 = arith.select %437, %439, %440 : vector<2x24xi1>, vector<2x24xf32>
    %442 = arith.addf %430, %441 : vector<2x24xf32>
    %443 = vector.extract_strided_slice %375 {offsets = [0, 5], sizes = [2, 1], strides = [1, 1]} : vector<2x8xi32> to vector<2x1xi32>
    %c5_i32_144 = arith.constant 5 : i32
    %444 = vector.broadcast %c5_i32_144 : i32 to vector<2x1xi32>
    %445 = arith.cmpi sgt, %376, %444 : vector<2x1xi32>
    %cst_145 = arith.constant 0.000000e+00 : f32
    %446 = vector.broadcast %cst_145 : f32 to vector<2x1xf32>
    %447 = arith.select %445, %381, %446 : vector<2x1xi1>, vector<2x1xf32>
    %448 = vector.broadcast %443 : vector<2x1xi32> to vector<2x24xi32>
    %449 = arith.cmpi eq, %1, %448 : vector<2x24xi32>
    %cst_146 = arith.constant 0.000000e+00 : f32
    %450 = vector.shape_cast %447 : vector<2x1xf32> to vector<2x1xf32>
    %451 = vector.broadcast %450 : vector<2x1xf32> to vector<2x24xf32>
    %452 = vector.broadcast %cst_146 : f32 to vector<2x24xf32>
    %453 = arith.select %449, %451, %452 : vector<2x24xi1>, vector<2x24xf32>
    %454 = arith.addf %442, %453 : vector<2x24xf32>
    %455 = vector.extract_strided_slice %375 {offsets = [0, 6], sizes = [2, 1], strides = [1, 1]} : vector<2x8xi32> to vector<2x1xi32>
    %c6_i32_147 = arith.constant 6 : i32
    %456 = vector.broadcast %c6_i32_147 : i32 to vector<2x1xi32>
    %457 = arith.cmpi sgt, %376, %456 : vector<2x1xi32>
    %cst_148 = arith.constant 0.000000e+00 : f32
    %458 = vector.broadcast %cst_148 : f32 to vector<2x1xf32>
    %459 = arith.select %457, %381, %458 : vector<2x1xi1>, vector<2x1xf32>
    %460 = vector.broadcast %455 : vector<2x1xi32> to vector<2x24xi32>
    %461 = arith.cmpi eq, %1, %460 : vector<2x24xi32>
    %cst_149 = arith.constant 0.000000e+00 : f32
    %462 = vector.shape_cast %459 : vector<2x1xf32> to vector<2x1xf32>
    %463 = vector.broadcast %462 : vector<2x1xf32> to vector<2x24xf32>
    %464 = vector.broadcast %cst_149 : f32 to vector<2x24xf32>
    %465 = arith.select %461, %463, %464 : vector<2x24xi1>, vector<2x24xf32>
    %466 = arith.addf %454, %465 : vector<2x24xf32>
    %467 = vector.extract_strided_slice %375 {offsets = [0, 7], sizes = [2, 1], strides = [1, 1]} : vector<2x8xi32> to vector<2x1xi32>
    %c7_i32_150 = arith.constant 7 : i32
    %468 = vector.broadcast %c7_i32_150 : i32 to vector<2x1xi32>
    %469 = arith.cmpi sgt, %376, %468 : vector<2x1xi32>
    %cst_151 = arith.constant 0.000000e+00 : f32
    %470 = vector.broadcast %cst_151 : f32 to vector<2x1xf32>
    %471 = arith.select %469, %381, %470 : vector<2x1xi1>, vector<2x1xf32>
    %472 = vector.broadcast %467 : vector<2x1xi32> to vector<2x24xi32>
    %473 = arith.cmpi eq, %1, %472 : vector<2x24xi32>
    %cst_152 = arith.constant 0.000000e+00 : f32
    %474 = vector.shape_cast %471 : vector<2x1xf32> to vector<2x1xf32>
    %475 = vector.broadcast %474 : vector<2x1xf32> to vector<2x24xf32>
    %476 = vector.broadcast %cst_152 : f32 to vector<2x24xf32>
    %477 = arith.select %473, %475, %476 : vector<2x24xi1>, vector<2x24xf32>
    %478 = arith.addf %466, %477 : vector<2x24xf32>
    %cst_153 = arith.constant dense<0.000000e+00> : vector<2x16xf32>
    %479 = tpu.matmul %478, %0, %cst_153 {dimension_numbers = #tpu.dot_dimension_numbers<[1], [0], [0], [1], [0, 0, 1, 1], [], []>} : vector<2x24xf32>, vector<24x16xf32>, vector<2x16xf32> -> vector<2x16xf32>
    %c2_154 = arith.constant 2 : index
    %c0_155 = arith.constant 0 : index
    %c0_156 = arith.constant 0 : index
    %480 = vector.load %arg6[%c2_154, %c0_155, %c0_156] : memref<5x16x128xf32, #tpu.memory_space<vmem>>, vector<1x16x128xf32>
    %481 = vector.shape_cast %480 : vector<1x16x128xf32> to vector<16x128xf32>
    %cst_157 = arith.constant dense<0.000000e+00> : vector<2x128xf32>
    %482 = tpu.matmul %106, %481, %cst_157 {dimension_numbers = #tpu.dot_dimension_numbers<[1], [0], [0], [1], [0, 0, 1, 1], [], []>} : vector<2x16xf32>, vector<16x128xf32>, vector<2x128xf32> -> vector<2x128xf32>
    %c2_158 = arith.constant 2 : index
    %c0_159 = arith.constant 0 : index
    %c0_160 = arith.constant 0 : index
    %483 = vector.load %arg7[%c2_158, %c0_159, %c0_160] : memref<5x16x128xf32, #tpu.memory_space<vmem>>, vector<1x16x128xf32>
    %484 = vector.shape_cast %483 : vector<1x16x128xf32> to vector<16x128xf32>
    %cst_161 = arith.constant dense<0.000000e+00> : vector<2x128xf32>
    %485 = tpu.matmul %479, %484, %cst_161 {dimension_numbers = #tpu.dot_dimension_numbers<[1], [0], [0], [1], [0, 0, 1, 1], [], []>} : vector<2x16xf32>, vector<16x128xf32>, vector<2x128xf32> -> vector<2x128xf32>
    %486 = arith.addf %482, %485 : vector<2x128xf32>
    %c2_162 = arith.constant 2 : index
    %c0_163 = arith.constant 0 : index
    %c0_164 = arith.constant 0 : index
    %487 = vector.load %arg8[%c2_162, %c0_163, %c0_164] : memref<5x1x128xf32, #tpu.memory_space<vmem>>, vector<1x1x128xf32>
    %488 = vector.shape_cast %487 : vector<1x1x128xf32> to vector<1x128xf32>
    %489 = vector.broadcast %488 : vector<1x128xf32> to vector<2x128xf32>
    %490 = arith.addf %486, %489 : vector<2x128xf32>
    %cst_165 = arith.constant 0.000000e+00 : f32
    %491 = vector.broadcast %cst_165 : f32 to vector<2x128xf32>
    %492 = arith.maximumf %490, %491 : vector<2x128xf32>
    %c2_166 = arith.constant 2 : index
    %c0_167 = arith.constant 0 : index
    %c0_168 = arith.constant 0 : index
    %493 = vector.load %arg9[%c2_166, %c0_167, %c0_168] : memref<5x1x128xf32, #tpu.memory_space<vmem>>, vector<1x1x128xf32>
    %494 = vector.shape_cast %493 : vector<1x1x128xf32> to vector<1x128xf32>
    %495 = vector.broadcast %494 : vector<1x128xf32> to vector<2x128xf32>
    %496 = arith.mulf %492, %495 : vector<2x128xf32>
    %cst_169 = arith.constant dense<0.000000e+00> : vector<2xf32>
    %497 = vector.multi_reduction <add>, %496, %cst_169 [1] : vector<2x128xf32> to vector<2xf32>
    %498 = vector.shape_cast %497 : vector<2xf32> to vector<2x1xf32>
    %c2_i32_170 = arith.constant 2 : i32
    %499 = vector.broadcast %c2_i32_170 : i32 to vector<2x5xi32>
    %500 = arith.cmpi eq, %108, %499 : vector<2x5xi32>
    %cst_171 = arith.constant 0.000000e+00 : f32
    %501 = vector.shape_cast %498 : vector<2x1xf32> to vector<2x1xf32>
    %502 = vector.broadcast %501 : vector<2x1xf32> to vector<2x5xf32>
    %503 = vector.broadcast %cst_171 : f32 to vector<2x5xf32>
    %504 = arith.select %500, %502, %503 : vector<2x5xi1>, vector<2x5xf32>
    %505 = arith.addf %373, %504 : vector<2x5xf32>
    %c3 = arith.constant 3 : index
    %c0_172 = arith.constant 0 : index
    %c0_173 = arith.constant 0 : index
    %506 = vector.load %arg4[%c3, %c0_172, %c0_173] : memref<5x2x8xi32, #tpu.memory_space<vmem>>, vector<1x2x8xi32>
    %507 = vector.shape_cast %506 : vector<1x2x8xi32> to vector<2x8xi32>
    %508 = vector.extract_strided_slice %107 {offsets = [0, 3], sizes = [2, 1], strides = [1, 1]} : vector<2x5xi32> to vector<2x1xi32>
    %509 = arith.sitofp %508 : vector<2x1xi32> to vector<2x1xf32>
    %cst_174 = arith.constant 1.000000e+00 : f32
    %510 = vector.broadcast %cst_174 : f32 to vector<2x1xf32>
    %511 = arith.maximumf %509, %510 : vector<2x1xf32>
    %cst_175 = arith.constant 1.000000e+00 : f32
    %512 = vector.broadcast %cst_175 : f32 to vector<2x1xf32>
    %513 = arith.divf %512, %511 : vector<2x1xf32>
    %cst_176 = arith.constant 0.000000e+00 : f32
    %514 = vector.broadcast %cst_176 : f32 to vector<2x24xf32>
    %515 = vector.extract_strided_slice %507 {offsets = [0, 0], sizes = [2, 1], strides = [1, 1]} : vector<2x8xi32> to vector<2x1xi32>
    %c0_i32_177 = arith.constant 0 : i32
    %516 = vector.broadcast %c0_i32_177 : i32 to vector<2x1xi32>
    %517 = arith.cmpi sgt, %508, %516 : vector<2x1xi32>
    %cst_178 = arith.constant 0.000000e+00 : f32
    %518 = vector.broadcast %cst_178 : f32 to vector<2x1xf32>
    %519 = arith.select %517, %513, %518 : vector<2x1xi1>, vector<2x1xf32>
    %520 = vector.broadcast %515 : vector<2x1xi32> to vector<2x24xi32>
    %521 = arith.cmpi eq, %1, %520 : vector<2x24xi32>
    %cst_179 = arith.constant 0.000000e+00 : f32
    %522 = vector.shape_cast %519 : vector<2x1xf32> to vector<2x1xf32>
    %523 = vector.broadcast %522 : vector<2x1xf32> to vector<2x24xf32>
    %524 = vector.broadcast %cst_179 : f32 to vector<2x24xf32>
    %525 = arith.select %521, %523, %524 : vector<2x24xi1>, vector<2x24xf32>
    %526 = arith.addf %514, %525 : vector<2x24xf32>
    %527 = vector.extract_strided_slice %507 {offsets = [0, 1], sizes = [2, 1], strides = [1, 1]} : vector<2x8xi32> to vector<2x1xi32>
    %c1_i32_180 = arith.constant 1 : i32
    %528 = vector.broadcast %c1_i32_180 : i32 to vector<2x1xi32>
    %529 = arith.cmpi sgt, %508, %528 : vector<2x1xi32>
    %cst_181 = arith.constant 0.000000e+00 : f32
    %530 = vector.broadcast %cst_181 : f32 to vector<2x1xf32>
    %531 = arith.select %529, %513, %530 : vector<2x1xi1>, vector<2x1xf32>
    %532 = vector.broadcast %527 : vector<2x1xi32> to vector<2x24xi32>
    %533 = arith.cmpi eq, %1, %532 : vector<2x24xi32>
    %cst_182 = arith.constant 0.000000e+00 : f32
    %534 = vector.shape_cast %531 : vector<2x1xf32> to vector<2x1xf32>
    %535 = vector.broadcast %534 : vector<2x1xf32> to vector<2x24xf32>
    %536 = vector.broadcast %cst_182 : f32 to vector<2x24xf32>
    %537 = arith.select %533, %535, %536 : vector<2x24xi1>, vector<2x24xf32>
    %538 = arith.addf %526, %537 : vector<2x24xf32>
    %539 = vector.extract_strided_slice %507 {offsets = [0, 2], sizes = [2, 1], strides = [1, 1]} : vector<2x8xi32> to vector<2x1xi32>
    %c2_i32_183 = arith.constant 2 : i32
    %540 = vector.broadcast %c2_i32_183 : i32 to vector<2x1xi32>
    %541 = arith.cmpi sgt, %508, %540 : vector<2x1xi32>
    %cst_184 = arith.constant 0.000000e+00 : f32
    %542 = vector.broadcast %cst_184 : f32 to vector<2x1xf32>
    %543 = arith.select %541, %513, %542 : vector<2x1xi1>, vector<2x1xf32>
    %544 = vector.broadcast %539 : vector<2x1xi32> to vector<2x24xi32>
    %545 = arith.cmpi eq, %1, %544 : vector<2x24xi32>
    %cst_185 = arith.constant 0.000000e+00 : f32
    %546 = vector.shape_cast %543 : vector<2x1xf32> to vector<2x1xf32>
    %547 = vector.broadcast %546 : vector<2x1xf32> to vector<2x24xf32>
    %548 = vector.broadcast %cst_185 : f32 to vector<2x24xf32>
    %549 = arith.select %545, %547, %548 : vector<2x24xi1>, vector<2x24xf32>
    %550 = arith.addf %538, %549 : vector<2x24xf32>
    %551 = vector.extract_strided_slice %507 {offsets = [0, 3], sizes = [2, 1], strides = [1, 1]} : vector<2x8xi32> to vector<2x1xi32>
    %c3_i32_186 = arith.constant 3 : i32
    %552 = vector.broadcast %c3_i32_186 : i32 to vector<2x1xi32>
    %553 = arith.cmpi sgt, %508, %552 : vector<2x1xi32>
    %cst_187 = arith.constant 0.000000e+00 : f32
    %554 = vector.broadcast %cst_187 : f32 to vector<2x1xf32>
    %555 = arith.select %553, %513, %554 : vector<2x1xi1>, vector<2x1xf32>
    %556 = vector.broadcast %551 : vector<2x1xi32> to vector<2x24xi32>
    %557 = arith.cmpi eq, %1, %556 : vector<2x24xi32>
    %cst_188 = arith.constant 0.000000e+00 : f32
    %558 = vector.shape_cast %555 : vector<2x1xf32> to vector<2x1xf32>
    %559 = vector.broadcast %558 : vector<2x1xf32> to vector<2x24xf32>
    %560 = vector.broadcast %cst_188 : f32 to vector<2x24xf32>
    %561 = arith.select %557, %559, %560 : vector<2x24xi1>, vector<2x24xf32>
    %562 = arith.addf %550, %561 : vector<2x24xf32>
    %563 = vector.extract_strided_slice %507 {offsets = [0, 4], sizes = [2, 1], strides = [1, 1]} : vector<2x8xi32> to vector<2x1xi32>
    %c4_i32_189 = arith.constant 4 : i32
    %564 = vector.broadcast %c4_i32_189 : i32 to vector<2x1xi32>
    %565 = arith.cmpi sgt, %508, %564 : vector<2x1xi32>
    %cst_190 = arith.constant 0.000000e+00 : f32
    %566 = vector.broadcast %cst_190 : f32 to vector<2x1xf32>
    %567 = arith.select %565, %513, %566 : vector<2x1xi1>, vector<2x1xf32>
    %568 = vector.broadcast %563 : vector<2x1xi32> to vector<2x24xi32>
    %569 = arith.cmpi eq, %1, %568 : vector<2x24xi32>
    %cst_191 = arith.constant 0.000000e+00 : f32
    %570 = vector.shape_cast %567 : vector<2x1xf32> to vector<2x1xf32>
    %571 = vector.broadcast %570 : vector<2x1xf32> to vector<2x24xf32>
    %572 = vector.broadcast %cst_191 : f32 to vector<2x24xf32>
    %573 = arith.select %569, %571, %572 : vector<2x24xi1>, vector<2x24xf32>
    %574 = arith.addf %562, %573 : vector<2x24xf32>
    %575 = vector.extract_strided_slice %507 {offsets = [0, 5], sizes = [2, 1], strides = [1, 1]} : vector<2x8xi32> to vector<2x1xi32>
    %c5_i32_192 = arith.constant 5 : i32
    %576 = vector.broadcast %c5_i32_192 : i32 to vector<2x1xi32>
    %577 = arith.cmpi sgt, %508, %576 : vector<2x1xi32>
    %cst_193 = arith.constant 0.000000e+00 : f32
    %578 = vector.broadcast %cst_193 : f32 to vector<2x1xf32>
    %579 = arith.select %577, %513, %578 : vector<2x1xi1>, vector<2x1xf32>
    %580 = vector.broadcast %575 : vector<2x1xi32> to vector<2x24xi32>
    %581 = arith.cmpi eq, %1, %580 : vector<2x24xi32>
    %cst_194 = arith.constant 0.000000e+00 : f32
    %582 = vector.shape_cast %579 : vector<2x1xf32> to vector<2x1xf32>
    %583 = vector.broadcast %582 : vector<2x1xf32> to vector<2x24xf32>
    %584 = vector.broadcast %cst_194 : f32 to vector<2x24xf32>
    %585 = arith.select %581, %583, %584 : vector<2x24xi1>, vector<2x24xf32>
    %586 = arith.addf %574, %585 : vector<2x24xf32>
    %587 = vector.extract_strided_slice %507 {offsets = [0, 6], sizes = [2, 1], strides = [1, 1]} : vector<2x8xi32> to vector<2x1xi32>
    %c6_i32_195 = arith.constant 6 : i32
    %588 = vector.broadcast %c6_i32_195 : i32 to vector<2x1xi32>
    %589 = arith.cmpi sgt, %508, %588 : vector<2x1xi32>
    %cst_196 = arith.constant 0.000000e+00 : f32
    %590 = vector.broadcast %cst_196 : f32 to vector<2x1xf32>
    %591 = arith.select %589, %513, %590 : vector<2x1xi1>, vector<2x1xf32>
    %592 = vector.broadcast %587 : vector<2x1xi32> to vector<2x24xi32>
    %593 = arith.cmpi eq, %1, %592 : vector<2x24xi32>
    %cst_197 = arith.constant 0.000000e+00 : f32
    %594 = vector.shape_cast %591 : vector<2x1xf32> to vector<2x1xf32>
    %595 = vector.broadcast %594 : vector<2x1xf32> to vector<2x24xf32>
    %596 = vector.broadcast %cst_197 : f32 to vector<2x24xf32>
    %597 = arith.select %593, %595, %596 : vector<2x24xi1>, vector<2x24xf32>
    %598 = arith.addf %586, %597 : vector<2x24xf32>
    %599 = vector.extract_strided_slice %507 {offsets = [0, 7], sizes = [2, 1], strides = [1, 1]} : vector<2x8xi32> to vector<2x1xi32>
    %c7_i32_198 = arith.constant 7 : i32
    %600 = vector.broadcast %c7_i32_198 : i32 to vector<2x1xi32>
    %601 = arith.cmpi sgt, %508, %600 : vector<2x1xi32>
    %cst_199 = arith.constant 0.000000e+00 : f32
    %602 = vector.broadcast %cst_199 : f32 to vector<2x1xf32>
    %603 = arith.select %601, %513, %602 : vector<2x1xi1>, vector<2x1xf32>
    %604 = vector.broadcast %599 : vector<2x1xi32> to vector<2x24xi32>
    %605 = arith.cmpi eq, %1, %604 : vector<2x24xi32>
    %cst_200 = arith.constant 0.000000e+00 : f32
    %606 = vector.shape_cast %603 : vector<2x1xf32> to vector<2x1xf32>
    %607 = vector.broadcast %606 : vector<2x1xf32> to vector<2x24xf32>
    %608 = vector.broadcast %cst_200 : f32 to vector<2x24xf32>
    %609 = arith.select %605, %607, %608 : vector<2x24xi1>, vector<2x24xf32>
    %610 = arith.addf %598, %609 : vector<2x24xf32>
    %cst_201 = arith.constant dense<0.000000e+00> : vector<2x16xf32>
    %611 = tpu.matmul %610, %0, %cst_201 {dimension_numbers = #tpu.dot_dimension_numbers<[1], [0], [0], [1], [0, 0, 1, 1], [], []>} : vector<2x24xf32>, vector<24x16xf32>, vector<2x16xf32> -> vector<2x16xf32>
    %c3_202 = arith.constant 3 : index
    %c0_203 = arith.constant 0 : index
    %c0_204 = arith.constant 0 : index
    %612 = vector.load %arg6[%c3_202, %c0_203, %c0_204] : memref<5x16x128xf32, #tpu.memory_space<vmem>>, vector<1x16x128xf32>
    %613 = vector.shape_cast %612 : vector<1x16x128xf32> to vector<16x128xf32>
    %cst_205 = arith.constant dense<0.000000e+00> : vector<2x128xf32>
    %614 = tpu.matmul %106, %613, %cst_205 {dimension_numbers = #tpu.dot_dimension_numbers<[1], [0], [0], [1], [0, 0, 1, 1], [], []>} : vector<2x16xf32>, vector<16x128xf32>, vector<2x128xf32> -> vector<2x128xf32>
    %c3_206 = arith.constant 3 : index
    %c0_207 = arith.constant 0 : index
    %c0_208 = arith.constant 0 : index
    %615 = vector.load %arg7[%c3_206, %c0_207, %c0_208] : memref<5x16x128xf32, #tpu.memory_space<vmem>>, vector<1x16x128xf32>
    %616 = vector.shape_cast %615 : vector<1x16x128xf32> to vector<16x128xf32>
    %cst_209 = arith.constant dense<0.000000e+00> : vector<2x128xf32>
    %617 = tpu.matmul %611, %616, %cst_209 {dimension_numbers = #tpu.dot_dimension_numbers<[1], [0], [0], [1], [0, 0, 1, 1], [], []>} : vector<2x16xf32>, vector<16x128xf32>, vector<2x128xf32> -> vector<2x128xf32>
    %618 = arith.addf %614, %617 : vector<2x128xf32>
    %c3_210 = arith.constant 3 : index
    %c0_211 = arith.constant 0 : index
    %c0_212 = arith.constant 0 : index
    %619 = vector.load %arg8[%c3_210, %c0_211, %c0_212] : memref<5x1x128xf32, #tpu.memory_space<vmem>>, vector<1x1x128xf32>
    %620 = vector.shape_cast %619 : vector<1x1x128xf32> to vector<1x128xf32>
    %621 = vector.broadcast %620 : vector<1x128xf32> to vector<2x128xf32>
    %622 = arith.addf %618, %621 : vector<2x128xf32>
    %cst_213 = arith.constant 0.000000e+00 : f32
    %623 = vector.broadcast %cst_213 : f32 to vector<2x128xf32>
    %624 = arith.maximumf %622, %623 : vector<2x128xf32>
    %c3_214 = arith.constant 3 : index
    %c0_215 = arith.constant 0 : index
    %c0_216 = arith.constant 0 : index
    %625 = vector.load %arg9[%c3_214, %c0_215, %c0_216] : memref<5x1x128xf32, #tpu.memory_space<vmem>>, vector<1x1x128xf32>
    %626 = vector.shape_cast %625 : vector<1x1x128xf32> to vector<1x128xf32>
    %627 = vector.broadcast %626 : vector<1x128xf32> to vector<2x128xf32>
    %628 = arith.mulf %624, %627 : vector<2x128xf32>
    %cst_217 = arith.constant dense<0.000000e+00> : vector<2xf32>
    %629 = vector.multi_reduction <add>, %628, %cst_217 [1] : vector<2x128xf32> to vector<2xf32>
    %630 = vector.shape_cast %629 : vector<2xf32> to vector<2x1xf32>
    %c3_i32_218 = arith.constant 3 : i32
    %631 = vector.broadcast %c3_i32_218 : i32 to vector<2x5xi32>
    %632 = arith.cmpi eq, %108, %631 : vector<2x5xi32>
    %cst_219 = arith.constant 0.000000e+00 : f32
    %633 = vector.shape_cast %630 : vector<2x1xf32> to vector<2x1xf32>
    %634 = vector.broadcast %633 : vector<2x1xf32> to vector<2x5xf32>
    %635 = vector.broadcast %cst_219 : f32 to vector<2x5xf32>
    %636 = arith.select %632, %634, %635 : vector<2x5xi1>, vector<2x5xf32>
    %637 = arith.addf %505, %636 : vector<2x5xf32>
    %c4 = arith.constant 4 : index
    %c0_220 = arith.constant 0 : index
    %c0_221 = arith.constant 0 : index
    %638 = vector.load %arg4[%c4, %c0_220, %c0_221] : memref<5x2x8xi32, #tpu.memory_space<vmem>>, vector<1x2x8xi32>
    %639 = vector.shape_cast %638 : vector<1x2x8xi32> to vector<2x8xi32>
    %640 = vector.extract_strided_slice %107 {offsets = [0, 4], sizes = [2, 1], strides = [1, 1]} : vector<2x5xi32> to vector<2x1xi32>
    %641 = arith.sitofp %640 : vector<2x1xi32> to vector<2x1xf32>
    %cst_222 = arith.constant 1.000000e+00 : f32
    %642 = vector.broadcast %cst_222 : f32 to vector<2x1xf32>
    %643 = arith.maximumf %641, %642 : vector<2x1xf32>
    %cst_223 = arith.constant 1.000000e+00 : f32
    %644 = vector.broadcast %cst_223 : f32 to vector<2x1xf32>
    %645 = arith.divf %644, %643 : vector<2x1xf32>
    %cst_224 = arith.constant 0.000000e+00 : f32
    %646 = vector.broadcast %cst_224 : f32 to vector<2x24xf32>
    %647 = vector.extract_strided_slice %639 {offsets = [0, 0], sizes = [2, 1], strides = [1, 1]} : vector<2x8xi32> to vector<2x1xi32>
    %c0_i32_225 = arith.constant 0 : i32
    %648 = vector.broadcast %c0_i32_225 : i32 to vector<2x1xi32>
    %649 = arith.cmpi sgt, %640, %648 : vector<2x1xi32>
    %cst_226 = arith.constant 0.000000e+00 : f32
    %650 = vector.broadcast %cst_226 : f32 to vector<2x1xf32>
    %651 = arith.select %649, %645, %650 : vector<2x1xi1>, vector<2x1xf32>
    %652 = vector.broadcast %647 : vector<2x1xi32> to vector<2x24xi32>
    %653 = arith.cmpi eq, %1, %652 : vector<2x24xi32>
    %cst_227 = arith.constant 0.000000e+00 : f32
    %654 = vector.shape_cast %651 : vector<2x1xf32> to vector<2x1xf32>
    %655 = vector.broadcast %654 : vector<2x1xf32> to vector<2x24xf32>
    %656 = vector.broadcast %cst_227 : f32 to vector<2x24xf32>
    %657 = arith.select %653, %655, %656 : vector<2x24xi1>, vector<2x24xf32>
    %658 = arith.addf %646, %657 : vector<2x24xf32>
    %659 = vector.extract_strided_slice %639 {offsets = [0, 1], sizes = [2, 1], strides = [1, 1]} : vector<2x8xi32> to vector<2x1xi32>
    %c1_i32_228 = arith.constant 1 : i32
    %660 = vector.broadcast %c1_i32_228 : i32 to vector<2x1xi32>
    %661 = arith.cmpi sgt, %640, %660 : vector<2x1xi32>
    %cst_229 = arith.constant 0.000000e+00 : f32
    %662 = vector.broadcast %cst_229 : f32 to vector<2x1xf32>
    %663 = arith.select %661, %645, %662 : vector<2x1xi1>, vector<2x1xf32>
    %664 = vector.broadcast %659 : vector<2x1xi32> to vector<2x24xi32>
    %665 = arith.cmpi eq, %1, %664 : vector<2x24xi32>
    %cst_230 = arith.constant 0.000000e+00 : f32
    %666 = vector.shape_cast %663 : vector<2x1xf32> to vector<2x1xf32>
    %667 = vector.broadcast %666 : vector<2x1xf32> to vector<2x24xf32>
    %668 = vector.broadcast %cst_230 : f32 to vector<2x24xf32>
    %669 = arith.select %665, %667, %668 : vector<2x24xi1>, vector<2x24xf32>
    %670 = arith.addf %658, %669 : vector<2x24xf32>
    %671 = vector.extract_strided_slice %639 {offsets = [0, 2], sizes = [2, 1], strides = [1, 1]} : vector<2x8xi32> to vector<2x1xi32>
    %c2_i32_231 = arith.constant 2 : i32
    %672 = vector.broadcast %c2_i32_231 : i32 to vector<2x1xi32>
    %673 = arith.cmpi sgt, %640, %672 : vector<2x1xi32>
    %cst_232 = arith.constant 0.000000e+00 : f32
    %674 = vector.broadcast %cst_232 : f32 to vector<2x1xf32>
    %675 = arith.select %673, %645, %674 : vector<2x1xi1>, vector<2x1xf32>
    %676 = vector.broadcast %671 : vector<2x1xi32> to vector<2x24xi32>
    %677 = arith.cmpi eq, %1, %676 : vector<2x24xi32>
    %cst_233 = arith.constant 0.000000e+00 : f32
    %678 = vector.shape_cast %675 : vector<2x1xf32> to vector<2x1xf32>
    %679 = vector.broadcast %678 : vector<2x1xf32> to vector<2x24xf32>
    %680 = vector.broadcast %cst_233 : f32 to vector<2x24xf32>
    %681 = arith.select %677, %679, %680 : vector<2x24xi1>, vector<2x24xf32>
    %682 = arith.addf %670, %681 : vector<2x24xf32>
    %683 = vector.extract_strided_slice %639 {offsets = [0, 3], sizes = [2, 1], strides = [1, 1]} : vector<2x8xi32> to vector<2x1xi32>
    %c3_i32_234 = arith.constant 3 : i32
    %684 = vector.broadcast %c3_i32_234 : i32 to vector<2x1xi32>
    %685 = arith.cmpi sgt, %640, %684 : vector<2x1xi32>
    %cst_235 = arith.constant 0.000000e+00 : f32
    %686 = vector.broadcast %cst_235 : f32 to vector<2x1xf32>
    %687 = arith.select %685, %645, %686 : vector<2x1xi1>, vector<2x1xf32>
    %688 = vector.broadcast %683 : vector<2x1xi32> to vector<2x24xi32>
    %689 = arith.cmpi eq, %1, %688 : vector<2x24xi32>
    %cst_236 = arith.constant 0.000000e+00 : f32
    %690 = vector.shape_cast %687 : vector<2x1xf32> to vector<2x1xf32>
    %691 = vector.broadcast %690 : vector<2x1xf32> to vector<2x24xf32>
    %692 = vector.broadcast %cst_236 : f32 to vector<2x24xf32>
    %693 = arith.select %689, %691, %692 : vector<2x24xi1>, vector<2x24xf32>
    %694 = arith.addf %682, %693 : vector<2x24xf32>
    %695 = vector.extract_strided_slice %639 {offsets = [0, 4], sizes = [2, 1], strides = [1, 1]} : vector<2x8xi32> to vector<2x1xi32>
    %c4_i32_237 = arith.constant 4 : i32
    %696 = vector.broadcast %c4_i32_237 : i32 to vector<2x1xi32>
    %697 = arith.cmpi sgt, %640, %696 : vector<2x1xi32>
    %cst_238 = arith.constant 0.000000e+00 : f32
    %698 = vector.broadcast %cst_238 : f32 to vector<2x1xf32>
    %699 = arith.select %697, %645, %698 : vector<2x1xi1>, vector<2x1xf32>
    %700 = vector.broadcast %695 : vector<2x1xi32> to vector<2x24xi32>
    %701 = arith.cmpi eq, %1, %700 : vector<2x24xi32>
    %cst_239 = arith.constant 0.000000e+00 : f32
    %702 = vector.shape_cast %699 : vector<2x1xf32> to vector<2x1xf32>
    %703 = vector.broadcast %702 : vector<2x1xf32> to vector<2x24xf32>
    %704 = vector.broadcast %cst_239 : f32 to vector<2x24xf32>
    %705 = arith.select %701, %703, %704 : vector<2x24xi1>, vector<2x24xf32>
    %706 = arith.addf %694, %705 : vector<2x24xf32>
    %707 = vector.extract_strided_slice %639 {offsets = [0, 5], sizes = [2, 1], strides = [1, 1]} : vector<2x8xi32> to vector<2x1xi32>
    %c5_i32_240 = arith.constant 5 : i32
    %708 = vector.broadcast %c5_i32_240 : i32 to vector<2x1xi32>
    %709 = arith.cmpi sgt, %640, %708 : vector<2x1xi32>
    %cst_241 = arith.constant 0.000000e+00 : f32
    %710 = vector.broadcast %cst_241 : f32 to vector<2x1xf32>
    %711 = arith.select %709, %645, %710 : vector<2x1xi1>, vector<2x1xf32>
    %712 = vector.broadcast %707 : vector<2x1xi32> to vector<2x24xi32>
    %713 = arith.cmpi eq, %1, %712 : vector<2x24xi32>
    %cst_242 = arith.constant 0.000000e+00 : f32
    %714 = vector.shape_cast %711 : vector<2x1xf32> to vector<2x1xf32>
    %715 = vector.broadcast %714 : vector<2x1xf32> to vector<2x24xf32>
    %716 = vector.broadcast %cst_242 : f32 to vector<2x24xf32>
    %717 = arith.select %713, %715, %716 : vector<2x24xi1>, vector<2x24xf32>
    %718 = arith.addf %706, %717 : vector<2x24xf32>
    %719 = vector.extract_strided_slice %639 {offsets = [0, 6], sizes = [2, 1], strides = [1, 1]} : vector<2x8xi32> to vector<2x1xi32>
    %c6_i32_243 = arith.constant 6 : i32
    %720 = vector.broadcast %c6_i32_243 : i32 to vector<2x1xi32>
    %721 = arith.cmpi sgt, %640, %720 : vector<2x1xi32>
    %cst_244 = arith.constant 0.000000e+00 : f32
    %722 = vector.broadcast %cst_244 : f32 to vector<2x1xf32>
    %723 = arith.select %721, %645, %722 : vector<2x1xi1>, vector<2x1xf32>
    %724 = vector.broadcast %719 : vector<2x1xi32> to vector<2x24xi32>
    %725 = arith.cmpi eq, %1, %724 : vector<2x24xi32>
    %cst_245 = arith.constant 0.000000e+00 : f32
    %726 = vector.shape_cast %723 : vector<2x1xf32> to vector<2x1xf32>
    %727 = vector.broadcast %726 : vector<2x1xf32> to vector<2x24xf32>
    %728 = vector.broadcast %cst_245 : f32 to vector<2x24xf32>
    %729 = arith.select %725, %727, %728 : vector<2x24xi1>, vector<2x24xf32>
    %730 = arith.addf %718, %729 : vector<2x24xf32>
    %731 = vector.extract_strided_slice %639 {offsets = [0, 7], sizes = [2, 1], strides = [1, 1]} : vector<2x8xi32> to vector<2x1xi32>
    %c7_i32_246 = arith.constant 7 : i32
    %732 = vector.broadcast %c7_i32_246 : i32 to vector<2x1xi32>
    %733 = arith.cmpi sgt, %640, %732 : vector<2x1xi32>
    %cst_247 = arith.constant 0.000000e+00 : f32
    %734 = vector.broadcast %cst_247 : f32 to vector<2x1xf32>
    %735 = arith.select %733, %645, %734 : vector<2x1xi1>, vector<2x1xf32>
    %736 = vector.broadcast %731 : vector<2x1xi32> to vector<2x24xi32>
    %737 = arith.cmpi eq, %1, %736 : vector<2x24xi32>
    %cst_248 = arith.constant 0.000000e+00 : f32
    %738 = vector.shape_cast %735 : vector<2x1xf32> to vector<2x1xf32>
    %739 = vector.broadcast %738 : vector<2x1xf32> to vector<2x24xf32>
    %740 = vector.broadcast %cst_248 : f32 to vector<2x24xf32>
    %741 = arith.select %737, %739, %740 : vector<2x24xi1>, vector<2x24xf32>
    %742 = arith.addf %730, %741 : vector<2x24xf32>
    %cst_249 = arith.constant dense<0.000000e+00> : vector<2x16xf32>
    %743 = tpu.matmul %742, %0, %cst_249 {dimension_numbers = #tpu.dot_dimension_numbers<[1], [0], [0], [1], [0, 0, 1, 1], [], []>} : vector<2x24xf32>, vector<24x16xf32>, vector<2x16xf32> -> vector<2x16xf32>
    %c4_250 = arith.constant 4 : index
    %c0_251 = arith.constant 0 : index
    %c0_252 = arith.constant 0 : index
    %744 = vector.load %arg6[%c4_250, %c0_251, %c0_252] : memref<5x16x128xf32, #tpu.memory_space<vmem>>, vector<1x16x128xf32>
    %745 = vector.shape_cast %744 : vector<1x16x128xf32> to vector<16x128xf32>
    %cst_253 = arith.constant dense<0.000000e+00> : vector<2x128xf32>
    %746 = tpu.matmul %106, %745, %cst_253 {dimension_numbers = #tpu.dot_dimension_numbers<[1], [0], [0], [1], [0, 0, 1, 1], [], []>} : vector<2x16xf32>, vector<16x128xf32>, vector<2x128xf32> -> vector<2x128xf32>
    %c4_254 = arith.constant 4 : index
    %c0_255 = arith.constant 0 : index
    %c0_256 = arith.constant 0 : index
    %747 = vector.load %arg7[%c4_254, %c0_255, %c0_256] : memref<5x16x128xf32, #tpu.memory_space<vmem>>, vector<1x16x128xf32>
    %748 = vector.shape_cast %747 : vector<1x16x128xf32> to vector<16x128xf32>
    %cst_257 = arith.constant dense<0.000000e+00> : vector<2x128xf32>
    %749 = tpu.matmul %743, %748, %cst_257 {dimension_numbers = #tpu.dot_dimension_numbers<[1], [0], [0], [1], [0, 0, 1, 1], [], []>} : vector<2x16xf32>, vector<16x128xf32>, vector<2x128xf32> -> vector<2x128xf32>
    %750 = arith.addf %746, %749 : vector<2x128xf32>
    %c4_258 = arith.constant 4 : index
    %c0_259 = arith.constant 0 : index
    %c0_260 = arith.constant 0 : index
    %751 = vector.load %arg8[%c4_258, %c0_259, %c0_260] : memref<5x1x128xf32, #tpu.memory_space<vmem>>, vector<1x1x128xf32>
    %752 = vector.shape_cast %751 : vector<1x1x128xf32> to vector<1x128xf32>
    %753 = vector.broadcast %752 : vector<1x128xf32> to vector<2x128xf32>
    %754 = arith.addf %750, %753 : vector<2x128xf32>
    %cst_261 = arith.constant 0.000000e+00 : f32
    %755 = vector.broadcast %cst_261 : f32 to vector<2x128xf32>
    %756 = arith.maximumf %754, %755 : vector<2x128xf32>
    %c4_262 = arith.constant 4 : index
    %c0_263 = arith.constant 0 : index
    %c0_264 = arith.constant 0 : index
    %757 = vector.load %arg9[%c4_262, %c0_263, %c0_264] : memref<5x1x128xf32, #tpu.memory_space<vmem>>, vector<1x1x128xf32>
    %758 = vector.shape_cast %757 : vector<1x1x128xf32> to vector<1x128xf32>
    %759 = vector.broadcast %758 : vector<1x128xf32> to vector<2x128xf32>
    %760 = arith.mulf %756, %759 : vector<2x128xf32>
    %cst_265 = arith.constant dense<0.000000e+00> : vector<2xf32>
    %761 = vector.multi_reduction <add>, %760, %cst_265 [1] : vector<2x128xf32> to vector<2xf32>
    %762 = vector.shape_cast %761 : vector<2xf32> to vector<2x1xf32>
    %c4_i32_266 = arith.constant 4 : i32
    %763 = vector.broadcast %c4_i32_266 : i32 to vector<2x5xi32>
    %764 = arith.cmpi eq, %108, %763 : vector<2x5xi32>
    %cst_267 = arith.constant 0.000000e+00 : f32
    %765 = vector.shape_cast %762 : vector<2x1xf32> to vector<2x1xf32>
    %766 = vector.broadcast %765 : vector<2x1xf32> to vector<2x5xf32>
    %767 = vector.broadcast %cst_267 : f32 to vector<2x5xf32>
    %768 = arith.select %764, %766, %767 : vector<2x5xi1>, vector<2x5xf32>
    %769 = arith.addf %637, %768 : vector<2x5xf32>
    %c0_268 = arith.constant 0 : index
    %c0_269 = arith.constant 0 : index
    %770 = vector.load %arg10[%c0_268, %c0_269] : memref<1x5xf32, #tpu.memory_space<vmem>>, vector<1x5xf32>
    %771 = vector.broadcast %770 : vector<1x5xf32> to vector<2x5xf32>
    %772 = arith.addf %769, %771 : vector<2x5xf32>
    %c0_270 = arith.constant 0 : index
    %c0_271 = arith.constant 0 : index
    %773 = vector.load %arg11[%c0_270, %c0_271] : memref<2x5xf32, #tpu.memory_space<vmem>>, vector<2x5xf32>
    tpu.vector_store %arg11[%c0_270, %c0_271], %772 {strides = array<i32>} : memref<2x5xf32, #tpu.memory_space<vmem>>, vector<2x5xf32>,
    return
  }
  func.func @transform_0(%arg0: i32) -> (i32, i32) {
    %c0_i32 = arith.constant 0 : i32
    %c0_i32_0 = arith.constant 0 : i32
    %c0_i32_1 = arith.constant 0 : i32
    return %c0_i32, %c0_i32_0 : i32, i32
  }
  func.func @transform_1(%arg0: i32) -> (i32, i32) {
    %c0_i32 = arith.constant 0 : i32
    %c0_i32_0 = arith.constant 0 : i32
    %c0_i32_1 = arith.constant 0 : i32
    return %c0_i32, %c0_i32_0 : i32, i32
  }
  func.func @transform_2(%arg0: i32) -> (i32, i32) {
    %c0_i32 = arith.constant 0 : i32
    %c0_i32_0 = arith.constant 0 : i32
    %c0_i32_1 = arith.constant 0 : i32
    return %c0_i32, %c0_i32_0 : i32, i32
  }
  func.func @transform_3(%arg0: i32) -> (i32, i32, i32) {
    %c0_i32 = arith.constant 0 : i32
    %c0_i32_0 = arith.constant 0 : i32
    %c0_i32_1 = arith.constant 0 : i32
    %c0_i32_2 = arith.constant 0 : i32
    return %c0_i32, %c0_i32_0, %c0_i32_1 : i32, i32, i32
  }
  func.func @transform_4(%arg0: i32) -> (i32, i32) {
    %c0_i32 = arith.constant 0 : i32
    %c0_i32_0 = arith.constant 0 : i32
    %c0_i32_1 = arith.constant 0 : i32
    return %c0_i32, %c0_i32_0 : i32, i32
  }
  func.func @transform_5(%arg0: i32) -> (i32, i32, i32) {
    %c0_i32 = arith.constant 0 : i32
    %c0_i32_0 = arith.constant 0 : i32
    %c0_i32_1 = arith.constant 0 : i32
    %c0_i32_2 = arith.constant 0 : i32
    return %c0_i32, %c0_i32_0, %c0_i32_1 : i32, i32, i32
  }
  func.func @transform_6(%arg0: i32) -> (i32, i32, i32) {
    %c0_i32 = arith.constant 0 : i32
    %c0_i32_0 = arith.constant 0 : i32
    %c0_i32_1 = arith.constant 0 : i32
    %c0_i32_2 = arith.constant 0 : i32
    return %c0_i32, %c0_i32_0, %c0_i32_1 : i32, i32, i32
  }
  func.func @transform_7(%arg0: i32) -> (i32, i32, i32) {
    %c0_i32 = arith.constant 0 : i32
    %c0_i32_0 = arith.constant 0 : i32
    %c0_i32_1 = arith.constant 0 : i32
    %c0_i32_2 = arith.constant 0 : i32
    return %c0_i32, %c0_i32_0, %c0_i32_1 : i32, i32, i32
  }
  func.func @transform_8(%arg0: i32) -> (i32, i32, i32) {
    %c0_i32 = arith.constant 0 : i32
    %c0_i32_0 = arith.constant 0 : i32
    %c0_i32_1 = arith.constant 0 : i32
    %c0_i32_2 = arith.constant 0 : i32
    return %c0_i32, %c0_i32_0, %c0_i32_1 : i32, i32, i32
  }
  func.func @transform_9(%arg0: i32) -> (i32, i32) {
    %c0_i32 = arith.constant 0 : i32
    %c0_i32_0 = arith.constant 0 : i32
    %c0_i32_1 = arith.constant 0 : i32
    return %c0_i32, %c0_i32_0 : i32, i32
  }
  func.func @transform_10(%arg0: i32) -> (i32, i32) {
    %c0_i32 = arith.constant 0 : i32
    %c0_i32_0 = arith.constant 0 : i32
    %c0_i32_1 = arith.constant 0 : i32
    return %c0_i32, %c0_i32_0 : i32, i32
  }
}

</mosaic_0001>

<llo_original>
// kernel: baseline_mlp_forward.1
$region0: #{baseline_mlp_forward.1}
  #allocation0 [shape = 'u32[]', space=smem, size = 0x4, offset = 0x4, fixed_abs, tag = 'smem constant byte address 0x4 - core index']
  #allocation1 [shape = 'u32[144,128]{1,0:T(1,128)}', space=vmem, size = 0x12000, scoped, tag = 'internal scratch']
  %s0 = inlined_call_operand.vmem [shape: f32[24,16], index: 0, kind: input, shape index: {}]
  %s1 = inlined_call_operand.vmem [shape: s32[2,8], index: 1, kind: input, shape index: {}]
  %s2 = inlined_call_operand.vmem [shape: s32[2,1], index: 2, kind: input, shape index: {}]
  %s3 = inlined_call_operand.vmem [shape: s32[5,2,8], index: 3, kind: input, shape index: {}]
  %s4 = inlined_call_operand.vmem [shape: s32[2,5], index: 4, kind: input, shape index: {}]
  %s5 = inlined_call_operand.vmem [shape: f32[5,16,128], index: 5, kind: input, shape index: {}]
  %s6 = inlined_call_operand.vmem [shape: f32[5,16,128], index: 6, kind: input, shape index: {}]
  %s7 = inlined_call_operand.vmem [shape: f32[5,1,128], index: 7, kind: input, shape index: {}]
  %s8 = inlined_call_operand.vmem [shape: f32[5,1,128], index: 8, kind: input, shape index: {}]
  %s9 = inlined_call_operand.vmem [shape: f32[1,5], index: 9, kind: input, shape index: {}]
  %s10 = inlined_call_operand.hbm [shape: f32[2,5], index: 10, kind: output, shape index: {}]
  %s11 = sld [smem:[#allocation0]]
  $region50: #{baseline_mlp_forward.1} parent=0
    _
  %s13 = ssub.s32 1, %s11
  %s14 = scalar_select 0, %s13, %s11
  $region1: #{baseline_mlp_forward.1} parent=0
    #allocation2 [shape = 'u8[1024]{0}', space=vmem, size = 0x400, scoped, tag = 'output window, operand 0, single buffered']
    #allocation3 [shape = 's32[1]{0}', space=sflag, size = 0x4, scoped, tag = 'scoped memory for baseline_mlp_forward.1']
    %15 = vsyncpa [#allocation3], 0
    // Predicated region
    $region2: #{baseline_mlp_forward.1} parent=1 // pred_check
      _
    $region3: #{baseline_mlp_forward.1} parent=1 // pred_check_branch
      %17 = sbr.rel (0) target = $region5
    $region4: #{baseline_mlp_forward.1} parent=1 // pred_region
      _
    $region5: #{baseline_mlp_forward.1} parent=1 // pred_fallthru
      _
    // Predicated region
    $region6: #{baseline_mlp_forward.1} parent=1 // pred_check
      _
    $region7: #{baseline_mlp_forward.1} parent=1 // pred_check_branch
      %19 = sbr.rel (0) target = $region9
    $region8: #{baseline_mlp_forward.1} parent=1 // pred_region
      _
    $region9: #{baseline_mlp_forward.1} parent=1 // pred_fallthru
      _
    // Predicated region
    $region10: #{baseline_mlp_forward.1} parent=1 // pred_check
      _
    $region11: #{baseline_mlp_forward.1} parent=1 // pred_check_branch
      %21 = sbr.rel (0) target = $region13
    $region12: #{baseline_mlp_forward.1} parent=1 // pred_region
      _
    $region13: #{baseline_mlp_forward.1} parent=1 // pred_fallthru
      _
    // Predicated region
    $region14: #{baseline_mlp_forward.1} parent=1 // pred_check
      _
    $region15: #{baseline_mlp_forward.1} parent=1 // pred_check_branch
      %23 = sbr.rel (0) target = $region17
    $region16: #{baseline_mlp_forward.1} parent=1 // pred_region
      _
    $region17: #{baseline_mlp_forward.1} parent=1 // pred_fallthru
      _
    // Predicated region
    $region18: #{baseline_mlp_forward.1} parent=1 // pred_check
      _
    $region19: #{baseline_mlp_forward.1} parent=1 // pred_check_branch
      %25 = sbr.rel (0) target = $region21
    $region20: #{baseline_mlp_forward.1} parent=1 // pred_region
      _
    $region21: #{baseline_mlp_forward.1} parent=1 // pred_fallthru
      _
    // Predicated region
    $region22: #{baseline_mlp_forward.1} parent=1 // pred_check
      _
    $region23: #{baseline_mlp_forward.1} parent=1 // pred_check_branch
      %27 = sbr.rel (0) target = $region25
    $region24: #{baseline_mlp_forward.1} parent=1 // pred_region
      _
    $region25: #{baseline_mlp_forward.1} parent=1 // pred_fallthru
      _
    // Predicated region
    $region26: #{baseline_mlp_forward.1} parent=1 // pred_check
      _
    $region27: #{baseline_mlp_forward.1} parent=1 // pred_check_branch
      %29 = sbr.rel (0) target = $region29
    $region28: #{baseline_mlp_forward.1} parent=1 // pred_region
      _
    $region29: #{baseline_mlp_forward.1} parent=1 // pred_fallthru
      _
    // Predicated region
    $region30: #{baseline_mlp_forward.1} parent=1 // pred_check
      _
    $region31: #{baseline_mlp_forward.1} parent=1 // pred_check_branch
      %31 = sbr.rel (0) target = $region33
    $region32: #{baseline_mlp_forward.1} parent=1 // pred_region
      _
    $region33: #{baseline_mlp_forward.1} parent=1 // pred_fallthru
      _
    // Predicated region
    $region34: #{baseline_mlp_forward.1} parent=1 // pred_check
      _
    $region35: #{baseline_mlp_forward.1} parent=1 // pred_check_branch
      %33 = sbr.rel (0) target = $region37
    $region36: #{baseline_mlp_forward.1} parent=1 // pred_region
      _
    $region37: #{baseline_mlp_forward.1} parent=1 // pred_fallthru
      _
    // Predicated region
    $region38: #{baseline_mlp_forward.1} parent=1 // pred_check
      _
    $region39: #{baseline_mlp_forward.1} parent=1 // pred_check_branch
      %35 = sbr.rel (0) target = $region41
    $region40: #{baseline_mlp_forward.1} parent=1 // pred_region
      _
    $region41: #{baseline_mlp_forward.1} parent=1 // pred_fallthru
      _
    %v36 = vld [vmem:[%s0] sm:$0xff]
    %v37 = vld [vmem:[%s0 + $0x8] sm:$0xff]
    %v38 = vld [vmem:[%s0 + $0x10] sm:$0xff]
    %v39 = vlaneseq
    %v40 = vand.u32 %v39, 127
    %v41 = vld [vmem:[%s1] sm:$0x3]
    %v42 = vld [vmem:[%s2] sm:$0x3]
    %v43 = vcvt.s32.f32 %v42
    %v44 = vmax.f32 %v43, 1.0
    %v45 = vrcp.pop %v44
    %v46 = vmul.f32 1.0, %v45
    %vm47 = vcmp.gt.s32.totalorder %v42, 0
    %v48 = vsel %vm47, %v46, 0.0
    %49 = vset.pattern.permute.xlu0 0
    %50 = vperm.xlu0 %49, %v41
    %v51 = vpop.permute.xlu0 %50
    %vm52 = vcmp.eq.s32.totalorder %v40, %v51
    %54 = vset.pattern.permute.xlu0 0
    %55 = vperm.xlu0 %54, %v48
    %v56 = vpop.permute.xlu0 %55
    %v58 = vsel %vm52, %v56, 0.0
    %v59 = vadd.f32 %v58, 0.0
    %vm60 = vcmp.gt.s32.totalorder %v42, 1
    %v61 = vsel %vm60, %v46, 0.0
    %62 = vset.pattern.permute.xlu0 1
    %63 = vperm.xlu0 %62, %v41
    %v64 = vpop.permute.xlu0 %63
    %vm65 = vcmp.eq.s32.totalorder %v40, %v64
    %67 = vset.pattern.permute.xlu0 0
    %68 = vperm.xlu0 %67, %v61
    %v69 = vpop.permute.xlu0 %68
    %v71 = vsel %vm65, %v69, 0.0
    %v72 = vadd.f32 %v59, %v71
    %vm73 = vcmp.gt.s32.totalorder %v42, 2
    %v74 = vsel %vm73, %v46, 0.0
    %75 = vset.pattern.permute.xlu0 2
    %76 = vperm.xlu0 %75, %v41
    %v77 = vpop.permute.xlu0 %76
    %vm78 = vcmp.eq.s32.totalorder %v40, %v77
    %80 = vset.pattern.permute.xlu0 0
    %81 = vperm.xlu0 %80, %v74
    %v82 = vpop.permute.xlu0 %81
    %v84 = vsel %vm78, %v82, 0.0
    %v85 = vadd.f32 %v72, %v84
    %vm86 = vcmp.gt.s32.totalorder %v42, 3
    %v87 = vsel %vm86, %v46, 0.0
    %88 = vset.pattern.permute.xlu0 3
    %89 = vperm.xlu0 %88, %v41
    %v90 = vpop.permute.xlu0 %89
    %vm91 = vcmp.eq.s32.totalorder %v40, %v90
    %93 = vset.pattern.permute.xlu0 0
    %94 = vperm.xlu0 %93, %v87
    %v95 = vpop.permute.xlu0 %94
    %v97 = vsel %vm91, %v95, 0.0
    %v98 = vadd.f32 %v85, %v97
    %vm99 = vcmp.gt.s32.totalorder %v42, 4
    %v100 = vsel %vm99, %v46, 0.0
    %101 = vset.pattern.permute.xlu0 4
    %102 = vperm.xlu0 %101, %v41
    %v103 = vpop.permute.xlu0 %102
    %vm104 = vcmp.eq.s32.totalorder %v40, %v103
    %106 = vset.pattern.permute.xlu0 0
    %107 = vperm.xlu0 %106, %v100
    %v108 = vpop.permute.xlu0 %107
    %v110 = vsel %vm104, %v108, 0.0
    %v111 = vadd.f32 %v98, %v110
    %vm112 = vcmp.gt.s32.totalorder %v42, 5
    %v113 = vsel %vm112, %v46, 0.0
    %114 = vset.pattern.permute.xlu0 5
    %115 = vperm.xlu0 %114, %v41
    %v116 = vpop.permute.xlu0 %115
    %vm117 = vcmp.eq.s32.totalorder %v40, %v116
    %119 = vset.pattern.permute.xlu0 0
    %120 = vperm.xlu0 %119, %v113
    %v121 = vpop.permute.xlu0 %120
    %v123 = vsel %vm117, %v121, 0.0
    %v124 = vadd.f32 %v111, %v123
    %vm125 = vcmp.gt.s32.totalorder %v42, 6
    %v126 = vsel %vm125, %v46, 0.0
    %127 = vset.pattern.permute.xlu0 6
    %128 = vperm.xlu0 %127, %v41
    %v129 = vpop.permute.xlu0 %128
    %vm130 = vcmp.eq.s32.totalorder %v40, %v129
    %132 = vset.pattern.permute.xlu0 0
    %133 = vperm.xlu0 %132, %v126
    %v134 = vpop.permute.xlu0 %133
    %v136 = vsel %vm130, %v134, 0.0
    %v137 = vadd.f32 %v124, %v136
    %vm138 = vcmp.gt.s32.totalorder %v42, 7
    %v139 = vsel %vm138, %v46, 0.0
    %140 = vset.pattern.permute.xlu0 7
    %141 = vperm.xlu0 %140, %v41
    %v142 = vpop.permute.xlu0 %141
    %vm143 = vcmp.eq.s32.totalorder %v40, %v142
    %145 = vset.pattern.permute.xlu0 0
    %146 = vperm.xlu0 %145, %v139
    %v147 = vpop.permute.xlu0 %146
    %v149 = vsel %vm143, %v147, 0.0
    %v150 = vadd.f32 %v137, %v149
    %vm151 = vcmask 195584
    %v153 = vsel %vm151, %v150, 0
    %155 = vmatprep.subr.mxu0 0.0
    %156 = vmatpush1.msra.mxu0 0.0
    %157 = vmatprep.subr.mxu0 0.0
    %158 = vmatpush1.msra.mxu0 0.0
    %159 = vmatprep.subr.mxu0 0.0
    %160 = vmatpush1.msra.mxu0 0.0
    %161 = vmatprep.subr.mxu0 0.0
    %162 = vmatpush1.msra.mxu0 0.0
    %163 = vmatprep.subr.mxu0 0.0
    %164 = vmatpush1.msra.mxu0 0.0
    %165 = vmatprep.subr.mxu0 0.0
    %166 = vmatpush1.msra.mxu0 0.0
    %167 = vmatprep.subr.mxu0 0.0
    %168 = vmatpush1.msra.mxu0 0.0
    %169 = vmatprep.subr.mxu0 0.0
    %170 = vmatpush1.msra.mxu0 0.0
    %171 = vmatprep.subr.mxu0 0.0
    %172 = vmatpush1.msra.mxu0 0.0
    %173 = vmatprep.subr.mxu0 0.0
    %174 = vmatpush1.msra.mxu0 0.0
    %175 = vmatprep.subr.mxu0 0.0
    %176 = vmatpush1.msra.mxu0 0.0
    %177 = vmatprep.subr.mxu0 0.0
    %178 = vmatpush1.msra.mxu0 0.0
    %179 = vmatprep.subr.mxu0 0.0
    %180 = vmatpush1.msra.mxu0 0.0
    %181 = vmatprep.subr.mxu0 0.0
    %182 = vmatpush1.msra.mxu0 %v38
    %183 = vmatprep.subr.mxu0 0.0
    %184 = vmatpush1.msra.mxu0 %v37
    %185 = vmatprep.subr.mxu0 0.0
    %186 = vmatpush1.msra.mxu0 %v36
    %187 = vmatprep.subr.mxu0 0.0
    %188 = vmatpush2.msra.mxu0 0.0
    %189 = vmatprep.subr.mxu0 0.0
    %190 = vmatpush2.msra.mxu0 0.0
    %191 = vmatprep.subr.mxu0 0.0
    %192 = vmatpush2.msra.mxu0 0.0
    %193 = vmatprep.subr.mxu0 0.0
    %194 = vmatpush2.msra.mxu0 0.0
    %195 = vmatprep.subr.mxu0 0.0
    %196 = vmatpush2.msra.mxu0 0.0
    %197 = vmatprep.subr.mxu0 0.0
    %198 = vmatpush2.msra.mxu0 0.0
    %199 = vmatprep.subr.mxu0 0.0
    %200 = vmatpush2.msra.mxu0 0.0
    %201 = vmatprep.subr.mxu0 0.0
    %202 = vmatpush2.msra.mxu0 0.0
    %203 = vmatprep.subr.mxu0 0.0
    %204 = vmatpush2.msra.mxu0 0.0
    %205 = vmatprep.subr.mxu0 0.0
    %206 = vmatpush2.msra.mxu0 0.0
    %207 = vmatprep.subr.mxu0 0.0
    %208 = vmatpush2.msra.mxu0 0.0
    %209 = vmatprep.subr.mxu0 0.0
    %210 = vmatpush2.msra.mxu0 0.0
    %211 = vmatprep.subr.mxu0 0.0
    %212 = vmatpush2.msra.mxu0 0.0
    %213 = vmatprep.subr.mxu0 0.0
    %214 = vmatpush2.msra.mxu0 0.0
    %215 = vmatprep.subr.mxu0 0.0
    %216 = vmatpush2.msra.mxu0 0.0
    %217 = vmatprep.subr.mxu0 0.0
    %218 = vmatpush2.msra.mxu0 0.0
    %219 = vmatprep.mubr.f32.mxu0 0.0
    %220 = vmatmul.mubr.f32.gmra.mxu0 %v153
    %v221 = vpop.f32.mrf.mxu0
    %v222 = vadd.f32 0.0, %v221
    %v223 = vpop.f32.mrf.mxu0
    %224 = vdwg.mxu0
    %v225 = vld [vmem:[%s4] sm:$0x3]
    %v226 = vld [vmem:[%s3] sm:$0x3]
    %v227 = vcvt.s32.f32 %v225
    %v228 = vmax.f32 %v227, 1.0
    %v229 = vrcp.pop %v228
    %v230 = vmul.f32 1.0, %v229
    %vm231 = vcmp.gt.s32.totalorder %v225, 0
    %v232 = vsel %vm231, %v230, 0.0
    %233 = vset.pattern.permute.xlu0 0
    %234 = vperm.xlu0 %233, %v226
    %v235 = vpop.permute.xlu0 %234
    %vm236 = vcmp.eq.s32.totalorder %v40, %v235
    %238 = vset.pattern.permute.xlu0 0
    %239 = vperm.xlu0 %238, %v232
    %v240 = vpop.permute.xlu0 %239
    %v242 = vsel %vm236, %v240, 0.0
    %v243 = vadd.f32 %v242, 0.0
    %vm244 = vcmp.gt.s32.totalorder %v225, 1
    %v245 = vsel %vm244, %v230, 0.0
    %246 = vset.pattern.permute.xlu0 1
    %247 = vperm.xlu0 %246, %v226
    %v248 = vpop.permute.xlu0 %247
    %vm249 = vcmp.eq.s32.totalorder %v40, %v248
    %251 = vset.pattern.permute.xlu0 0
    %252 = vperm.xlu0 %251, %v245
    %v253 = vpop.permute.xlu0 %252
    %v255 = vsel %vm249, %v253, 0.0
    %v256 = vadd.f32 %v243, %v255
    %vm257 = vcmp.gt.s32.totalorder %v225, 2
    %v258 = vsel %vm257, %v230, 0.0
    %259 = vset.pattern.permute.xlu0 2
    %260 = vperm.xlu0 %259, %v226
    %v261 = vpop.permute.xlu0 %260
    %vm262 = vcmp.eq.s32.totalorder %v40, %v261
    %264 = vset.pattern.permute.xlu0 0
    %265 = vperm.xlu0 %264, %v258
    %v266 = vpop.permute.xlu0 %265
    %v268 = vsel %vm262, %v266, 0.0
    %v269 = vadd.f32 %v256, %v268
    %vm270 = vcmp.gt.s32.totalorder %v225, 3
    %v271 = vsel %vm270, %v230, 0.0
    %272 = vset.pattern.permute.xlu0 3
    %273 = vperm.xlu0 %272, %v226
    %v274 = vpop.permute.xlu0 %273
    %vm275 = vcmp.eq.s32.totalorder %v40, %v274
    %277 = vset.pattern.permute.xlu0 0
    %278 = vperm.xlu0 %277, %v271
    %v279 = vpop.permute.xlu0 %278
    %v281 = vsel %vm275, %v279, 0.0
    %v282 = vadd.f32 %v269, %v281
    %vm283 = vcmp.gt.s32.totalorder %v225, 4
    %v284 = vsel %vm283, %v230, 0.0
    %285 = vset.pattern.permute.xlu0 4
    %286 = vperm.xlu0 %285, %v226
    %v287 = vpop.permute.xlu0 %286
    %vm288 = vcmp.eq.s32.totalorder %v40, %v287
    %290 = vset.pattern.permute.xlu0 0
    %291 = vperm.xlu0 %290, %v284
    %v292 = vpop.permute.xlu0 %291
    %v294 = vsel %vm288, %v292, 0.0
    %v295 = vadd.f32 %v282, %v294
    %vm296 = vcmp.gt.s32.totalorder %v225, 5
    %v297 = vsel %vm296, %v230, 0.0
    %298 = vset.pattern.permute.xlu0 5
    %299 = vperm.xlu0 %298, %v226
    %v300 = vpop.permute.xlu0 %299
    %vm301 = vcmp.eq.s32.totalorder %v40, %v300
    %303 = vset.pattern.permute.xlu0 0
    %304 = vperm.xlu0 %303, %v297
    %v305 = vpop.permute.xlu0 %304
    %v307 = vsel %vm301, %v305, 0.0
    %v308 = vadd.f32 %v295, %v307
    %vm309 = vcmp.gt.s32.totalorder %v225, 6
    %v310 = vsel %vm309, %v230, 0.0
    %311 = vset.pattern.permute.xlu0 6
    %312 = vperm.xlu0 %311, %v226
    %v313 = vpop.permute.xlu0 %312
    %vm314 = vcmp.eq.s32.totalorder %v40, %v313
    %316 = vset.pattern.permute.xlu0 0
    %317 = vperm.xlu0 %316, %v310
    %v318 = vpop.permute.xlu0 %317
    %v320 = vsel %vm314, %v318, 0.0
    %v321 = vadd.f32 %v308, %v320
    %vm322 = vcmp.gt.s32.totalorder %v225, 7
    %v323 = vsel %vm322, %v230, 0.0
    %324 = vset.pattern.permute.xlu0 7
    %325 = vperm.xlu0 %324, %v226
    %v326 = vpop.permute.xlu0 %325
    %vm327 = vcmp.eq.s32.totalorder %v40, %v326
    %329 = vset.pattern.permute.xlu0 0
    %330 = vperm.xlu0 %329, %v323
    %v331 = vpop.permute.xlu0 %330
    %v333 = vsel %vm327, %v331, 0.0
    %v334 = vadd.f32 %v321, %v333
    %v336 = vsel %vm151, %v334, 0
    %338 = vmatprep.subr.mxu0 0.0
    %339 = vmatpush1.msra.mxu0 0.0
    %340 = vmatprep.subr.mxu0 0.0
    %341 = vmatpush1.msra.mxu0 0.0
    %342 = vmatprep.subr.mxu0 0.0
    %343 = vmatpush1.msra.mxu0 0.0
    %344 = vmatprep.subr.mxu0 0.0
    %345 = vmatpush1.msra.mxu0 0.0
    %346 = vmatprep.subr.mxu0 0.0
    %347 = vmatpush1.msra.mxu0 0.0
    %348 = vmatprep.subr.mxu0 0.0
    %349 = vmatpush1.msra.mxu0 0.0
    %350 = vmatprep.subr.mxu0 0.0
    %351 = vmatpush1.msra.mxu0 0.0
    %352 = vmatprep.subr.mxu0 0.0
    %353 = vmatpush1.msra.mxu0 0.0
    %354 = vmatprep.subr.mxu0 0.0
    %355 = vmatpush1.msra.mxu0 0.0
    %356 = vmatprep.subr.mxu0 0.0
    %357 = vmatpush1.msra.mxu0 0.0
    %358 = vmatprep.subr.mxu0 0.0
    %359 = vmatpush1.msra.mxu0 0.0
    %360 = vmatprep.subr.mxu0 0.0
    %361 = vmatpush1.msra.mxu0 0.0
    %362 = vmatprep.subr.mxu0 0.0
    %363 = vmatpush1.msra.mxu0 0.0
    %364 = vmatprep.subr.mxu0 0.0
    %365 = vmatpush1.msra.mxu0 %v38
    %366 = vmatprep.subr.mxu0 0.0
    %367 = vmatpush1.msra.mxu0 %v37
    %368 = vmatprep.subr.mxu0 0.0
    %369 = vmatpush1.msra.mxu0 %v36
    %370 = vmatprep.subr.mxu0 0.0
    %371 = vmatpush2.msra.mxu0 0.0
    %372 = vmatprep.subr.mxu0 0.0
    %373 = vmatpush2.msra.mxu0 0.0
    %374 = vmatprep.subr.mxu0 0.0
    %375 = vmatpush2.msra.mxu0 0.0
    %376 = vmatprep.subr.mxu0 0.0
    %377 = vmatpush2.msra.mxu0 0.0
    %378 = vmatprep.subr.mxu0 0.0
    %379 = vmatpush2.msra.mxu0 0.0
    %380 = vmatprep.subr.mxu0 0.0
    %381 = vmatpush2.msra.mxu0 0.0
    %382 = vmatprep.subr.mxu0 0.0
    %383 = vmatpush2.msra.mxu0 0.0
    %384 = vmatprep.subr.mxu0 0.0
    %385 = vmatpush2.msra.mxu0 0.0
    %386 = vmatprep.subr.mxu0 0.0
    %387 = vmatpush2.msra.mxu0 0.0
    %388 = vmatprep.subr.mxu0 0.0
    %389 = vmatpush2.msra.mxu0 0.0
    %390 = vmatprep.subr.mxu0 0.0
    %391 = vmatpush2.msra.mxu0 0.0
    %392 = vmatprep.subr.mxu0 0.0
    %393 = vmatpush2.msra.mxu0 0.0
    %394 = vmatprep.subr.mxu0 0.0
    %395 = vmatpush2.msra.mxu0 0.0
    %396 = vmatprep.subr.mxu0 0.0
    %397 = vmatpush2.msra.mxu0 0.0
    %398 = vmatprep.subr.mxu0 0.0
    %399 = vmatpush2.msra.mxu0 0.0
    %400 = vmatprep.subr.mxu0 0.0
    %401 = vmatpush2.msra.mxu0 0.0
    %402 = vmatprep.mubr.f32.mxu0 0.0
    %403 = vmatmul.mubr.f32.gmra.mxu0 %v336
    %v404 = vpop.f32.mrf.mxu0
    %v405 = vadd.f32 0.0, %v404
    %v406 = vpop.f32.mrf.mxu0
    %407 = vdwg.mxu0
    %v408 = vld [vmem:[%s5] sm:$0xff]
    %v409 = vld [vmem:[%s5 + $0x8] sm:$0xff]
    %v410 = vld [vmem:[%s6] sm:$0xff]
    %v411 = vld [vmem:[%s6 + $0x8] sm:$0xff]
    %vm412 = vcmask 130048
    %v414 = vsel %vm412, %v405, 0
    %416 = vmatprep.subr.mxu0 0.0
    %417 = vmatpush1.msra.mxu0 0.0
    %418 = vmatprep.subr.mxu0 0.0
    %419 = vmatpush1.msra.mxu0 0.0
    %420 = vmatprep.subr.mxu0 0.0
    %421 = vmatpush1.msra.mxu0 0.0
    %422 = vmatprep.subr.mxu0 0.0
    %423 = vmatpush1.msra.mxu0 0.0
    %424 = vmatprep.subr.mxu0 0.0
    %425 = vmatpush1.msra.mxu0 0.0
    %426 = vmatprep.subr.mxu0 0.0
    %427 = vmatpush1.msra.mxu0 0.0
    %428 = vmatprep.subr.mxu0 0.0
    %429 = vmatpush1.msra.mxu0 0.0
    %430 = vmatprep.subr.mxu0 0.0
    %431 = vmatpush1.msra.mxu0 0.0
    %432 = vmatprep.subr.mxu0 0.0
    %433 = vmatpush1.msra.mxu0 0.0
    %434 = vmatprep.subr.mxu0 0.0
    %435 = vmatpush1.msra.mxu0 0.0
    %436 = vmatprep.subr.mxu0 0.0
    %437 = vmatpush1.msra.mxu0 0.0
    %438 = vmatprep.subr.mxu0 0.0
    %439 = vmatpush1.msra.mxu0 0.0
    %440 = vmatprep.subr.mxu0 0.0
    %441 = vmatpush1.msra.mxu0 0.0
    %442 = vmatprep.subr.mxu0 0.0
    %443 = vmatpush1.msra.mxu0 0.0
    %444 = vmatprep.subr.mxu0 0.0
    %445 = vmatpush1.msra.mxu0 %v411
    %446 = vmatprep.subr.mxu0 0.0
    %447 = vmatpush1.msra.mxu0 %v410
    %448 = vmatprep.subr.mxu0 0.0
    %449 = vmatpush2.msra.mxu0 0.0
    %450 = vmatprep.subr.mxu0 0.0
    %451 = vmatpush2.msra.mxu0 0.0
    %452 = vmatprep.subr.mxu0 0.0
    %453 = vmatpush2.msra.mxu0 0.0
    %454 = vmatprep.subr.mxu0 0.0
    %455 = vmatpush2.msra.mxu0 0.0
    %456 = vmatprep.subr.mxu0 0.0
    %457 = vmatpush2.msra.mxu0 0.0
    %458 = vmatprep.subr.mxu0 0.0
    %459 = vmatpush2.msra.mxu0 0.0
    %460 = vmatprep.subr.mxu0 0.0
    %461 = vmatpush2.msra.mxu0 0.0
    %462 = vmatprep.subr.mxu0 0.0
    %463 = vmatpush2.msra.mxu0 0.0
    %464 = vmatprep.subr.mxu0 0.0
    %465 = vmatpush2.msra.mxu0 0.0
    %466 = vmatprep.subr.mxu0 0.0
    %467 = vmatpush2.msra.mxu0 0.0
    %468 = vmatprep.subr.mxu0 0.0
    %469 = vmatpush2.msra.mxu0 0.0
    %470 = vmatprep.subr.mxu0 0.0
    %471 = vmatpush2.msra.mxu0 0.0
    %472 = vmatprep.subr.mxu0 0.0
    %473 = vmatpush2.msra.mxu0 0.0
    %474 = vmatprep.subr.mxu0 0.0
    %475 = vmatpush2.msra.mxu0 0.0
    %476 = vmatprep.subr.mxu0 0.0
    %477 = vmatpush2.msra.mxu0 0.0
    %478 = vmatprep.subr.mxu0 0.0
    %479 = vmatpush2.msra.mxu0 0.0
    %480 = vmatprep.mubr.f32.mxu0 0.0
    %481 = vmatmul.mubr.f32.gmra.mxu0 %v414
    %v482 = vpop.f32.mrf.mxu0
    %v483 = vadd.f32 0.0, %v482
    %v484 = vpop.f32.mrf.mxu0
    %485 = vdwg.mxu0
    %v487 = vsel %vm412, %v222, 0
    %489 = vmatprep.subr.mxu0 0.0
    %490 = vmatpush1.msra.mxu0 0.0
    %491 = vmatprep.subr.mxu0 0.0
    %492 = vmatpush1.msra.mxu0 0.0
    %493 = vmatprep.subr.mxu0 0.0
    %494 = vmatpush1.msra.mxu0 0.0
    %495 = vmatprep.subr.mxu0 0.0
    %496 = vmatpush1.msra.mxu0 0.0
    %497 = vmatprep.subr.mxu0 0.0
    %498 = vmatpush1.msra.mxu0 0.0
    %499 = vmatprep.subr.mxu0 0.0
    %500 = vmatpush1.msra.mxu0 0.0
    %501 = vmatprep.subr.mxu0 0.0
    %502 = vmatpush1.msra.mxu0 0.0
    %503 = vmatprep.subr.mxu0 0.0
    %504 = vmatpush1.msra.mxu0 0.0
    %505 = vmatprep.subr.mxu0 0.0
    %506 = vmatpush1.msra.mxu0 0.0
    %507 = vmatprep.subr.mxu0 0.0
    %508 = vmatpush1.msra.mxu0 0.0
    %509 = vmatprep.subr.mxu0 0.0
    %510 = vmatpush1.msra.mxu0 0.0
    %511 = vmatprep.subr.mxu0 0.0
    %512 = vmatpush1.msra.mxu0 0.0
    %513 = vmatprep.subr.mxu0 0.0
    %514 = vmatpush1.msra.mxu0 0.0
    %515 = vmatprep.subr.mxu0 0.0
    %516 = vmatpush1.msra.mxu0 0.0
    %517 = vmatprep.subr.mxu0 0.0
    %518 = vmatpush1.msra.mxu0 %v409
    %519 = vmatprep.subr.mxu0 0.0
    %520 = vmatpush1.msra.mxu0 %v408
    %521 = vmatprep.subr.mxu0 0.0
    %522 = vmatpush2.msra.mxu0 0.0
    %523 = vmatprep.subr.mxu0 0.0
    %524 = vmatpush2.msra.mxu0 0.0
    %525 = vmatprep.subr.mxu0 0.0
    %526 = vmatpush2.msra.mxu0 0.0
    %527 = vmatprep.subr.mxu0 0.0
    %528 = vmatpush2.msra.mxu0 0.0
    %529 = vmatprep.subr.mxu0 0.0
    %530 = vmatpush2.msra.mxu0 0.0
    %531 = vmatprep.subr.mxu0 0.0
    %532 = vmatpush2.msra.mxu0 0.0
    %533 = vmatprep.subr.mxu0 0.0
    %534 = vmatpush2.msra.mxu0 0.0
    %535 = vmatprep.subr.mxu0 0.0
    %536 = vmatpush2.msra.mxu0 0.0
    %537 = vmatprep.subr.mxu0 0.0
    %538 = vmatpush2.msra.mxu0 0.0
    %539 = vmatprep.subr.mxu0 0.0
    %540 = vmatpush2.msra.mxu0 0.0
    %541 = vmatprep.subr.mxu0 0.0
    %542 = vmatpush2.msra.mxu0 0.0
    %543 = vmatprep.subr.mxu0 0.0
    %544 = vmatpush2.msra.mxu0 0.0
    %545 = vmatprep.subr.mxu0 0.0
    %546 = vmatpush2.msra.mxu0 0.0
    %547 = vmatprep.subr.mxu0 0.0
    %548 = vmatpush2.msra.mxu0 0.0
    %549 = vmatprep.subr.mxu0 0.0
    %550 = vmatpush2.msra.mxu0 0.0
    %551 = vmatprep.subr.mxu0 0.0
    %552 = vmatpush2.msra.mxu0 0.0
    %553 = vmatprep.mubr.f32.mxu0 0.0
    %554 = vmatmul.mubr.f32.gmra.mxu0 %v487
    %v555 = vpop.f32.mrf.mxu0
    %v556 = vadd.f32 %v483, %v555
    %v557 = vpop.f32.mrf.mxu0
    %558 = vdwg.mxu0
    %v559 = vld [vmem:[%s7] sm:$0x1]
    %v561 = vlaneseq
    %v562 = vshrl.u32 %v561, 7
    %v563 = vsub.s32 0, %v562
    %v564 = vrot.slane %v559, %v563
    %v566 = vadd.f32 %v556, %v564
    %v567 = vmax.f32 %v566, 0.0
    %v568 = vld [vmem:[%s8] sm:$0x1]
    %v570 = vlaneseq
    %v571 = vshrl.u32 %v570, 7
    %v572 = vsub.s32 0, %v571
    %v573 = vrot.slane %v568, %v572
    %v575 = vmul.f32 %v567, %v573
    %vm576 = vcmask 1041408
    %v577 = vsel %vm576, %v575, 0.0
    %578 = vadd.xlane.f32.xlu0 %v577
    %v579 = vpop.xlane.xlu0 %578
    %vm580 = vcmp.eq.s32.totalorder %v40, 0
    %v581 = vsel %vm580, %v579, 0.0
    %v582 = vadd.f32 %v581, 0.0
    %s583 = scalar_lea.vmem %s3, 2
    %v584 = vld [vmem:[%s583] sm:$0x3]
    %585 = vset.pattern.permute.xlu0 0
    %586 = vperm.xlu0 %585, %v584
    %v587 = vpop.permute.xlu0 %586
    %vm588 = vcmp.eq.s32.totalorder %v40, %v587
    %589 = vset.pattern.permute.xlu0 1
    %590 = vperm.xlu0 %589, %v232
    %v591 = vpop.permute.xlu0 %590
    %v593 = vsel %vm588, %v591, 0.0
    %v594 = vadd.f32 %v593, 0.0
    %595 = vset.pattern.permute.xlu0 1
    %596 = vperm.xlu0 %595, %v584
    %v597 = vpop.permute.xlu0 %596
    %vm598 = vcmp.eq.s32.totalorder %v40, %v597
    %599 = vset.pattern.permute.xlu0 1
    %600 = vperm.xlu0 %599, %v245
    %v601 = vpop.permute.xlu0 %600
    %v603 = vsel %vm598, %v601, 0.0
    %v604 = vadd.f32 %v594, %v603
    %605 = vset.pattern.permute.xlu0 2
    %606 = vperm.xlu0 %605, %v584
    %v607 = vpop.permute.xlu0 %606
    %vm608 = vcmp.eq.s32.totalorder %v40, %v607
    %609 = vset.pattern.permute.xlu0 1
    %610 = vperm.xlu0 %609, %v258
    %v611 = vpop.permute.xlu0 %610
    %v613 = vsel %vm608, %v611, 0.0
    %v614 = vadd.f32 %v604, %v613
    %615 = vset.pattern.permute.xlu0 3
    %616 = vperm.xlu0 %615, %v584
    %v617 = vpop.permute.xlu0 %616
    %vm618 = vcmp.eq.s32.totalorder %v40, %v617
    %619 = vset.pattern.permute.xlu0 1
    %620 = vperm.xlu0 %619, %v271
    %v621 = vpop.permute.xlu0 %620
    %v623 = vsel %vm618, %v621, 0.0
    %v624 = vadd.f32 %v614, %v623
    %625 = vset.pattern.permute.xlu0 4
    %626 = vperm.xlu0 %625, %v584
    %v627 = vpop.permute.xlu0 %626
    %vm628 = vcmp.eq.s32.totalorder %v40, %v627
    %629 = vset.pattern.permute.xlu0 1
    %630 = vperm.xlu0 %629, %v284
    %v631 = vpop.permute.xlu0 %630
    %v633 = vsel %vm628, %v631, 0.0
    %v634 = vadd.f32 %v624, %v633
    %635 = vset.pattern.permute.xlu0 5
    %636 = vperm.xlu0 %635, %v584
    %v637 = vpop.permute.xlu0 %636
    %vm638 = vcmp.eq.s32.totalorder %v40, %v637
    %639 = vset.pattern.permute.xlu0 1
    %640 = vperm.xlu0 %639, %v297
    %v641 = vpop.permute.xlu0 %640
    %v643 = vsel %vm638, %v641, 0.0
    %v644 = vadd.f32 %v634, %v643
    %645 = vset.pattern.permute.xlu0 6
    %646 = vperm.xlu0 %645, %v584
    %v647 = vpop.permute.xlu0 %646
    %vm648 = vcmp.eq.s32.totalorder %v40, %v647
    %649 = vset.pattern.permute.xlu0 1
    %650 = vperm.xlu0 %649, %v310
    %v651 = vpop.permute.xlu0 %650
    %v653 = vsel %vm648, %v651, 0.0
    %v654 = vadd.f32 %v644, %v653
    %655 = vset.pattern.permute.xlu0 7
    %656 = vperm.xlu0 %655, %v584
    %v657 = vpop.permute.xlu0 %656
    %vm658 = vcmp.eq.s32.totalorder %v40, %v657
    %659 = vset.pattern.permute.xlu0 1
    %660 = vperm.xlu0 %659, %v323
    %v661 = vpop.permute.xlu0 %660
    %v663 = vsel %vm658, %v661, 0.0
    %v664 = vadd.f32 %v654, %v663
    %v666 = vsel %vm151, %v664, 0
    %668 = vmatprep.subr.mxu0 0.0
    %669 = vmatpush1.msra.mxu0 0.0
    %670 = vmatprep.subr.mxu0 0.0
    %671 = vmatpush1.msra.mxu0 0.0
    %672 = vmatprep.subr.mxu0 0.0
    %673 = vmatpush1.msra.mxu0 0.0
    %674 = vmatprep.subr.mxu0 0.0
    %675 = vmatpush1.msra.mxu0 0.0
    %676 = vmatprep.subr.mxu0 0.0
    %677 = vmatpush1.msra.mxu0 0.0
    %678 = vmatprep.subr.mxu0 0.0
    %679 = vmatpush1.msra.mxu0 0.0
    %680 = vmatprep.subr.mxu0 0.0
    %681 = vmatpush1.msra.mxu0 0.0
    %682 = vmatprep.subr.mxu0 0.0
    %683 = vmatpush1.msra.mxu0 0.0
    %684 = vmatprep.subr.mxu0 0.0
    %685 = vmatpush1.msra.mxu0 0.0
    %686 = vmatprep.subr.mxu0 0.0
    %687 = vmatpush1.msra.mxu0 0.0
    %688 = vmatprep.subr.mxu0 0.0
    %689 = vmatpush1.msra.mxu0 0.0
    %690 = vmatprep.subr.mxu0 0.0
    %691 = vmatpush1.msra.mxu0 0.0
    %692 = vmatprep.subr.mxu0 0.0
    %693 = vmatpush1.msra.mxu0 0.0
    %694 = vmatprep.subr.mxu0 0.0
    %695 = vmatpush1.msra.mxu0 %v38
    %696 = vmatprep.subr.mxu0 0.0
    %697 = vmatpush1.msra.mxu0 %v37
    %698 = vmatprep.subr.mxu0 0.0
    %699 = vmatpush1.msra.mxu0 %v36
    %700 = vmatprep.subr.mxu0 0.0
    %701 = vmatpush2.msra.mxu0 0.0
    %702 = vmatprep.subr.mxu0 0.0
    %703 = vmatpush2.msra.mxu0 0.0
    %704 = vmatprep.subr.mxu0 0.0
    %705 = vmatpush2.msra.mxu0 0.0
    %706 = vmatprep.subr.mxu0 0.0
    %707 = vmatpush2.msra.mxu0 0.0
    %708 = vmatprep.subr.mxu0 0.0
    %709 = vmatpush2.msra.mxu0 0.0
    %710 = vmatprep.subr.mxu0 0.0
    %711 = vmatpush2.msra.mxu0 0.0
    %712 = vmatprep.subr.mxu0 0.0
    %713 = vmatpush2.msra.mxu0 0.0
    %714 = vmatprep.subr.mxu0 0.0
    %715 = vmatpush2.msra.mxu0 0.0
    %716 = vmatprep.subr.mxu0 0.0
    %717 = vmatpush2.msra.mxu0 0.0
    %718 = vmatprep.subr.mxu0 0.0
    %719 = vmatpush2.msra.mxu0 0.0
    %720 = vmatprep.subr.mxu0 0.0
    %721 = vmatpush2.msra.mxu0 0.0
    %722 = vmatprep.subr.mxu0 0.0
    %723 = vmatpush2.msra.mxu0 0.0
    %724 = vmatprep.subr.mxu0 0.0
    %725 = vmatpush2.msra.mxu0 0.0
    %726 = vmatprep.subr.mxu0 0.0
    %727 = vmatpush2.msra.mxu0 0.0
    %728 = vmatprep.subr.mxu0 0.0
    %729 = vmatpush2.msra.mxu0 0.0
    %730 = vmatprep.subr.mxu0 0.0
    %731 = vmatpush2.msra.mxu0 0.0
    %732 = vmatprep.mubr.f32.mxu0 0.0
    %733 = vmatmul.mubr.f32.gmra.mxu0 %v666
    %v734 = vpop.f32.mrf.mxu0
    %v735 = vadd.f32 0.0, %v734
    %v736 = vpop.f32.mrf.mxu0
    %737 = vdwg.mxu0
    %s738 = scalar_lea.vmem %s5, 16
    %v739 = vld [vmem:[%s738] sm:$0xff]
    %v740 = vld [vmem:[%s738 + $0x8] sm:$0xff]
    %s741 = scalar_lea.vmem %s6, 16
    %v742 = vld [vmem:[%s741] sm:$0xff]
    %v743 = vld [vmem:[%s741 + $0x8] sm:$0xff]
    %v745 = vsel %vm412, %v735, 0
    %747 = vmatprep.subr.mxu0 0.0
    %748 = vmatpush1.msra.mxu0 0.0
    %749 = vmatprep.subr.mxu0 0.0
    %750 = vmatpush1.msra.mxu0 0.0
    %751 = vmatprep.subr.mxu0 0.0
    %752 = vmatpush1.msra.mxu0 0.0
    %753 = vmatprep.subr.mxu0 0.0
    %754 = vmatpush1.msra.mxu0 0.0
    %755 = vmatprep.subr.mxu0 0.0
    %756 = vmatpush1.msra.mxu0 0.0
    %757 = vmatprep.subr.mxu0 0.0
    %758 = vmatpush1.msra.mxu0 0.0
    %759 = vmatprep.subr.mxu0 0.0
    %760 = vmatpush1.msra.mxu0 0.0
    %761 = vmatprep.subr.mxu0 0.0
    %762 = vmatpush1.msra.mxu0 0.0
    %763 = vmatprep.subr.mxu0 0.0
    %764 = vmatpush1.msra.mxu0 0.0
    %765 = vmatprep.subr.mxu0 0.0
    %766 = vmatpush1.msra.mxu0 0.0
    %767 = vmatprep.subr.mxu0 0.0
    %768 = vmatpush1.msra.mxu0 0.0
    %769 = vmatprep.subr.mxu0 0.0
    %770 = vmatpush1.msra.mxu0 0.0
    %771 = vmatprep.subr.mxu0 0.0
    %772 = vmatpush1.msra.mxu0 0.0
    %773 = vmatprep.subr.mxu0 0.0
    %774 = vmatpush1.msra.mxu0 0.0
    %775 = vmatprep.subr.mxu0 0.0
    %776 = vmatpush1.msra.mxu0 %v743
    %777 = vmatprep.subr.mxu0 0.0
    %778 = vmatpush1.msra.mxu0 %v742
    %779 = vmatprep.subr.mxu0 0.0
    %780 = vmatpush2.msra.mxu0 0.0
    %781 = vmatprep.subr.mxu0 0.0
    %782 = vmatpush2.msra.mxu0 0.0
    %783 = vmatprep.subr.mxu0 0.0
    %784 = vmatpush2.msra.mxu0 0.0
    %785 = vmatprep.subr.mxu0 0.0
    %786 = vmatpush2.msra.mxu0 0.0
    %787 = vmatprep.subr.mxu0 0.0
    %788 = vmatpush2.msra.mxu0 0.0
    %789 = vmatprep.subr.mxu0 0.0
    %790 = vmatpush2.msra.mxu0 0.0
    %791 = vmatprep.subr.mxu0 0.0
    %792 = vmatpush2.msra.mxu0 0.0
    %793 = vmatprep.subr.mxu0 0.0
    %794 = vmatpush2.msra.mxu0 0.0
    %795 = vmatprep.subr.mxu0 0.0
    %796 = vmatpush2.msra.mxu0 0.0
    %797 = vmatprep.subr.mxu0 0.0
    %798 = vmatpush2.msra.mxu0 0.0
    %799 = vmatprep.subr.mxu0 0.0
    %800 = vmatpush2.msra.mxu0 0.0
    %801 = vmatprep.subr.mxu0 0.0
    %802 = vmatpush2.msra.mxu0 0.0
    %803 = vmatprep.subr.mxu0 0.0
    %804 = vmatpush2.msra.mxu0 0.0
    %805 = vmatprep.subr.mxu0 0.0
    %806 = vmatpush2.msra.mxu0 0.0
    %807 = vmatprep.subr.mxu0 0.0
    %808 = vmatpush2.msra.mxu0 0.0
    %809 = vmatprep.subr.mxu0 0.0
    %810 = vmatpush2.msra.mxu0 0.0
    %811 = vmatprep.mubr.f32.mxu0 0.0
    %812 = vmatmul.mubr.f32.gmra.mxu0 %v745
    %v813 = vpop.f32.mrf.mxu0
    %v814 = vadd.f32 0.0, %v813
    %v815 = vpop.f32.mrf.mxu0
    %816 = vdwg.mxu0
    %817 = vmatprep.subr.mxu0 0.0
    %818 = vmatpush1.msra.mxu0 0.0
    %819 = vmatprep.subr.mxu0 0.0
    %820 = vmatpush1.msra.mxu0 0.0
    %821 = vmatprep.subr.mxu0 0.0
    %822 = vmatpush1.msra.mxu0 0.0
    %823 = vmatprep.subr.mxu0 0.0
    %824 = vmatpush1.msra.mxu0 0.0
    %825 = vmatprep.subr.mxu0 0.0
    %826 = vmatpush1.msra.mxu0 0.0
    %827 = vmatprep.subr.mxu0 0.0
    %828 = vmatpush1.msra.mxu0 0.0
    %829 = vmatprep.subr.mxu0 0.0
    %830 = vmatpush1.msra.mxu0 0.0
    %831 = vmatprep.subr.mxu0 0.0
    %832 = vmatpush1.msra.mxu0 0.0
    %833 = vmatprep.subr.mxu0 0.0
    %834 = vmatpush1.msra.mxu0 0.0
    %835 = vmatprep.subr.mxu0 0.0
    %836 = vmatpush1.msra.mxu0 0.0
    %837 = vmatprep.subr.mxu0 0.0
    %838 = vmatpush1.msra.mxu0 0.0
    %839 = vmatprep.subr.mxu0 0.0
    %840 = vmatpush1.msra.mxu0 0.0
    %841 = vmatprep.subr.mxu0 0.0
    %842 = vmatpush1.msra.mxu0 0.0
    %843 = vmatprep.subr.mxu0 0.0
    %844 = vmatpush1.msra.mxu0 0.0
    %845 = vmatprep.subr.mxu0 0.0
    %846 = vmatpush1.msra.mxu0 %v740
    %847 = vmatprep.subr.mxu0 0.0
    %848 = vmatpush1.msra.mxu0 %v739
    %849 = vmatprep.subr.mxu0 0.0
    %850 = vmatpush2.msra.mxu0 0.0
    %851 = vmatprep.subr.mxu0 0.0
    %852 = vmatpush2.msra.mxu0 0.0
    %853 = vmatprep.subr.mxu0 0.0
    %854 = vmatpush2.msra.mxu0 0.0
    %855 = vmatprep.subr.mxu0 0.0
    %856 = vmatpush2.msra.mxu0 0.0
    %857 = vmatprep.subr.mxu0 0.0
    %858 = vmatpush2.msra.mxu0 0.0
    %859 = vmatprep.subr.mxu0 0.0
    %860 = vmatpush2.msra.mxu0 0.0
    %861 = vmatprep.subr.mxu0 0.0
    %862 = vmatpush2.msra.mxu0 0.0
    %863 = vmatprep.subr.mxu0 0.0
    %864 = vmatpush2.msra.mxu0 0.0
    %865 = vmatprep.subr.mxu0 0.0
    %866 = vmatpush2.msra.mxu0 0.0
    %867 = vmatprep.subr.mxu0 0.0
    %868 = vmatpush2.msra.mxu0 0.0
    %869 = vmatprep.subr.mxu0 0.0
    %870 = vmatpush2.msra.mxu0 0.0
    %871 = vmatprep.subr.mxu0 0.0
    %872 = vmatpush2.msra.mxu0 0.0
    %873 = vmatprep.subr.mxu0 0.0
    %874 = vmatpush2.msra.mxu0 0.0
    %875 = vmatprep.subr.mxu0 0.0
    %876 = vmatpush2.msra.mxu0 0.0
    %877 = vmatprep.subr.mxu0 0.0
    %878 = vmatpush2.msra.mxu0 0.0
    %879 = vmatprep.subr.mxu0 0.0
    %880 = vmatpush2.msra.mxu0 0.0
    %881 = vmatprep.mubr.f32.mxu0 0.0
    %882 = vmatmul.mubr.f32.gmra.mxu0 %v487
    %v883 = vpop.f32.mrf.mxu0
    %v884 = vadd.f32 %v814, %v883
    %v885 = vpop.f32.mrf.mxu0
    %886 = vdwg.mxu0
    %s887 = scalar_lea.vmem %s7, 1
    %v888 = vld [vmem:[%s887] sm:$0x1]
    %v890 = vlaneseq
    %v891 = vshrl.u32 %v890, 7
    %v892 = vsub.s32 0, %v891
    %v893 = vrot.slane %v888, %v892
    %v895 = vadd.f32 %v884, %v893
    %v896 = vmax.f32 %v895, 0.0
    %s897 = scalar_lea.vmem %s8, 1
    %v898 = vld [vmem:[%s897] sm:$0x1]
    %v900 = vlaneseq
    %v901 = vshrl.u32 %v900, 7
    %v902 = vsub.s32 0, %v901
    %v903 = vrot.slane %v898, %v902
    %v905 = vmul.f32 %v896, %v903
    %v906 = vsel %vm576, %v905, 0.0
    %907 = vadd.xlane.f32.xlu0 %v906
    %v908 = vpop.xlane.xlu0 %907
    %vm909 = vcmp.eq.s32.totalorder %v40, 1
    %v910 = vsel %vm909, %v908, 0.0
    %v911 = vadd.f32 %v582, %v910
    %s912 = scalar_lea.vmem %s3, 4
    %v913 = vld [vmem:[%s912] sm:$0x3]
    %914 = vset.pattern.permute.xlu0 0
    %915 = vperm.xlu0 %914, %v913
    %v916 = vpop.permute.xlu0 %915
    %vm917 = vcmp.eq.s32.totalorder %v40, %v916
    %918 = vset.pattern.permute.xlu0 2
    %919 = vperm.xlu0 %918, %v232
    %v920 = vpop.permute.xlu0 %919
    %v922 = vsel %vm917, %v920, 0.0
    %v923 = vadd.f32 %v922, 0.0
    %924 = vset.pattern.permute.xlu0 1
    %925 = vperm.xlu0 %924, %v913
    %v926 = vpop.permute.xlu0 %925
    %vm927 = vcmp.eq.s32.totalorder %v40, %v926
    %928 = vset.pattern.permute.xlu0 2
    %929 = vperm.xlu0 %928, %v245
    %v930 = vpop.permute.xlu0 %929
    %v932 = vsel %vm927, %v930, 0.0
    %v933 = vadd.f32 %v923, %v932
    %934 = vset.pattern.permute.xlu0 2
    %935 = vperm.xlu0 %934, %v913
    %v936 = vpop.permute.xlu0 %935
    %vm937 = vcmp.eq.s32.totalorder %v40, %v936
    %938 = vset.pattern.permute.xlu0 2
    %939 = vperm.xlu0 %938, %v258
    %v940 = vpop.permute.xlu0 %939
    %v942 = vsel %vm937, %v940, 0.0
    %v943 = vadd.f32 %v933, %v942
    %944 = vset.pattern.permute.xlu0 3
    %945 = vperm.xlu0 %944, %v913
    %v946 = vpop.permute.xlu0 %945
    %vm947 = vcmp.eq.s32.totalorder %v40, %v946
    %948 = vset.pattern.permute.xlu0 2
    %949 = vperm.xlu0 %948, %v271
    %v950 = vpop.permute.xlu0 %949
    %v952 = vsel %vm947, %v950, 0.0
    %v953 = vadd.f32 %v943, %v952
    %954 = vset.pattern.permute.xlu0 4
    %955 = vperm.xlu0 %954, %v913
    %v956 = vpop.permute.xlu0 %955
    %vm957 = vcmp.eq.s32.totalorder %v40, %v956
    %958 = vset.pattern.permute.xlu0 2
    %959 = vperm.xlu0 %958, %v284
    %v960 = vpop.permute.xlu0 %959
    %v962 = vsel %vm957, %v960, 0.0
    %v963 = vadd.f32 %v953, %v962
    %964 = vset.pattern.permute.xlu0 5
    %965 = vperm.xlu0 %964, %v913
    %v966 = vpop.permute.xlu0 %965
    %vm967 = vcmp.eq.s32.totalorder %v40, %v966
    %968 = vset.pattern.permute.xlu0 2
    %969 = vperm.xlu0 %968, %v297
    %v970 = vpop.permute.xlu0 %969
    %v972 = vsel %vm967, %v970, 0.0
    %v973 = vadd.f32 %v963, %v972
    %974 = vset.pattern.permute.xlu0 6
    %975 = vperm.xlu0 %974, %v913
    %v976 = vpop.permute.xlu0 %975
    %vm977 = vcmp.eq.s32.totalorder %v40, %v976
    %978 = vset.pattern.permute.xlu0 2
    %979 = vperm.xlu0 %978, %v310
    %v980 = vpop.permute.xlu0 %979
    %v982 = vsel %vm977, %v980, 0.0
    %v983 = vadd.f32 %v973, %v982
    %984 = vset.pattern.permute.xlu0 7
    %985 = vperm.xlu0 %984, %v913
    %v986 = vpop.permute.xlu0 %985
    %vm987 = vcmp.eq.s32.totalorder %v40, %v986
    %988 = vset.pattern.permute.xlu0 2
    %989 = vperm.xlu0 %988, %v323
    %v990 = vpop.permute.xlu0 %989
    %v992 = vsel %vm987, %v990, 0.0
    %v993 = vadd.f32 %v983, %v992
    %v995 = vsel %vm151, %v993, 0
    %997 = vmatprep.subr.mxu0 0.0
    %998 = vmatpush1.msra.mxu0 0.0
    %999 = vmatprep.subr.mxu0 0.0
    %1000 = vmatpush1.msra.mxu0 0.0
    %1001 = vmatprep.subr.mxu0 0.0
    %1002 = vmatpush1.msra.mxu0 0.0
    %1003 = vmatprep.subr.mxu0 0.0
    %1004 = vmatpush1.msra.mxu0 0.0
    %1005 = vmatprep.subr.mxu0 0.0
    %1006 = vmatpush1.msra.mxu0 0.0
    %1007 = vmatprep.subr.mxu0 0.0
    %1008 = vmatpush1.msra.mxu0 0.0
    %1009 = vmatprep.subr.mxu0 0.0
    %1010 = vmatpush1.msra.mxu0 0.0
    %1011 = vmatprep.subr.mxu0 0.0
    %1012 = vmatpush1.msra.mxu0 0.0
    %1013 = vmatprep.subr.mxu0 0.0
    %1014 = vmatpush1.msra.mxu0 0.0
    %1015 = vmatprep.subr.mxu0 0.0
    %1016 = vmatpush1.msra.mxu0 0.0
    %1017 = vmatprep.subr.mxu0 0.0
    %1018 = vmatpush1.msra.mxu0 0.0
    %1019 = vmatprep.subr.mxu0 0.0
    %1020 = vmatpush1.msra.mxu0 0.0
    %1021 = vmatprep.subr.mxu0 0.0
    %1022 = vmatpush1.msra.mxu0 0.0
    %1023 = vmatprep.subr.mxu0 0.0
    %1024 = vmatpush1.msra.mxu0 %v38
    %1025 = vmatprep.subr.mxu0 0.0
    %1026 = vmatpush1.msra.mxu0 %v37
    %1027 = vmatprep.subr.mxu0 0.0
    %1028 = vmatpush1.msra.mxu0 %v36
    %1029 = vmatprep.subr.mxu0 0.0
    %1030 = vmatpush2.msra.mxu0 0.0
    %1031 = vmatprep.subr.mxu0 0.0
    %1032 = vmatpush2.msra.mxu0 0.0
    %1033 = vmatprep.subr.mxu0 0.0
    %1034 = vmatpush2.msra.mxu0 0.0
    %1035 = vmatprep.subr.mxu0 0.0
    %1036 = vmatpush2.msra.mxu0 0.0
    %1037 = vmatprep.subr.mxu0 0.0
    %1038 = vmatpush2.msra.mxu0 0.0
    %1039 = vmatprep.subr.mxu0 0.0
    %1040 = vmatpush2.msra.mxu0 0.0
    %1041 = vmatprep.subr.mxu0 0.0
    %1042 = vmatpush2.msra.mxu0 0.0
    %1043 = vmatprep.subr.mxu0 0.0
    %1044 = vmatpush2.msra.mxu0 0.0
    %1045 = vmatprep.subr.mxu0 0.0
    %1046 = vmatpush2.msra.mxu0 0.0
    %1047 = vmatprep.subr.mxu0 0.0
    %1048 = vmatpush2.msra.mxu0 0.0
    %1049 = vmatprep.subr.mxu0 0.0
    %1050 = vmatpush2.msra.mxu0 0.0
    %1051 = vmatprep.subr.mxu0 0.0
    %1052 = vmatpush2.msra.mxu0 0.0
    %1053 = vmatprep.subr.mxu0 0.0
    %1054 = vmatpush2.msra.mxu0 0.0
    %1055 = vmatprep.subr.mxu0 0.0
    %1056 = vmatpush2.msra.mxu0 0.0
    %1057 = vmatprep.subr.mxu0 0.0
    %1058 = vmatpush2.msra.mxu0 0.0
    %1059 = vmatprep.subr.mxu0 0.0
    %1060 = vmatpush2.msra.mxu0 0.0
    %1061 = vmatprep.mubr.f32.mxu0 0.0
    %1062 = vmatmul.mubr.f32.gmra.mxu0 %v995
    %v1063 = vpop.f32.mrf.mxu0
    %v1064 = vadd.f32 0.0, %v1063
    %v1065 = vpop.f32.mrf.mxu0
    %1066 = vdwg.mxu0
    %s1067 = scalar_lea.vmem %s5, 32
    %v1068 = vld [vmem:[%s1067] sm:$0xff]
    %v1069 = vld [vmem:[%s1067 + $0x8] sm:$0xff]
    %s1070 = scalar_lea.vmem %s6, 32
    %v1071 = vld [vmem:[%s1070] sm:$0xff]
    %v1072 = vld [vmem:[%s1070 + $0x8] sm:$0xff]
    %v1074 = vsel %vm412, %v1064, 0
    %1076 = vmatprep.subr.mxu0 0.0
    %1077 = vmatpush1.msra.mxu0 0.0
    %1078 = vmatprep.subr.mxu0 0.0
    %1079 = vmatpush1.msra.mxu0 0.0
    %1080 = vmatprep.subr.mxu0 0.0
    %1081 = vmatpush1.msra.mxu0 0.0
    %1082 = vmatprep.subr.mxu0 0.0
    %1083 = vmatpush1.msra.mxu0 0.0
    %1084 = vmatprep.subr.mxu0 0.0
    %1085 = vmatpush1.msra.mxu0 0.0
    %1086 = vmatprep.subr.mxu0 0.0
    %1087 = vmatpush1.msra.mxu0 0.0
    %1088 = vmatprep.subr.mxu0 0.0
    %1089 = vmatpush1.msra.mxu0 0.0
    %1090 = vmatprep.subr.mxu0 0.0
    %1091 = vmatpush1.msra.mxu0 0.0
    %1092 = vmatprep.subr.mxu0 0.0
    %1093 = vmatpush1.msra.mxu0 0.0
    %1094 = vmatprep.subr.mxu0 0.0
    %1095 = vmatpush1.msra.mxu0 0.0
    %1096 = vmatprep.subr.mxu0 0.0
    %1097 = vmatpush1.msra.mxu0 0.0
    %1098 = vmatprep.subr.mxu0 0.0
    %1099 = vmatpush1.msra.mxu0 0.0
    %1100 = vmatprep.subr.mxu0 0.0
    %1101 = vmatpush1.msra.mxu0 0.0
    %1102 = vmatprep.subr.mxu0 0.0
    %1103 = vmatpush1.msra.mxu0 0.0
    %1104 = vmatprep.subr.mxu0 0.0
    %1105 = vmatpush1.msra.mxu0 %v1072
    %1106 = vmatprep.subr.mxu0 0.0
    %1107 = vmatpush1.msra.mxu0 %v1071
    %1108 = vmatprep.subr.mxu0 0.0
    %1109 = vmatpush2.msra.mxu0 0.0
    %1110 = vmatprep.subr.mxu0 0.0
    %1111 = vmatpush2.msra.mxu0 0.0
    %1112 = vmatprep.subr.mxu0 0.0
    %1113 = vmatpush2.msra.mxu0 0.0
    %1114 = vmatprep.subr.mxu0 0.0
    %1115 = vmatpush2.msra.mxu0 0.0
    %1116 = vmatprep.subr.mxu0 0.0
    %1117 = vmatpush2.msra.mxu0 0.0
    %1118 = vmatprep.subr.mxu0 0.0
    %1119 = vmatpush2.msra.mxu0 0.0
    %1120 = vmatprep.subr.mxu0 0.0
    %1121 = vmatpush2.msra.mxu0 0.0
    %1122 = vmatprep.subr.mxu0 0.0
    %1123 = vmatpush2.msra.mxu0 0.0
    %1124 = vmatprep.subr.mxu0 0.0
    %1125 = vmatpush2.msra.mxu0 0.0
    %1126 = vmatprep.subr.mxu0 0.0
    %1127 = vmatpush2.msra.mxu0 0.0
    %1128 = vmatprep.subr.mxu0 0.0
    %1129 = vmatpush2.msra.mxu0 0.0
    %1130 = vmatprep.subr.mxu0 0.0
    %1131 = vmatpush2.msra.mxu0 0.0
    %1132 = vmatprep.subr.mxu0 0.0
    %1133 = vmatpush2.msra.mxu0 0.0
    %1134 = vmatprep.subr.mxu0 0.0
    %1135 = vmatpush2.msra.mxu0 0.0
    %1136 = vmatprep.subr.mxu0 0.0
    %1137 = vmatpush2.msra.mxu0 0.0
    %1138 = vmatprep.subr.mxu0 0.0
    %1139 = vmatpush2.msra.mxu0 0.0
    %1140 = vmatprep.mubr.f32.mxu0 0.0
    %1141 = vmatmul.mubr.f32.gmra.mxu0 %v1074
    %v1142 = vpop.f32.mrf.mxu0
    %v1143 = vadd.f32 0.0, %v1142
    %v1144 = vpop.f32.mrf.mxu0
    %1145 = vdwg.mxu0
    %1146 = vmatprep.subr.mxu0 0.0
    %1147 = vmatpush1.msra.mxu0 0.0
    %1148 = vmatprep.subr.mxu0 0.0
    %1149 = vmatpush1.msra.mxu0 0.0
    %1150 = vmatprep.subr.mxu0 0.0
    %1151 = vmatpush1.msra.mxu0 0.0
    %1152 = vmatprep.subr.mxu0 0.0
    %1153 = vmatpush1.msra.mxu0 0.0
    %1154 = vmatprep.subr.mxu0 0.0
    %1155 = vmatpush1.msra.mxu0 0.0
    %1156 = vmatprep.subr.mxu0 0.0
    %1157 = vmatpush1.msra.mxu0 0.0
    %1158 = vmatprep.subr.mxu0 0.0
    %1159 = vmatpush1.msra.mxu0 0.0
    %1160 = vmatprep.subr.mxu0 0.0
    %1161 = vmatpush1.msra.mxu0 0.0
    %1162 = vmatprep.subr.mxu0 0.0
    %1163 = vmatpush1.msra.mxu0 0.0
    %1164 = vmatprep.subr.mxu0 0.0
    %1165 = vmatpush1.msra.mxu0 0.0
    %1166 = vmatprep.subr.mxu0 0.0
    %1167 = vmatpush1.msra.mxu0 0.0
    %1168 = vmatprep.subr.mxu0 0.0
    %1169 = vmatpush1.msra.mxu0 0.0
    %1170 = vmatprep.subr.mxu0 0.0
    %1171 = vmatpush1.msra.mxu0 0.0
    %1172 = vmatprep.subr.mxu0 0.0
    %1173 = vmatpush1.msra.mxu0 0.0
    %1174 = vmatprep.subr.mxu0 0.0
    %1175 = vmatpush1.msra.mxu0 %v1069
    %1176 = vmatprep.subr.mxu0 0.0
    %1177 = vmatpush1.msra.mxu0 %v1068
    %1178 = vmatprep.subr.mxu0 0.0
    %1179 = vmatpush2.msra.mxu0 0.0
    %1180 = vmatprep.subr.mxu0 0.0
    %1181 = vmatpush2.msra.mxu0 0.0
    %1182 = vmatprep.subr.mxu0 0.0
    %1183 = vmatpush2.msra.mxu0 0.0
    %1184 = vmatprep.subr.mxu0 0.0
    %1185 = vmatpush2.msra.mxu0 0.0
    %1186 = vmatprep.subr.mxu0 0.0
    %1187 = vmatpush2.msra.mxu0 0.0
    %1188 = vmatprep.subr.mxu0 0.0
    %1189 = vmatpush2.msra.mxu0 0.0
    %1190 = vmatprep.subr.mxu0 0.0
    %1191 = vmatpush2.msra.mxu0 0.0
    %1192 = vmatprep.subr.mxu0 0.0
    %1193 = vmatpush2.msra.mxu0 0.0
    %1194 = vmatprep.subr.mxu0 0.0
    %1195 = vmatpush2.msra.mxu0 0.0
    %1196 = vmatprep.subr.mxu0 0.0
    %1197 = vmatpush2.msra.mxu0 0.0
    %1198 = vmatprep.subr.mxu0 0.0
    %1199 = vmatpush2.msra.mxu0 0.0
    %1200 = vmatprep.subr.mxu0 0.0
    %1201 = vmatpush2.msra.mxu0 0.0
    %1202 = vmatprep.subr.mxu0 0.0
    %1203 = vmatpush2.msra.mxu0 0.0
    %1204 = vmatprep.subr.mxu0 0.0
    %1205 = vmatpush2.msra.mxu0 0.0
    %1206 = vmatprep.subr.mxu0 0.0
    %1207 = vmatpush2.msra.mxu0 0.0
    %1208 = vmatprep.subr.mxu0 0.0
    %1209 = vmatpush2.msra.mxu0 0.0
    %1210 = vmatprep.mubr.f32.mxu0 0.0
    %1211 = vmatmul.mubr.f32.gmra.mxu0 %v487
    %v1212 = vpop.f32.mrf.mxu0
    %v1213 = vadd.f32 %v1143, %v1212
    %v1214 = vpop.f32.mrf.mxu0
    %1215 = vdwg.mxu0
    %s1216 = scalar_lea.vmem %s7, 2
    %v1217 = vld [vmem:[%s1216] sm:$0x1]
    %v1219 = vlaneseq
    %v1220 = vshrl.u32 %v1219, 7
    %v1221 = vsub.s32 0, %v1220
    %v1222 = vrot.slane %v1217, %v1221
    %v1224 = vadd.f32 %v1213, %v1222
    %v1225 = vmax.f32 %v1224, 0.0
    %s1226 = scalar_lea.vmem %s8, 2
    %v1227 = vld [vmem:[%s1226] sm:$0x1]
    %v1229 = vlaneseq
    %v1230 = vshrl.u32 %v1229, 7
    %v1231 = vsub.s32 0, %v1230
    %v1232 = vrot.slane %v1227, %v1231
    %v1234 = vmul.f32 %v1225, %v1232
    %v1235 = vsel %vm576, %v1234, 0.0
    %1236 = vadd.xlane.f32.xlu0 %v1235
    %v1237 = vpop.xlane.xlu0 %1236
    %vm1238 = vcmp.eq.s32.totalorder %v40, 2
    %v1239 = vsel %vm1238, %v1237, 0.0
    %v1240 = vadd.f32 %v911, %v1239
    %s1241 = scalar_lea.vmem %s3, 6
    %v1242 = vld [vmem:[%s1241] sm:$0x3]
    %1243 = vset.pattern.permute.xlu0 0
    %1244 = vperm.xlu0 %1243, %v1242
    %v1245 = vpop.permute.xlu0 %1244
    %vm1246 = vcmp.eq.s32.totalorder %v40, %v1245
    %1247 = vset.pattern.permute.xlu0 3
    %1248 = vperm.xlu0 %1247, %v232
    %v1249 = vpop.permute.xlu0 %1248
    %v1251 = vsel %vm1246, %v1249, 0.0
    %v1252 = vadd.f32 %v1251, 0.0
    %1253 = vset.pattern.permute.xlu0 1
    %1254 = vperm.xlu0 %1253, %v1242
    %v1255 = vpop.permute.xlu0 %1254
    %vm1256 = vcmp.eq.s32.totalorder %v40, %v1255
    %1257 = vset.pattern.permute.xlu0 3
    %1258 = vperm.xlu0 %1257, %v245
    %v1259 = vpop.permute.xlu0 %1258
    %v1261 = vsel %vm1256, %v1259, 0.0
    %v1262 = vadd.f32 %v1252, %v1261
    %1263 = vset.pattern.permute.xlu0 2
    %1264 = vperm.xlu0 %1263, %v1242
    %v1265 = vpop.permute.xlu0 %1264
    %vm1266 = vcmp.eq.s32.totalorder %v40, %v1265
    %1267 = vset.pattern.permute.xlu0 3
    %1268 = vperm.xlu0 %1267, %v258
    %v1269 = vpop.permute.xlu0 %1268
    %v1271 = vsel %vm1266, %v1269, 0.0
    %v1272 = vadd.f32 %v1262, %v1271
    %1273 = vset.pattern.permute.xlu0 3
    %1274 = vperm.xlu0 %1273, %v1242
    %v1275 = vpop.permute.xlu0 %1274
    %vm1276 = vcmp.eq.s32.totalorder %v40, %v1275
    %1277 = vset.pattern.permute.xlu0 3
    %1278 = vperm.xlu0 %1277, %v271
    %v1279 = vpop.permute.xlu0 %1278
    %v1281 = vsel %vm1276, %v1279, 0.0
    %v1282 = vadd.f32 %v1272, %v1281
    %1283 = vset.pattern.permute.xlu0 4
    %1284 = vperm.xlu0 %1283, %v1242
    %v1285 = vpop.permute.xlu0 %1284
    %vm1286 = vcmp.eq.s32.totalorder %v40, %v1285
    %1287 = vset.pattern.permute.xlu0 3
    %1288 = vperm.xlu0 %1287, %v284
    %v1289 = vpop.permute.xlu0 %1288
    %v1291 = vsel %vm1286, %v1289, 0.0
    %v1292 = vadd.f32 %v1282, %v1291
    %1293 = vset.pattern.permute.xlu0 5
    %1294 = vperm.xlu0 %1293, %v1242
    %v1295 = vpop.permute.xlu0 %1294
    %vm1296 = vcmp.eq.s32.totalorder %v40, %v1295
    %1297 = vset.pattern.permute.xlu0 3
    %1298 = vperm.xlu0 %1297, %v297
    %v1299 = vpop.permute.xlu0 %1298
    %v1301 = vsel %vm1296, %v1299, 0.0
    %v1302 = vadd.f32 %v1292, %v1301
    %1303 = vset.pattern.permute.xlu0 6
    %1304 = vperm.xlu0 %1303, %v1242
    %v1305 = vpop.permute.xlu0 %1304
    %vm1306 = vcmp.eq.s32.totalorder %v40, %v1305
    %1307 = vset.pattern.permute.xlu0 3
    %1308 = vperm.xlu0 %1307, %v310
    %v1309 = vpop.permute.xlu0 %1308
    %v1311 = vsel %vm1306, %v1309, 0.0
    %v1312 = vadd.f32 %v1302, %v1311
    %1313 = vset.pattern.permute.xlu0 7
    %1314 = vperm.xlu0 %1313, %v1242
    %v1315 = vpop.permute.xlu0 %1314
    %vm1316 = vcmp.eq.s32.totalorder %v40, %v1315
    %1317 = vset.pattern.permute.xlu0 3
    %1318 = vperm.xlu0 %1317, %v323
    %v1319 = vpop.permute.xlu0 %1318
    %v1321 = vsel %vm1316, %v1319, 0.0
    %v1322 = vadd.f32 %v1312, %v1321
    %v1324 = vsel %vm151, %v1322, 0
    %1326 = vmatprep.subr.mxu0 0.0
    %1327 = vmatpush1.msra.mxu0 0.0
    %1328 = vmatprep.subr.mxu0 0.0
    %1329 = vmatpush1.msra.mxu0 0.0
    %1330 = vmatprep.subr.mxu0 0.0
    %1331 = vmatpush1.msra.mxu0 0.0
    %1332 = vmatprep.subr.mxu0 0.0
    %1333 = vmatpush1.msra.mxu0 0.0
    %1334 = vmatprep.subr.mxu0 0.0
    %1335 = vmatpush1.msra.mxu0 0.0
    %1336 = vmatprep.subr.mxu0 0.0
    %1337 = vmatpush1.msra.mxu0 0.0
    %1338 = vmatprep.subr.mxu0 0.0
    %1339 = vmatpush1.msra.mxu0 0.0
    %1340 = vmatprep.subr.mxu0 0.0
    %1341 = vmatpush1.msra.mxu0 0.0
    %1342 = vmatprep.subr.mxu0 0.0
    %1343 = vmatpush1.msra.mxu0 0.0
    %1344 = vmatprep.subr.mxu0 0.0
    %1345 = vmatpush1.msra.mxu0 0.0
    %1346 = vmatprep.subr.mxu0 0.0
    %1347 = vmatpush1.msra.mxu0 0.0
    %1348 = vmatprep.subr.mxu0 0.0
    %1349 = vmatpush1.msra.mxu0 0.0
    %1350 = vmatprep.subr.mxu0 0.0
    %1351 = vmatpush1.msra.mxu0 0.0
    %1352 = vmatprep.subr.mxu0 0.0
    %1353 = vmatpush1.msra.mxu0 %v38
    %1354 = vmatprep.subr.mxu0 0.0
    %1355 = vmatpush1.msra.mxu0 %v37
    %1356 = vmatprep.subr.mxu0 0.0
    %1357 = vmatpush1.msra.mxu0 %v36
    %1358 = vmatprep.subr.mxu0 0.0
    %1359 = vmatpush2.msra.mxu0 0.0
    %1360 = vmatprep.subr.mxu0 0.0
    %1361 = vmatpush2.msra.mxu0 0.0
    %1362 = vmatprep.subr.mxu0 0.0
    %1363 = vmatpush2.msra.mxu0 0.0
    %1364 = vmatprep.subr.mxu0 0.0
    %1365 = vmatpush2.msra.mxu0 0.0
    %1366 = vmatprep.subr.mxu0 0.0
    %1367 = vmatpush2.msra.mxu0 0.0
    %1368 = vmatprep.subr.mxu0 0.0
    %1369 = vmatpush2.msra.mxu0 0.0
    %1370 = vmatprep.subr.mxu0 0.0
    %1371 = vmatpush2.msra.mxu0 0.0
    %1372 = vmatprep.subr.mxu0 0.0
    %1373 = vmatpush2.msra.mxu0 0.0
    %1374 = vmatprep.subr.mxu0 0.0
    %1375 = vmatpush2.msra.mxu0 0.0
    %1376 = vmatprep.subr.mxu0 0.0
    %1377 = vmatpush2.msra.mxu0 0.0
    %1378 = vmatprep.subr.mxu0 0.0
    %1379 = vmatpush2.msra.mxu0 0.0
    %1380 = vmatprep.subr.mxu0 0.0
    %1381 = vmatpush2.msra.mxu0 0.0
    %1382 = vmatprep.subr.mxu0 0.0
    %1383 = vmatpush2.msra.mxu0 0.0
    %1384 = vmatprep.subr.mxu0 0.0
    %1385 = vmatpush2.msra.mxu0 0.0
    %1386 = vmatprep.subr.mxu0 0.0
    %1387 = vmatpush2.msra.mxu0 0.0
    %1388 = vmatprep.subr.mxu0 0.0
    %1389 = vmatpush2.msra.mxu0 0.0
    %1390 = vmatprep.mubr.f32.mxu0 0.0
    %1391 = vmatmul.mubr.f32.gmra.mxu0 %v1324
    %v1392 = vpop.f32.mrf.mxu0
    %v1393 = vadd.f32 0.0, %v1392
    %v1394 = vpop.f32.mrf.mxu0
    %1395 = vdwg.mxu0
    %s1396 = scalar_lea.vmem %s5, 48
    %v1397 = vld [vmem:[%s1396] sm:$0xff]
    %v1398 = vld [vmem:[%s1396 + $0x8] sm:$0xff]
    %s1399 = scalar_lea.vmem %s6, 48
    %v1400 = vld [vmem:[%s1399] sm:$0xff]
    %v1401 = vld [vmem:[%s1399 + $0x8] sm:$0xff]
    %v1403 = vsel %vm412, %v1393, 0
    %1405 = vmatprep.subr.mxu0 0.0
    %1406 = vmatpush1.msra.mxu0 0.0
    %1407 = vmatprep.subr.mxu0 0.0
    %1408 = vmatpush1.msra.mxu0 0.0
    %1409 = vmatprep.subr.mxu0 0.0
    %1410 = vmatpush1.msra.mxu0 0.0
    %1411 = vmatprep.subr.mxu0 0.0
    %1412 = vmatpush1.msra.mxu0 0.0
    %1413 = vmatprep.subr.mxu0 0.0
    %1414 = vmatpush1.msra.mxu0 0.0
    %1415 = vmatprep.subr.mxu0 0.0
    %1416 = vmatpush1.msra.mxu0 0.0
    %1417 = vmatprep.subr.mxu0 0.0
    %1418 = vmatpush1.msra.mxu0 0.0
    %1419 = vmatprep.subr.mxu0 0.0
    %1420 = vmatpush1.msra.mxu0 0.0
    %1421 = vmatprep.subr.mxu0 0.0
    %1422 = vmatpush1.msra.mxu0 0.0
    %1423 = vmatprep.subr.mxu0 0.0
    %1424 = vmatpush1.msra.mxu0 0.0
    %1425 = vmatprep.subr.mxu0 0.0
    %1426 = vmatpush1.msra.mxu0 0.0
    %1427 = vmatprep.subr.mxu0 0.0
    %1428 = vmatpush1.msra.mxu0 0.0
    %1429 = vmatprep.subr.mxu0 0.0
    %1430 = vmatpush1.msra.mxu0 0.0
    %1431 = vmatprep.subr.mxu0 0.0
    %1432 = vmatpush1.msra.mxu0 0.0
    %1433 = vmatprep.subr.mxu0 0.0
    %1434 = vmatpush1.msra.mxu0 %v1401
    %1435 = vmatprep.subr.mxu0 0.0
    %1436 = vmatpush1.msra.mxu0 %v1400
    %1437 = vmatprep.subr.mxu0 0.0
    %1438 = vmatpush2.msra.mxu0 0.0
    %1439 = vmatprep.subr.mxu0 0.0
    %1440 = vmatpush2.msra.mxu0 0.0
    %1441 = vmatprep.subr.mxu0 0.0
    %1442 = vmatpush2.msra.mxu0 0.0
    %1443 = vmatprep.subr.mxu0 0.0
    %1444 = vmatpush2.msra.mxu0 0.0
    %1445 = vmatprep.subr.mxu0 0.0
    %1446 = vmatpush2.msra.mxu0 0.0
    %1447 = vmatprep.subr.mxu0 0.0
    %1448 = vmatpush2.msra.mxu0 0.0
    %1449 = vmatprep.subr.mxu0 0.0
    %1450 = vmatpush2.msra.mxu0 0.0
    %1451 = vmatprep.subr.mxu0 0.0
    %1452 = vmatpush2.msra.mxu0 0.0
    %1453 = vmatprep.subr.mxu0 0.0
    %1454 = vmatpush2.msra.mxu0 0.0
    %1455 = vmatprep.subr.mxu0 0.0
    %1456 = vmatpush2.msra.mxu0 0.0
    %1457 = vmatprep.subr.mxu0 0.0
    %1458 = vmatpush2.msra.mxu0 0.0
    %1459 = vmatprep.subr.mxu0 0.0
    %1460 = vmatpush2.msra.mxu0 0.0
    %1461 = vmatprep.subr.mxu0 0.0
    %1462 = vmatpush2.msra.mxu0 0.0
    %1463 = vmatprep.subr.mxu0 0.0
    %1464 = vmatpush2.msra.mxu0 0.0
    %1465 = vmatprep.subr.mxu0 0.0
    %1466 = vmatpush2.msra.mxu0 0.0
    %1467 = vmatprep.subr.mxu0 0.0
    %1468 = vmatpush2.msra.mxu0 0.0
    %1469 = vmatprep.mubr.f32.mxu0 0.0
    %1470 = vmatmul.mubr.f32.gmra.mxu0 %v1403
    %v1471 = vpop.f32.mrf.mxu0
    %v1472 = vadd.f32 0.0, %v1471
    %v1473 = vpop.f32.mrf.mxu0
    %1474 = vdwg.mxu0
    %1475 = vmatprep.subr.mxu0 0.0
    %1476 = vmatpush1.msra.mxu0 0.0
    %1477 = vmatprep.subr.mxu0 0.0
    %1478 = vmatpush1.msra.mxu0 0.0
    %1479 = vmatprep.subr.mxu0 0.0
    %1480 = vmatpush1.msra.mxu0 0.0
    %1481 = vmatprep.subr.mxu0 0.0
    %1482 = vmatpush1.msra.mxu0 0.0
    %1483 = vmatprep.subr.mxu0 0.0
    %1484 = vmatpush1.msra.mxu0 0.0
    %1485 = vmatprep.subr.mxu0 0.0
    %1486 = vmatpush1.msra.mxu0 0.0
    %1487 = vmatprep.subr.mxu0 0.0
    %1488 = vmatpush1.msra.mxu0 0.0
    %1489 = vmatprep.subr.mxu0 0.0
    %1490 = vmatpush1.msra.mxu0 0.0
    %1491 = vmatprep.subr.mxu0 0.0
    %1492 = vmatpush1.msra.mxu0 0.0
    %1493 = vmatprep.subr.mxu0 0.0
    %1494 = vmatpush1.msra.mxu0 0.0
    %1495 = vmatprep.subr.mxu0 0.0
    %1496 = vmatpush1.msra.mxu0 0.0
    %1497 = vmatprep.subr.mxu0 0.0
    %1498 = vmatpush1.msra.mxu0 0.0
    %1499 = vmatprep.subr.mxu0 0.0
    %1500 = vmatpush1.msra.mxu0 0.0
    %1501 = vmatprep.subr.mxu0 0.0
    %1502 = vmatpush1.msra.mxu0 0.0
    %1503 = vmatprep.subr.mxu0 0.0
    %1504 = vmatpush1.msra.mxu0 %v1398
    %1505 = vmatprep.subr.mxu0 0.0
    %1506 = vmatpush1.msra.mxu0 %v1397
    %1507 = vmatprep.subr.mxu0 0.0
    %1508 = vmatpush2.msra.mxu0 0.0
    %1509 = vmatprep.subr.mxu0 0.0
    %1510 = vmatpush2.msra.mxu0 0.0
    %1511 = vmatprep.subr.mxu0 0.0
    %1512 = vmatpush2.msra.mxu0 0.0
    %1513 = vmatprep.subr.mxu0 0.0
    %1514 = vmatpush2.msra.mxu0 0.0
    %1515 = vmatprep.subr.mxu0 0.0
    %1516 = vmatpush2.msra.mxu0 0.0
    %1517 = vmatprep.subr.mxu0 0.0
    %1518 = vmatpush2.msra.mxu0 0.0
    %1519 = vmatprep.subr.mxu0 0.0
    %1520 = vmatpush2.msra.mxu0 0.0
    %1521 = vmatprep.subr.mxu0 0.0
    %1522 = vmatpush2.msra.mxu0 0.0
    %1523 = vmatprep.subr.mxu0 0.0
    %1524 = vmatpush2.msra.mxu0 0.0
    %1525 = vmatprep.subr.mxu0 0.0
    %1526 = vmatpush2.msra.mxu0 0.0
    %1527 = vmatprep.subr.mxu0 0.0
    %1528 = vmatpush2.msra.mxu0 0.0
    %1529 = vmatprep.subr.mxu0 0.0
    %1530 = vmatpush2.msra.mxu0 0.0
    %1531 = vmatprep.subr.mxu0 0.0
    %1532 = vmatpush2.msra.mxu0 0.0
    %1533 = vmatprep.subr.mxu0 0.0
    %1534 = vmatpush2.msra.mxu0 0.0
    %1535 = vmatprep.subr.mxu0 0.0
    %1536 = vmatpush2.msra.mxu0 0.0
    %1537 = vmatprep.subr.mxu0 0.0
    %1538 = vmatpush2.msra.mxu0 0.0
    %1539 = vmatprep.mubr.f32.mxu0 0.0
    %1540 = vmatmul.mubr.f32.gmra.mxu0 %v487
    %v1541 = vpop.f32.mrf.mxu0
    %v1542 = vadd.f32 %v1472, %v1541
    %v1543 = vpop.f32.mrf.mxu0
    %1544 = vdwg.mxu0
    %s1545 = scalar_lea.vmem %s7, 3
    %v1546 = vld [vmem:[%s1545] sm:$0x1]
    %v1548 = vlaneseq
    %v1549 = vshrl.u32 %v1548, 7
    %v1550 = vsub.s32 0, %v1549
    %v1551 = vrot.slane %v1546, %v1550
    %v1553 = vadd.f32 %v1542, %v1551
    %v1554 = vmax.f32 %v1553, 0.0
    %s1555 = scalar_lea.vmem %s8, 3
    %v1556 = vld [vmem:[%s1555] sm:$0x1]
    %v1558 = vlaneseq
    %v1559 = vshrl.u32 %v1558, 7
    %v1560 = vsub.s32 0, %v1559
    %v1561 = vrot.slane %v1556, %v1560
    %v1563 = vmul.f32 %v1554, %v1561
    %v1564 = vsel %vm576, %v1563, 0.0
    %1565 = vadd.xlane.f32.xlu0 %v1564
    %v1566 = vpop.xlane.xlu0 %1565
    %vm1567 = vcmp.eq.s32.totalorder %v40, 3
    %v1568 = vsel %vm1567, %v1566, 0.0
    %v1569 = vadd.f32 %v1240, %v1568
    %s1570 = scalar_lea.vmem %s3, 8
    %v1571 = vld [vmem:[%s1570] sm:$0x3]
    %1572 = vset.pattern.permute.xlu0 0
    %1573 = vperm.xlu0 %1572, %v1571
    %v1574 = vpop.permute.xlu0 %1573
    %vm1575 = vcmp.eq.s32.totalorder %v40, %v1574
    %1576 = vset.pattern.permute.xlu0 4
    %1577 = vperm.xlu0 %1576, %v232
    %v1578 = vpop.permute.xlu0 %1577
    %v1580 = vsel %vm1575, %v1578, 0.0
    %v1581 = vadd.f32 %v1580, 0.0
    %1582 = vset.pattern.permute.xlu0 1
    %1583 = vperm.xlu0 %1582, %v1571
    %v1584 = vpop.permute.xlu0 %1583
    %vm1585 = vcmp.eq.s32.totalorder %v40, %v1584
    %1586 = vset.pattern.permute.xlu0 4
    %1587 = vperm.xlu0 %1586, %v245
    %v1588 = vpop.permute.xlu0 %1587
    %v1590 = vsel %vm1585, %v1588, 0.0
    %v1591 = vadd.f32 %v1581, %v1590
    %1592 = vset.pattern.permute.xlu0 2
    %1593 = vperm.xlu0 %1592, %v1571
    %v1594 = vpop.permute.xlu0 %1593
    %vm1595 = vcmp.eq.s32.totalorder %v40, %v1594
    %1596 = vset.pattern.permute.xlu0 4
    %1597 = vperm.xlu0 %1596, %v258
    %v1598 = vpop.permute.xlu0 %1597
    %v1600 = vsel %vm1595, %v1598, 0.0
    %v1601 = vadd.f32 %v1591, %v1600
    %1602 = vset.pattern.permute.xlu0 3
    %1603 = vperm.xlu0 %1602, %v1571
    %v1604 = vpop.permute.xlu0 %1603
    %vm1605 = vcmp.eq.s32.totalorder %v40, %v1604
    %1606 = vset.pattern.permute.xlu0 4
    %1607 = vperm.xlu0 %1606, %v271
    %v1608 = vpop.permute.xlu0 %1607
    %v1610 = vsel %vm1605, %v1608, 0.0
    %v1611 = vadd.f32 %v1601, %v1610
    %1612 = vset.pattern.permute.xlu0 4
    %1613 = vperm.xlu0 %1612, %v1571
    %v1614 = vpop.permute.xlu0 %1613
    %vm1615 = vcmp.eq.s32.totalorder %v40, %v1614
    %1616 = vset.pattern.permute.xlu0 4
    %1617 = vperm.xlu0 %1616, %v284
    %v1618 = vpop.permute.xlu0 %1617
    %v1620 = vsel %vm1615, %v1618, 0.0
    %v1621 = vadd.f32 %v1611, %v1620
    %1622 = vset.pattern.permute.xlu0 5
    %1623 = vperm.xlu0 %1622, %v1571
    %v1624 = vpop.permute.xlu0 %1623
    %vm1625 = vcmp.eq.s32.totalorder %v40, %v1624
    %1626 = vset.pattern.permute.xlu0 4
    %1627 = vperm.xlu0 %1626, %v297
    %v1628 = vpop.permute.xlu0 %1627
    %v1630 = vsel %vm1625, %v1628, 0.0
    %v1631 = vadd.f32 %v1621, %v1630
    %1632 = vset.pattern.permute.xlu0 6
    %1633 = vperm.xlu0 %1632, %v1571
    %v1634 = vpop.permute.xlu0 %1633
    %vm1635 = vcmp.eq.s32.totalorder %v40, %v1634
    %1636 = vset.pattern.permute.xlu0 4
    %1637 = vperm.xlu0 %1636, %v310
    %v1638 = vpop.permute.xlu0 %1637
    %v1640 = vsel %vm1635, %v1638, 0.0
    %v1641 = vadd.f32 %v1631, %v1640
    %1642 = vset.pattern.permute.xlu0 7
    %1643 = vperm.xlu0 %1642, %v1571
    %v1644 = vpop.permute.xlu0 %1643
    %vm1645 = vcmp.eq.s32.totalorder %v40, %v1644
    %1646 = vset.pattern.permute.xlu0 4
    %1647 = vperm.xlu0 %1646, %v323
    %v1648 = vpop.permute.xlu0 %1647
    %v1650 = vsel %vm1645, %v1648, 0.0
    %v1651 = vadd.f32 %v1641, %v1650
    %v1653 = vsel %vm151, %v1651, 0
    %1655 = vmatprep.subr.mxu0 0.0
    %1656 = vmatpush1.msra.mxu0 0.0
    %1657 = vmatprep.subr.mxu0 0.0
    %1658 = vmatpush1.msra.mxu0 0.0
    %1659 = vmatprep.subr.mxu0 0.0
    %1660 = vmatpush1.msra.mxu0 0.0
    %1661 = vmatprep.subr.mxu0 0.0
    %1662 = vmatpush1.msra.mxu0 0.0
    %1663 = vmatprep.subr.mxu0 0.0
    %1664 = vmatpush1.msra.mxu0 0.0
    %1665 = vmatprep.subr.mxu0 0.0
    %1666 = vmatpush1.msra.mxu0 0.0
    %1667 = vmatprep.subr.mxu0 0.0
    %1668 = vmatpush1.msra.mxu0 0.0
    %1669 = vmatprep.subr.mxu0 0.0
    %1670 = vmatpush1.msra.mxu0 0.0
    %1671 = vmatprep.subr.mxu0 0.0
    %1672 = vmatpush1.msra.mxu0 0.0
    %1673 = vmatprep.subr.mxu0 0.0
    %1674 = vmatpush1.msra.mxu0 0.0
    %1675 = vmatprep.subr.mxu0 0.0
    %1676 = vmatpush1.msra.mxu0 0.0
    %1677 = vmatprep.subr.mxu0 0.0
    %1678 = vmatpush1.msra.mxu0 0.0
    %1679 = vmatprep.subr.mxu0 0.0
    %1680 = vmatpush1.msra.mxu0 0.0
    %1681 = vmatprep.subr.mxu0 0.0
    %1682 = vmatpush1.msra.mxu0 %v38
    %1683 = vmatprep.subr.mxu0 0.0
    %1684 = vmatpush1.msra.mxu0 %v37
    %1685 = vmatprep.subr.mxu0 0.0
    %1686 = vmatpush1.msra.mxu0 %v36
    %1687 = vmatprep.subr.mxu0 0.0
    %1688 = vmatpush2.msra.mxu0 0.0
    %1689 = vmatprep.subr.mxu0 0.0
    %1690 = vmatpush2.msra.mxu0 0.0
    %1691 = vmatprep.subr.mxu0 0.0
    %1692 = vmatpush2.msra.mxu0 0.0
    %1693 = vmatprep.subr.mxu0 0.0
    %1694 = vmatpush2.msra.mxu0 0.0
    %1695 = vmatprep.subr.mxu0 0.0
    %1696 = vmatpush2.msra.mxu0 0.0
    %1697 = vmatprep.subr.mxu0 0.0
    %1698 = vmatpush2.msra.mxu0 0.0
    %1699 = vmatprep.subr.mxu0 0.0
    %1700 = vmatpush2.msra.mxu0 0.0
    %1701 = vmatprep.subr.mxu0 0.0
    %1702 = vmatpush2.msra.mxu0 0.0
    %1703 = vmatprep.subr.mxu0 0.0
    %1704 = vmatpush2.msra.mxu0 0.0
    %1705 = vmatprep.subr.mxu0 0.0
    %1706 = vmatpush2.msra.mxu0 0.0
    %1707 = vmatprep.subr.mxu0 0.0
    %1708 = vmatpush2.msra.mxu0 0.0
    %1709 = vmatprep.subr.mxu0 0.0
    %1710 = vmatpush2.msra.mxu0 0.0
    %1711 = vmatprep.subr.mxu0 0.0
    %1712 = vmatpush2.msra.mxu0 0.0
    %1713 = vmatprep.subr.mxu0 0.0
    %1714 = vmatpush2.msra.mxu0 0.0
    %1715 = vmatprep.subr.mxu0 0.0
    %1716 = vmatpush2.msra.mxu0 0.0
    %1717 = vmatprep.subr.mxu0 0.0
    %1718 = vmatpush2.msra.mxu0 0.0
    %1719 = vmatprep.mubr.f32.mxu0 0.0
    %1720 = vmatmul.mubr.f32.gmra.mxu0 %v1653
    %v1721 = vpop.f32.mrf.mxu0
    %v1722 = vadd.f32 0.0, %v1721
    %v1723 = vpop.f32.mrf.mxu0
    %1724 = vdwg.mxu0
    %s1725 = scalar_lea.vmem %s5, 64
    %v1726 = vld [vmem:[%s1725] sm:$0xff]
    %v1727 = vld [vmem:[%s1725 + $0x8] sm:$0xff]
    %s1728 = scalar_lea.vmem %s6, 64
    %v1729 = vld [vmem:[%s1728] sm:$0xff]
    %v1730 = vld [vmem:[%s1728 + $0x8] sm:$0xff]
    %v1732 = vsel %vm412, %v1722, 0
    %1734 = vmatprep.subr.mxu0 0.0
    %1735 = vmatpush1.msra.mxu0 0.0
    %1736 = vmatprep.subr.mxu0 0.0
    %1737 = vmatpush1.msra.mxu0 0.0
    %1738 = vmatprep.subr.mxu0 0.0
    %1739 = vmatpush1.msra.mxu0 0.0
    %1740 = vmatprep.subr.mxu0 0.0
    %1741 = vmatpush1.msra.mxu0 0.0
    %1742 = vmatprep.subr.mxu0 0.0
    %1743 = vmatpush1.msra.mxu0 0.0
    %1744 = vmatprep.subr.mxu0 0.0
    %1745 = vmatpush1.msra.mxu0 0.0
    %1746 = vmatprep.subr.mxu0 0.0
    %1747 = vmatpush1.msra.mxu0 0.0
    %1748 = vmatprep.subr.mxu0 0.0
    %1749 = vmatpush1.msra.mxu0 0.0
    %1750 = vmatprep.subr.mxu0 0.0
    %1751 = vmatpush1.msra.mxu0 0.0
    %1752 = vmatprep.subr.mxu0 0.0
    %1753 = vmatpush1.msra.mxu0 0.0
    %1754 = vmatprep.subr.mxu0 0.0
    %1755 = vmatpush1.msra.mxu0 0.0
    %1756 = vmatprep.subr.mxu0 0.0
    %1757 = vmatpush1.msra.mxu0 0.0
    %1758 = vmatprep.subr.mxu0 0.0
    %1759 = vmatpush1.msra.mxu0 0.0
    %1760 = vmatprep.subr.mxu0 0.0
    %1761 = vmatpush1.msra.mxu0 0.0
    %1762 = vmatprep.subr.mxu0 0.0
    %1763 = vmatpush1.msra.mxu0 %v1730
    %1764 = vmatprep.subr.mxu0 0.0
    %1765 = vmatpush1.msra.mxu0 %v1729
    %1766 = vmatprep.subr.mxu0 0.0
    %1767 = vmatpush2.msra.mxu0 0.0
    %1768 = vmatprep.subr.mxu0 0.0
    %1769 = vmatpush2.msra.mxu0 0.0
    %1770 = vmatprep.subr.mxu0 0.0
    %1771 = vmatpush2.msra.mxu0 0.0
    %1772 = vmatprep.subr.mxu0 0.0
    %1773 = vmatpush2.msra.mxu0 0.0
    %1774 = vmatprep.subr.mxu0 0.0
    %1775 = vmatpush2.msra.mxu0 0.0
    %1776 = vmatprep.subr.mxu0 0.0
    %1777 = vmatpush2.msra.mxu0 0.0
    %1778 = vmatprep.subr.mxu0 0.0
    %1779 = vmatpush2.msra.mxu0 0.0
    %1780 = vmatprep.subr.mxu0 0.0
    %1781 = vmatpush2.msra.mxu0 0.0
    %1782 = vmatprep.subr.mxu0 0.0
    %1783 = vmatpush2.msra.mxu0 0.0
    %1784 = vmatprep.subr.mxu0 0.0
    %1785 = vmatpush2.msra.mxu0 0.0
    %1786 = vmatprep.subr.mxu0 0.0
    %1787 = vmatpush2.msra.mxu0 0.0
    %1788 = vmatprep.subr.mxu0 0.0
    %1789 = vmatpush2.msra.mxu0 0.0
    %1790 = vmatprep.subr.mxu0 0.0
    %1791 = vmatpush2.msra.mxu0 0.0
    %1792 = vmatprep.subr.mxu0 0.0
    %1793 = vmatpush2.msra.mxu0 0.0
    %1794 = vmatprep.subr.mxu0 0.0
    %1795 = vmatpush2.msra.mxu0 0.0
    %1796 = vmatprep.subr.mxu0 0.0
    %1797 = vmatpush2.msra.mxu0 0.0
    %1798 = vmatprep.mubr.f32.mxu0 0.0
    %1799 = vmatmul.mubr.f32.gmra.mxu0 %v1732
    %v1800 = vpop.f32.mrf.mxu0
    %v1801 = vadd.f32 0.0, %v1800
    %v1802 = vpop.f32.mrf.mxu0
    %1803 = vdwg.mxu0
    %1804 = vmatprep.subr.mxu0 0.0
    %1805 = vmatpush1.msra.mxu0 0.0
    %1806 = vmatprep.subr.mxu0 0.0
    %1807 = vmatpush1.msra.mxu0 0.0
    %1808 = vmatprep.subr.mxu0 0.0
    %1809 = vmatpush1.msra.mxu0 0.0
    %1810 = vmatprep.subr.mxu0 0.0
    %1811 = vmatpush1.msra.mxu0 0.0
    %1812 = vmatprep.subr.mxu0 0.0
    %1813 = vmatpush1.msra.mxu0 0.0
    %1814 = vmatprep.subr.mxu0 0.0
    %1815 = vmatpush1.msra.mxu0 0.0
    %1816 = vmatprep.subr.mxu0 0.0
    %1817 = vmatpush1.msra.mxu0 0.0
    %1818 = vmatprep.subr.mxu0 0.0
    %1819 = vmatpush1.msra.mxu0 0.0
    %1820 = vmatprep.subr.mxu0 0.0
    %1821 = vmatpush1.msra.mxu0 0.0
    %1822 = vmatprep.subr.mxu0 0.0
    %1823 = vmatpush1.msra.mxu0 0.0
    %1824 = vmatprep.subr.mxu0 0.0
    %1825 = vmatpush1.msra.mxu0 0.0
    %1826 = vmatprep.subr.mxu0 0.0
    %1827 = vmatpush1.msra.mxu0 0.0
    %1828 = vmatprep.subr.mxu0 0.0
    %1829 = vmatpush1.msra.mxu0 0.0
    %1830 = vmatprep.subr.mxu0 0.0
    %1831 = vmatpush1.msra.mxu0 0.0
    %1832 = vmatprep.subr.mxu0 0.0
    %1833 = vmatpush1.msra.mxu0 %v1727
    %1834 = vmatprep.subr.mxu0 0.0
    %1835 = vmatpush1.msra.mxu0 %v1726
    %1836 = vmatprep.subr.mxu0 0.0
    %1837 = vmatpush2.msra.mxu0 0.0
    %1838 = vmatprep.subr.mxu0 0.0
    %1839 = vmatpush2.msra.mxu0 0.0
    %1840 = vmatprep.subr.mxu0 0.0
    %1841 = vmatpush2.msra.mxu0 0.0
    %1842 = vmatprep.subr.mxu0 0.0
    %1843 = vmatpush2.msra.mxu0 0.0
    %1844 = vmatprep.subr.mxu0 0.0
    %1845 = vmatpush2.msra.mxu0 0.0
    %1846 = vmatprep.subr.mxu0 0.0
    %1847 = vmatpush2.msra.mxu0 0.0
    %1848 = vmatprep.subr.mxu0 0.0
    %1849 = vmatpush2.msra.mxu0 0.0
    %1850 = vmatprep.subr.mxu0 0.0
    %1851 = vmatpush2.msra.mxu0 0.0
    %1852 = vmatprep.subr.mxu0 0.0
    %1853 = vmatpush2.msra.mxu0 0.0
    %1854 = vmatprep.subr.mxu0 0.0
    %1855 = vmatpush2.msra.mxu0 0.0
    %1856 = vmatprep.subr.mxu0 0.0
    %1857 = vmatpush2.msra.mxu0 0.0
    %1858 = vmatprep.subr.mxu0 0.0
    %1859 = vmatpush2.msra.mxu0 0.0
    %1860 = vmatprep.subr.mxu0 0.0
    %1861 = vmatpush2.msra.mxu0 0.0
    %1862 = vmatprep.subr.mxu0 0.0
    %1863 = vmatpush2.msra.mxu0 0.0
    %1864 = vmatprep.subr.mxu0 0.0
    %1865 = vmatpush2.msra.mxu0 0.0
    %1866 = vmatprep.subr.mxu0 0.0
    %1867 = vmatpush2.msra.mxu0 0.0
    %1868 = vmatprep.mubr.f32.mxu0 0.0
    %1869 = vmatmul.mubr.f32.gmra.mxu0 %v487
    %v1870 = vpop.f32.mrf.mxu0
    %v1871 = vadd.f32 %v1801, %v1870
    %v1872 = vpop.f32.mrf.mxu0
    %1873 = vdwg.mxu0
    %s1874 = scalar_lea.vmem %s7, 4
    %v1875 = vld [vmem:[%s1874] sm:$0x1]
    %v1877 = vlaneseq
    %v1878 = vshrl.u32 %v1877, 7
    %v1879 = vsub.s32 0, %v1878
    %v1880 = vrot.slane %v1875, %v1879
    %v1882 = vadd.f32 %v1871, %v1880
    %v1883 = vmax.f32 %v1882, 0.0
    %s1884 = scalar_lea.vmem %s8, 4
    %v1885 = vld [vmem:[%s1884] sm:$0x1]
    %v1887 = vlaneseq
    %v1888 = vshrl.u32 %v1887, 7
    %v1889 = vsub.s32 0, %v1888
    %v1890 = vrot.slane %v1885, %v1889
    %v1892 = vmul.f32 %v1883, %v1890
    %v1893 = vsel %vm576, %v1892, 0.0
    %1894 = vadd.xlane.f32.xlu0 %v1893
    %v1895 = vpop.xlane.xlu0 %1894
    %vm1896 = vcmp.eq.s32.totalorder %v40, 4
    %v1897 = vsel %vm1896, %v1895, 0.0
    %v1898 = vadd.f32 %v1569, %v1897
    %v1899 = vld [vmem:[%s9] sm:$0x1]
    %v1901 = vlaneseq
    %v1902 = vshrl.u32 %v1901, 7
    %v1903 = vsub.s32 0, %v1902
    %v1904 = vrot.slane %v1899, %v1903
    %v1906 = vadd.f32 %v1898, %v1904
    %vm1907 = vcmask 33792
    %1908 = vst.msk [vmem:[#allocation2] sm:$0x3] %vm1907, %v1906
    // Predicated region
    $region42: #{baseline_mlp_forward.1} parent=1 // pred_check
      _
    $region43: #{baseline_mlp_forward.1} parent=1 // pred_check_branch
      %1910 = sbr.rel (0) target = $region45
    $region44: #{baseline_mlp_forward.1} parent=1 // pred_region
      %s1912 = ssub.s32 32, 32
      %1913 = vsyncadd [#allocation3], %s1912
      %s1915 = sshll.u32 [#allocation2], 4
      %s1916 = int_to_ptr.vmem [resolvable:$true] %s1915
      %1918 = dma.vmem_to_hbm [thread:$0]  %s1916, 32, %s10, [#allocation3]
    $region45: #{baseline_mlp_forward.1} parent=1 // pred_fallthru
      _
    // Predicated region
    $region46: #{baseline_mlp_forward.1} parent=1 // pred_check
      _
    $region47: #{baseline_mlp_forward.1} parent=1 // pred_check_branch
      %1920 = sbr.rel (0) target = $region49
    $region48: #{baseline_mlp_forward.1} parent=1 // pred_region
      %1921 = dma.done [#allocation3], 32
    $region49: #{baseline_mlp_forward.1} parent=1 // pred_fallthru
      _
    %1922 = vsyncpa [#allocation3], 1

</llo_original>
